<compile_context>
chip_gen: v7x
topology: tpu7x:2x2x1
jax: 0.10.0
libtpu: 0.0.40
codegen_flags: <defaults>
</compile_context>

<pallas_src>
import functools
import math
import numpy as np

import jax
import jax.numpy as jnp
from jax import lax
from jax.experimental import pallas as pl
from jax.experimental.pallas import tpu as pltpu


def _round_up(x, m):
    return ((x + m - 1) // m) * m


def _vmem_capacity_bytes():
    """Generation-aware VMEM capacity (128 MiB on v5e/v6e, 64 MiB on v7x)."""
    try:
        info = pltpu.get_tpu_info()
        cap = int(getattr(info, "vmem_capacity_bytes", 0) or 0)
        if cap > 0:
            return cap
    except Exception:
        pass
    return 64 * 1024 * 1024  # conservative default (v7x-sized)


_VMEM_CAP = _vmem_capacity_bytes()
_VMEM_LIMIT = int(_VMEM_CAP * 0.85)   # scoped-VMEM limit handed to Mosaic
_VMEM_BUDGET = int(_VMEM_CAP * 0.70)  # what the tile planner is allowed to plan with


# --------------------------------------------------------------------------
# Kernel 1: fused f/g/h 1x1 projections (single bf16 matmul, lane-padded N)
# --------------------------------------------------------------------------

def _proj_kernel(x_ref, w_ref, b_ref, f_ref, g_ref, h_ref, *, ck_pad):
    xb = x_ref[...].astype(jnp.bfloat16)                        # cast in-kernel
    acc = jnp.dot(xb, w_ref[...], preferred_element_type=jnp.float32)
    acc = acc + b_ref[...]
    # slices land on 128-lane boundaries -> cheap
    f_ref[...] = acc[:, :ck_pad].astype(f_ref.dtype)
    g_ref[...] = acc[:, ck_pad:2 * ck_pad].astype(g_ref.dtype)
    h_ref[...] = acc[:, 2 * ck_pad:].astype(h_ref.dtype)


def _proj_tile(hw_pad, c_pad, nproj):
    w_cost = 2 * (c_pad * nproj * 2 + nproj * 4)          # weights + bias (dbl-buffered)
    for tm in (1024, 512, 256, 128):
        if hw_pad % tm:
            continue
        cost = (w_cost
                + 2 * tm * c_pad * 4                      # x tile (f32, dbl-buffered)
                + 2 * tm * nproj * 2                      # f/g/h outputs (bf16, dbl-buffered)
                + tm * nproj * 4)                         # f32 accumulator temp
        if cost <= _VMEM_BUDGET:
            return tm
    return 128


def fused_projection(x3d, w_fgh, b_fgh, ck_pad, c_pad):
    bs, hw_pad, _ = x3d.shape
    nproj = w_fgh.shape[1]
    tm = _proj_tile(hw_pad, c_pad, nproj)
    kernel = functools.partial(_proj_kernel, ck_pad=ck_pad)
    return pl.pallas_call(
        kernel,
        out_shape=(jax.ShapeDtypeStruct((bs, hw_pad, ck_pad), jnp.bfloat16),
                   jax.ShapeDtypeStruct((bs, hw_pad, ck_pad), jnp.bfloat16),
                   jax.ShapeDtypeStruct((bs, hw_pad, c_pad), jnp.bfloat16)),
        grid=(bs, hw_pad // tm),
        in_specs=[pl.BlockSpec((None, tm, c_pad), lambda b, i: (b, i, 0)),
                  pl.BlockSpec((c_pad, nproj), lambda b, i: (0, 0)),
                  pl.BlockSpec((1, nproj), lambda b, i: (0, 0))],
        out_specs=(pl.BlockSpec((None, tm, ck_pad), lambda b, i: (b, i, 0)),
                   pl.BlockSpec((None, tm, ck_pad), lambda b, i: (b, i, 0)),
                   pl.BlockSpec((None, tm, c_pad), lambda b, i: (b, i, 0))),
        compiler_params=pltpu.CompilerParams(
            dimension_semantics=("parallel", "parallel"),
            vmem_limit_bytes=_VMEM_LIMIT),
    )(x3d, w_fgh, b_fgh)


# --------------------------------------------------------------------------
# Kernel 2: flash attention + convv (1x1) + gamma-residual, fused epilogue
# --------------------------------------------------------------------------

def _attn_fused_kernel(f_ref, g_ref, h_ref, x_ref, wv_ref, bv_ref, gamma_ref,
                       y_ref, m_sc, l_sc, acc_sc, *, tk, hw_valid, hw_pad):
    ki = pl.program_id(2)

    @pl.when(ki == 0)
    def _():
        m_sc[...] = jnp.full_like(m_sc, -jnp.inf)
        l_sc[...] = jnp.zeros_like(l_sc)
        acc_sc[...] = jnp.zeros_like(acc_sc)

    f = f_ref[...]                                   # (tq, ck_pad) bf16
    g = g_ref[...]                                   # (tk, ck_pad) bf16
    # NT matmul expressed directly (no explicit transpose through the XLU).
    s = lax.dot_general(f, g, (((1,), (1,)), ((), ())),
                        preferred_element_type=jnp.float32)     # (tq, tk) f32

    if hw_valid != hw_pad:
        # Padded key positions (zero rows of x -> bias-valued g/h) must not
        # contribute to the softmax: mask them to a huge negative.
        kpos = ki * tk + lax.broadcasted_iota(jnp.int32, s.shape, 1)
        s = jnp.where(kpos < hw_valid, s, jnp.float32(-1e30))

    m_prev = m_sc[...]
    m_new = jnp.maximum(m_prev, jnp.max(s, axis=-1, keepdims=True))
    alpha = jnp.exp(m_prev - m_new)
    p = jnp.exp(s - m_new)
    l_sc[...] = alpha * l_sc[...] + jnp.sum(p, axis=-1, keepdims=True)
    acc_sc[...] = alpha * acc_sc[...] + jnp.dot(
        p.astype(jnp.bfloat16), h_ref[...], preferred_element_type=jnp.float32)
    m_sc[...] = m_new

    @pl.when(ki == pl.num_programs(2) - 1)
    def _():
        inv_l = pl.reciprocal(l_sc[...], approx=True)            # EUP slot, ~1e-3 rel err
        o = (acc_sc[...] * inv_l).astype(jnp.bfloat16)
        v = jnp.dot(o, wv_ref[...], preferred_element_type=jnp.float32) + bv_ref[...]
        y_ref[...] = x_ref[...] + gamma_ref[0] * v               # residual stays f32


def _attn_tiles(bs, hw_pad, ck_pad, c_pad):
    """Pick (tq, tk) under the generation-aware VMEM budget."""
    def cost(tq, tk):
        fixed = 2 * (c_pad * c_pad * 2 + c_pad * 4)               # Wv, bv (dbl-buffered)
        per_q = 2 * tq * (ck_pad * 2 + c_pad * 4 + c_pad * 4)     # f, x, y tiles
        per_k = 2 * tk * (ck_pad * 2 + c_pad * 2)                 # g, h tiles
        scratch = tq * (2 + c_pad) * 4                            # m, l, acc
        temps = 3 * tq * tk * 4                                   # s / p / exp temps
        return fixed + per_q + per_k + scratch + temps

    def ok_parallel(tq):
        # keep >= 2 parallel grid slices so both v7x TensorCores get work
        return bs * (hw_pad // tq) >= 2 or tq == 128

    # Preferred: keys/values fully VMEM-resident per batch element (tk = hw_pad),
    # so g/h are DMA'd once per batch instead of once per (qi, ki) step.
    for tq in (1024, 512, 256, 128):
        if hw_pad % tq == 0 and ok_parallel(tq) and cost(tq, hw_pad) <= _VMEM_BUDGET:
            return tq, hw_pad
    # Fallback: stream keys in tiles (large hw on small-VMEM chips, e.g. v7x).
    for tq in (512, 256, 128):
        if hw_pad % tq or not ok_parallel(tq):
            continue
        for tk in (2048, 1024, 512, 256, 128):
            if hw_pad % tk == 0 and cost(tq, tk) <= _VMEM_BUDGET:
                return tq, tk
    return 128, 128


def attention_convv_residual(f, g, h, x3d, wv, bv, gamma, hw_valid):
    bs, hw_pad, ck_pad = f.shape
    c_pad = h.shape[-1]
    tq, tk = _attn_tiles(bs, hw_pad, ck_pad, c_pad)
    kernel = functools.partial(_attn_fused_kernel, tk=tk,
                               hw_valid=hw_valid, hw_pad=hw_pad)
    return pl.pallas_call(
        kernel,
        out_shape=jax.ShapeDtypeStruct((bs, hw_pad, c_pad), jnp.float32),
        grid=(bs, hw_pad // tq, hw_pad // tk),
        in_specs=[pl.BlockSpec((None, tq, ck_pad), lambda b, qi, ki: (b, qi, 0)),
                  pl.BlockSpec((None, tk, ck_pad), lambda b, qi, ki: (b, ki, 0)),
                  pl.BlockSpec((None, tk, c_pad), lambda b, qi, ki: (b, ki, 0)),
                  pl.BlockSpec((None, tq, c_pad), lambda b, qi, ki: (b, qi, 0)),
                  pl.BlockSpec((c_pad, c_pad), lambda b, qi, ki: (0, 0)),
                  pl.BlockSpec((1, c_pad), lambda b, qi, ki: (0, 0)),
                  pl.BlockSpec(memory_space=pltpu.MemorySpace.SMEM)],  # gamma scalar
        out_specs=pl.BlockSpec((None, tq, c_pad), lambda b, qi, ki: (b, qi, 0)),
        scratch_shapes=[pltpu.VMEM((tq, 1), jnp.float32),
                        pltpu.VMEM((tq, 1), jnp.float32),
                        pltpu.VMEM((tq, c_pad), jnp.float32)],
        compiler_params=pltpu.CompilerParams(
            dimension_semantics=("parallel", "parallel", "arbitrary"),
            vmem_limit_bytes=_VMEM_LIMIT),
    )(f, g, h, x3d, wv, bv, gamma)


# --------------------------------------------------------------------------
# Parameters (PyTorch Conv2d-style init) and packing into fused padded weights
# --------------------------------------------------------------------------

def init_attention_params(key, in_ch, k=8):
    assert in_ch >= k and in_ch // k >= 1, "in_ch must be >= k (PyTorch module requirement)"
    kf, kg, kh, kv = jax.random.split(key, 4)

    def conv1x1_params(kk, cin, cout):
        kw, kb = jax.random.split(kk)
        bound = 1.0 / math.sqrt(cin)
        w = jax.random.uniform(kw, (cin, cout), jnp.float32, -bound, bound)
        b = jax.random.uniform(kb, (cout,), jnp.float32, -bound, bound)
        return w, b

    wf, bf = conv1x1_params(kf, in_ch, in_ch // k)
    wg, bg = conv1x1_params(kg, in_ch, in_ch // k)
    wh, bh = conv1x1_params(kh, in_ch, in_ch)
    wv, bv = conv1x1_params(kv, in_ch, in_ch)
    gamma = jnp.zeros((1,), jnp.float32)   # matches nn.Parameter(torch.zeros(1))
    return dict(wf=wf, bf=bf, wg=wg, bg=bg, wh=wh, bh=bh, wv=wv, bv=bv, gamma=gamma)


def pack_attention_params(p, in_ch):
    """Build lane-padded, bf16, fused weights. Pad columns/rows are zero so the
    padded math is exactly equivalent to the unpadded math.  ck is padded only
    up to 128 (do NOT pad further: the QK^T contraction stays 128 wide)."""
    ck = p['wf'].shape[1]
    c_pad = _round_up(in_ch, 128)
    ck_pad = _round_up(max(ck, 1), 128)
    nproj = 2 * ck_pad + c_pad

    w_fgh = jnp.zeros((c_pad, nproj), jnp.float32)
    w_fgh = w_fgh.at[:in_ch, :ck].set(p['wf'])
    w_fgh = w_fgh.at[:in_ch, ck_pad:ck_pad + ck].set(p['wg'])
    w_fgh = w_fgh.at[:in_ch, 2 * ck_pad:2 * ck_pad + in_ch].set(p['wh'])
    b_fgh = jnp.zeros((1, nproj), jnp.float32)
    b_fgh = b_fgh.at[0, :ck].set(p['bf'])
    b_fgh = b_fgh.at[0, ck_pad:ck_pad + ck].set(p['bg'])
    b_fgh = b_fgh.at[0, 2 * ck_pad:2 * ck_pad + in_ch].set(p['bh'])

    wv_pad = jnp.zeros((c_pad, c_pad), jnp.float32).at[:in_ch, :in_ch].set(p['wv'])
    bv_pad = jnp.zeros((1, c_pad), jnp.float32).at[0, :in_ch].set(p['bv'])

    return dict(w_fgh=w_fgh.astype(jnp.bfloat16),
                b_fgh=b_fgh,                        # bias stays f32 (added post-MXU)
                wv=wv_pad.astype(jnp.bfloat16),
                bv=bv_pad,
                gamma=p['gamma'],
                ck_pad=ck_pad,
                c_pad=c_pad)


# --------------------------------------------------------------------------
# Forward pass (matches PyTorch SelfAttention.forward)
# --------------------------------------------------------------------------

def self_attention_forward(packed, x_nchw):
    bs, c, d2, d3 = x_nchw.shape
    hw = d2 * d3
    c_pad, ck_pad = packed['c_pad'], packed['ck_pad']
    hw_pad = _round_up(hw, 128)

    # One XLA fusion: NCHW -> channels-last (bs, hw, c) f32, zero-padded on both
    # the spatial and channel dims to (8,128)-friendly sizes.
    x3d = jnp.transpose(x_nchw, (0, 2, 3, 1)).reshape(bs, hw, c).astype(jnp.float32)
    x3d = jnp.pad(x3d, ((0, 0), (0, hw_pad - hw), (0, c_pad - c)))

    f, g, h = fused_projection(x3d, packed['w_fgh'], packed['b_fgh'], ck_pad, c_pad)
    y3d = attention_convv_residual(f, g, h, x3d, packed['wv'], packed['bv'],
                                   packed['gamma'], hw)

    y = y3d[:, :hw, :c].reshape(bs, d2, d3, c)
    # TODO(synk): if downstream consumers accept NHWC, drop this final transpose.
    return jnp.transpose(y, (0, 3, 1, 2))                               # back to NCHW


def self_attention_reference(params, x_nchw):
    """Pure-JAX f32 reference with the exact PyTorch semantics (for validation)."""
    bs, c, d2, d3 = x_nchw.shape
    hw = d2 * d3
    x = jnp.transpose(x_nchw, (0, 2, 3, 1)).reshape(bs, hw, c).astype(jnp.float32)
    f = x @ params['wf'] + params['bf']
    g = x @ params['wg'] + params['bg']
    h = x @ params['wh'] + params['bh']
    att = jax.nn.softmax(jnp.einsum('bic,bjc->bij', f, g), axis=-1)
    o = jnp.einsum('bij,bjc->bic', att, h)
    v = o @ params['wv'] + params['bv']
    y = x + params['gamma'][0] * v
    return jnp.transpose(y.reshape(bs, d2, d3, c), (0, 3, 1, 2))


if __name__ == "__main__":
    key = jax.random.PRNGKey(0)
    kp, kx1, kx2 = jax.random.split(key, 3)

    # SMALL but valid shapes: in_ch must be a multiple of k=8 so convf/convg
    # have >= 1 output channel (PyTorch module constraint).
    bs, in_ch = 2, 64
    params = init_attention_params(kp, in_ch, k=8)

    # --- case 1: 16x16 spatial (hw = 256, multiple of 128), faithful gamma=0 init:
    #     output must equal the input exactly.
    x = jax.random.normal(kx1, (bs, in_ch, 16, 16), jnp.float32)
    packed = pack_attention_params(params, in_ch)
    fwd = jax.jit(functools.partial(self_attention_forward, packed))
    out = jax.block_until_ready(fwd(x))
    assert out.shape == (bs, in_ch, 16, 16) and out.dtype == jnp.float32
    assert bool(jnp.all(jnp.isfinite(out)))
    np.testing.assert_allclose(np.asarray(out), np.asarray(x), rtol=0, atol=0)

    # --- case 2: nonzero gamma, full attention path vs pure-JAX f32 reference
    #     (bf16 MXU inputs, f32 accumulation -> loose tolerance).
    params_nz = dict(params, gamma=jnp.full((1,), 0.7, jnp.float32))
    packed_nz = pack_attention_params(params_nz, in_ch)
    fwd_nz = jax.jit(functools.partial(self_attention_forward, packed_nz))
    out_nz = jax.block_until_ready(fwd_nz(x))
    ref_nz = self_attention_reference(params_nz, x)
    np.testing.assert_allclose(np.asarray(out_nz), np.asarray(ref_nz),
                               rtol=2e-2, atol=2e-2)

    # --- case 3: 12x12 spatial (hw = 144, NOT a multiple of 128) -> exercises the
    #     spatial-padding + padded-key masking path.
    x_odd = jax.random.normal(kx2, (bs, in_ch, 12, 12), jnp.float32)
    out_odd = jax.block_until_ready(fwd_nz(x_odd))
    ref_odd = self_attention_reference(params_nz, x_odd)
    np.testing.assert_allclose(np.asarray(out_odd), np.asarray(ref_odd),
                               rtol=2e-2, atol=2e-2)

    print("KERNEL_OK")
</pallas_src>

<mosaic_0001>
module attributes {stable_mosaic.version = 11 : i64} {
  func.func @_attn_fused_kernel(%arg0: i32, %arg1: i32, %arg2: i32, %arg3: memref<1x256x128xbf16, #tpu.memory_space<vmem>>, %arg4: memref<1x256x128xbf16, #tpu.memory_space<vmem>>, %arg5: memref<1x256x128xbf16, #tpu.memory_space<vmem>>, %arg6: memref<1x256x128xf32, #tpu.memory_space<vmem>>, %arg7: memref<128x128xbf16, #tpu.memory_space<vmem>>, %arg8: memref<1x128xf32, #tpu.memory_space<vmem>>, %arg9: memref<1xf32, #tpu.memory_space<smem>>, %arg10: memref<1x256x128xf32, #tpu.memory_space<vmem>>, %arg11: memref<256x1xf32, #tpu.memory_space<vmem>>, %arg12: memref<256x1xf32, #tpu.memory_space<vmem>>, %arg13: memref<256x128xf32, #tpu.memory_space<vmem>>) attributes {dimension_semantics = [#tpu.dimension_semantics<parallel>, #tpu.dimension_semantics<parallel>, #tpu.dimension_semantics<arbitrary>], iteration_bounds = array<i64: 2, 1, 1>, scalar_prefetch = 0 : i64, scratch_operands = 3 : i64, tpu.core_type = #tpu.core_type<tc>, window_params = [{transform_indices = @transform_0, window_bounds = array<i64: 1, 256, 128>}, {transform_indices = @transform_1, window_bounds = array<i64: 1, 256, 128>}, {transform_indices = @transform_2, window_bounds = array<i64: 1, 256, 128>}, {transform_indices = @transform_3, window_bounds = array<i64: 1, 256, 128>}, {pipeline_mode = #tpu.pipeline_mode<synchronous>, transform_indices = @transform_4, window_bounds = array<i64: 128, 128>}, {pipeline_mode = #tpu.pipeline_mode<synchronous>, transform_indices = @transform_5, window_bounds = array<i64: 1, 128>}, {transform_indices = @transform_6, window_bounds = array<i64: 1>}, {transform_indices = @transform_7, window_bounds = array<i64: 1, 256, 128>}]} {
    %c0_i32 = arith.constant 0 : i32
    %0 = arith.cmpi eq, %arg2, %c0_i32 : i32
    %1 = arith.extui %0 : i1 to i32
    %c0_i32_0 = arith.constant 0 : i32
    %2 = arith.cmpi ne, %1, %c0_i32_0 : i32
    scf.if %2 {
      %cst_26 = arith.constant 0xFF800000 : f32
      %36 = vector.broadcast %cst_26 : f32 to vector<256x1xf32>
      %c0_27 = arith.constant 0 : index
      %c0_28 = arith.constant 0 : index
      %37 = vector.load %arg11[%c0_27, %c0_28] : memref<256x1xf32, #tpu.memory_space<vmem>>, vector<256x1xf32>
      tpu.vector_store %arg11[%c0_27, %c0_28], %36 {strides = array<i32>} : memref<256x1xf32, #tpu.memory_space<vmem>>, vector<256x1xf32>,
      %cst_29 = arith.constant 0.000000e+00 : f32
      %38 = vector.broadcast %cst_29 : f32 to vector<256x1xf32>
      %c0_30 = arith.constant 0 : index
      %c0_31 = arith.constant 0 : index
      %39 = vector.load %arg12[%c0_30, %c0_31] : memref<256x1xf32, #tpu.memory_space<vmem>>, vector<256x1xf32>
      tpu.vector_store %arg12[%c0_30, %c0_31], %38 {strides = array<i32>} : memref<256x1xf32, #tpu.memory_space<vmem>>, vector<256x1xf32>,
      %cst_32 = arith.constant 0.000000e+00 : f32
      %40 = vector.broadcast %cst_32 : f32 to vector<256x128xf32>
      %c0_33 = arith.constant 0 : index
      %c0_34 = arith.constant 0 : index
      %41 = vector.load %arg13[%c0_33, %c0_34] : memref<256x128xf32, #tpu.memory_space<vmem>>, vector<256x128xf32>
      tpu.vector_store %arg13[%c0_33, %c0_34], %40 {strides = array<i32>} : memref<256x128xf32, #tpu.memory_space<vmem>>, vector<256x128xf32>,
    } else {
    }
    %c0 = arith.constant 0 : index
    %c0_1 = arith.constant 0 : index
    %c0_2 = arith.constant 0 : index
    %3 = vector.load %arg3[%c0, %c0_1, %c0_2] : memref<1x256x128xbf16, #tpu.memory_space<vmem>>, vector<1x256x128xbf16>
    %4 = vector.shape_cast %3 : vector<1x256x128xbf16> to vector<256x128xbf16>
    %c0_3 = arith.constant 0 : index
    %c0_4 = arith.constant 0 : index
    %c0_5 = arith.constant 0 : index
    %5 = vector.load %arg4[%c0_3, %c0_4, %c0_5] : memref<1x256x128xbf16, #tpu.memory_space<vmem>>, vector<1x256x128xbf16>
    %6 = vector.shape_cast %5 : vector<1x256x128xbf16> to vector<256x128xbf16>
    %cst = arith.constant dense<0.000000e+00> : vector<256x256xf32>
    %7 = tpu.matmul %4, %6, %cst {dimension_numbers = #tpu.dot_dimension_numbers<[1], [1], [0], [0], [0, 0, 1, 0], [], []>} : vector<256x128xbf16>, vector<256x128xbf16>, vector<256x256xf32> -> vector<256x256xf32>
    %c0_6 = arith.constant 0 : index
    %c0_7 = arith.constant 0 : index
    %8 = vector.load %arg11[%c0_6, %c0_7] : memref<256x1xf32, #tpu.memory_space<vmem>>, vector<256x1xf32>
    %cst_8 = arith.constant dense<0xFF800000> : vector<256xf32>
    %9 = vector.multi_reduction <maximumf>, %7, %cst_8 [1] : vector<256x256xf32> to vector<256xf32>
    %10 = vector.shape_cast %9 : vector<256xf32> to vector<256x1xf32>
    %11 = arith.maximumf %8, %10 : vector<256x1xf32>
    %12 = arith.subf %8, %11 : vector<256x1xf32>
    %13 = math.exp %12 : vector<256x1xf32>
    %14 = vector.broadcast %11 : vector<256x1xf32> to vector<256x256xf32>
    %15 = arith.subf %7, %14 : vector<256x256xf32>
    %16 = math.exp %15 : vector<256x256xf32>
    %c0_9 = arith.constant 0 : index
    %c0_10 = arith.constant 0 : index
    %17 = vector.load %arg12[%c0_9, %c0_10] : memref<256x1xf32, #tpu.memory_space<vmem>>, vector<256x1xf32>
    %18 = arith.mulf %13, %17 : vector<256x1xf32>
    %cst_11 = arith.constant dense<0.000000e+00> : vector<256xf32>
    %19 = vector.multi_reduction <add>, %16, %cst_11 [1] : vector<256x256xf32> to vector<256xf32>
    %20 = vector.shape_cast %19 : vector<256xf32> to vector<256x1xf32>
    %21 = arith.addf %18, %20 : vector<256x1xf32>
    %c0_12 = arith.constant 0 : index
    %c0_13 = arith.constant 0 : index
    %22 = vector.load %arg12[%c0_12, %c0_13] : memref<256x1xf32, #tpu.memory_space<vmem>>, vector<256x1xf32>
    tpu.vector_store %arg12[%c0_12, %c0_13], %21 {strides = array<i32>} : memref<256x1xf32, #tpu.memory_space<vmem>>, vector<256x1xf32>,
    %c0_14 = arith.constant 0 : index
    %c0_15 = arith.constant 0 : index
    %23 = vector.load %arg13[%c0_14, %c0_15] : memref<256x128xf32, #tpu.memory_space<vmem>>, vector<256x128xf32>
    %24 = vector.broadcast %13 : vector<256x1xf32> to vector<256x128xf32>
    %25 = arith.mulf %24, %23 : vector<256x128xf32>
    %26 = arith.truncf %16 : vector<256x256xf32> to vector<256x256xbf16>
    %c0_16 = arith.constant 0 : index
    %c0_17 = arith.constant 0 : index
    %c0_18 = arith.constant 0 : index
    %27 = vector.load %arg5[%c0_16, %c0_17, %c0_18] : memref<1x256x128xbf16, #tpu.memory_space<vmem>>, vector<1x256x128xbf16>
    %28 = vector.shape_cast %27 : vector<1x256x128xbf16> to vector<256x128xbf16>
    %cst_19 = arith.constant dense<0.000000e+00> : vector<256x128xf32>
    %29 = tpu.matmul %26, %28, %cst_19 {dimension_numbers = #tpu.dot_dimension_numbers<[1], [0], [0], [1], [0, 0, 1, 1], [], []>} : vector<256x256xbf16>, vector<256x128xbf16>, vector<256x128xf32> -> vector<256x128xf32>
    %30 = arith.addf %25, %29 : vector<256x128xf32>
    %c0_20 = arith.constant 0 : index
    %c0_21 = arith.constant 0 : index
    %31 = vector.load %arg13[%c0_20, %c0_21] : memref<256x128xf32, #tpu.memory_space<vmem>>, vector<256x128xf32>
    tpu.vector_store %arg13[%c0_20, %c0_21], %30 {strides = array<i32>} : memref<256x128xf32, #tpu.memory_space<vmem>>, vector<256x128xf32>,
    %c0_22 = arith.constant 0 : index
    %c0_23 = arith.constant 0 : index
    %32 = vector.load %arg11[%c0_22, %c0_23] : memref<256x1xf32, #tpu.memory_space<vmem>>, vector<256x1xf32>
    tpu.vector_store %arg11[%c0_22, %c0_23], %11 {strides = array<i32>} : memref<256x1xf32, #tpu.memory_space<vmem>>, vector<256x1xf32>,
    %c0_i32_24 = arith.constant 0 : i32
    %33 = arith.cmpi eq, %arg2, %c0_i32_24 : i32
    %34 = arith.extui %33 : i1 to i32
    %c0_i32_25 = arith.constant 0 : i32
    %35 = arith.cmpi ne, %34, %c0_i32_25 : i32
    scf.if %35 {
      %c0_26 = arith.constant 0 : index
      %c0_27 = arith.constant 0 : index
      %36 = vector.load %arg12[%c0_26, %c0_27] : memref<256x1xf32, #tpu.memory_space<vmem>>, vector<256x1xf32>
      %37 = tpu.reciprocal %36 {approx = true} : vector<256x1xf32> -> vector<256x1xf32>
      %c0_28 = arith.constant 0 : index
      %c0_29 = arith.constant 0 : index
      %38 = vector.load %arg13[%c0_28, %c0_29] : memref<256x128xf32, #tpu.memory_space<vmem>>, vector<256x128xf32>
      %39 = vector.broadcast %37 : vector<256x1xf32> to vector<256x128xf32>
      %40 = arith.mulf %38, %39 : vector<256x128xf32>
      %41 = arith.truncf %40 : vector<256x128xf32> to vector<256x128xbf16>
      %c0_30 = arith.constant 0 : index
      %c0_31 = arith.constant 0 : index
      %42 = vector.load %arg7[%c0_30, %c0_31] : memref<128x128xbf16, #tpu.memory_space<vmem>>, vector<128x128xbf16>
      %cst_32 = arith.constant dense<0.000000e+00> : vector<256x128xf32>
      %43 = tpu.matmul %41, %42, %cst_32 {dimension_numbers = #tpu.dot_dimension_numbers<[1], [0], [0], [1], [0, 0, 1, 1], [], []>} : vector<256x128xbf16>, vector<128x128xbf16>, vector<256x128xf32> -> vector<256x128xf32>
      %c0_33 = arith.constant 0 : index
      %c0_34 = arith.constant 0 : index
      %44 = vector.load %arg8[%c0_33, %c0_34] : memref<1x128xf32, #tpu.memory_space<vmem>>, vector<1x128xf32>
      %45 = vector.broadcast %44 : vector<1x128xf32> to vector<256x128xf32>
      %46 = arith.addf %43, %45 : vector<256x128xf32>
      %c0_35 = arith.constant 0 : index
      %c0_36 = arith.constant 0 : index
      %c0_37 = arith.constant 0 : index
      %47 = vector.load %arg6[%c0_35, %c0_36, %c0_37] : memref<1x256x128xf32, #tpu.memory_space<vmem>>, vector<1x256x128xf32>
      %48 = vector.shape_cast %47 : vector<1x256x128xf32> to vector<256x128xf32>
      %c0_38 = arith.constant 0 : index
      %49 = memref.load %arg9[%c0_38] : memref<1xf32, #tpu.memory_space<smem>>
      %50 = vector.broadcast %49 : f32 to vector<256x128xf32>
      %51 = arith.mulf %50, %46 : vector<256x128xf32>
      %52 = arith.addf %48, %51 : vector<256x128xf32>
      %c0_39 = arith.constant 0 : index
      %c0_40 = arith.constant 0 : index
      %c0_41 = arith.constant 0 : index
      %53 = vector.load %arg10[%c0_39, %c0_40, %c0_41] : memref<1x256x128xf32, #tpu.memory_space<vmem>>, vector<1x256x128xf32>
      %54 = vector.shape_cast %53 : vector<1x256x128xf32> to vector<256x128xf32>
      %55 = vector.shape_cast %52 : vector<256x128xf32> to vector<1x256x128xf32>
      tpu.vector_store %arg10[%c0_39, %c0_40, %c0_41], %55 {strides = array<i32>} : memref<1x256x128xf32, #tpu.memory_space<vmem>>, vector<1x256x128xf32>,
    } else {
    }
    return
  }
  func.func @transform_0(%arg0: i32, %arg1: i32, %arg2: i32) -> (i32, i32, i32) {
    %c0_i32 = arith.constant 0 : i32
    %c0_i32_0 = arith.constant 0 : i32
    return %arg0, %arg1, %c0_i32 : i32, i32, i32
  }
  func.func @transform_1(%arg0: i32, %arg1: i32, %arg2: i32) -> (i32, i32, i32) {
    %c0_i32 = arith.constant 0 : i32
    %c0_i32_0 = arith.constant 0 : i32
    return %arg0, %arg2, %c0_i32 : i32, i32, i32
  }
  func.func @transform_2(%arg0: i32, %arg1: i32, %arg2: i32) -> (i32, i32, i32) {
    %c0_i32 = arith.constant 0 : i32
    %c0_i32_0 = arith.constant 0 : i32
    return %arg0, %arg2, %c0_i32 : i32, i32, i32
  }
  func.func @transform_3(%arg0: i32, %arg1: i32, %arg2: i32) -> (i32, i32, i32) {
    %c0_i32 = arith.constant 0 : i32
    %c0_i32_0 = arith.constant 0 : i32
    return %arg0, %arg1, %c0_i32 : i32, i32, i32
  }
  func.func @transform_4(%arg0: i32, %arg1: i32, %arg2: i32) -> (i32, i32) {
    %c0_i32 = arith.constant 0 : i32
    %c0_i32_0 = arith.constant 0 : i32
    %c0_i32_1 = arith.constant 0 : i32
    return %c0_i32, %c0_i32_0 : i32, i32
  }
  func.func @transform_5(%arg0: i32, %arg1: i32, %arg2: i32) -> (i32, i32) {
    %c0_i32 = arith.constant 0 : i32
    %c0_i32_0 = arith.constant 0 : i32
    %c0_i32_1 = arith.constant 0 : i32
    return %c0_i32, %c0_i32_0 : i32, i32
  }
  func.func @transform_6(%arg0: i32, %arg1: i32, %arg2: i32) -> i32 {
    %c0_i32 = arith.constant 0 : i32
    %c0_i32_0 = arith.constant 0 : i32
    return %c0_i32 : i32
  }
  func.func @transform_7(%arg0: i32, %arg1: i32, %arg2: i32) -> (i32, i32, i32) {
    %c0_i32 = arith.constant 0 : i32
    %c0_i32_0 = arith.constant 0 : i32
    return %arg0, %arg1, %c0_i32 : i32, i32, i32
  }
}

module attributes {stable_mosaic.version = 11 : i64} {
  func.func @_proj_kernel(%arg0: i32, %arg1: i32, %arg2: memref<1x256x128xf32, #tpu.memory_space<vmem>>, %arg3: memref<128x384xbf16, #tpu.memory_space<vmem>>, %arg4: memref<1x384xf32, #tpu.memory_space<vmem>>, %arg5: memref<1x256x128xbf16, #tpu.memory_space<vmem>>, %arg6: memref<1x256x128xbf16, #tpu.memory_space<vmem>>, %arg7: memref<1x256x128xbf16, #tpu.memory_space<vmem>>) attributes {dimension_semantics = [#tpu.dimension_semantics<parallel>, #tpu.dimension_semantics<parallel>], iteration_bounds = array<i64: 2, 1>, scalar_prefetch = 0 : i64, scratch_operands = 0 : i64, tpu.core_type = #tpu.core_type<tc>, window_params = [{transform_indices = @transform_0, window_bounds = array<i64: 1, 256, 128>}, {pipeline_mode = #tpu.pipeline_mode<synchronous>, transform_indices = @transform_1, window_bounds = array<i64: 128, 384>}, {pipeline_mode = #tpu.pipeline_mode<synchronous>, transform_indices = @transform_2, window_bounds = array<i64: 1, 384>}, {transform_indices = @transform_3, window_bounds = array<i64: 1, 256, 128>}, {transform_indices = @transform_4, window_bounds = array<i64: 1, 256, 128>}, {transform_indices = @transform_5, window_bounds = array<i64: 1, 256, 128>}]} {
    %c0 = arith.constant 0 : index
    %c0_0 = arith.constant 0 : index
    %c0_1 = arith.constant 0 : index
    %0 = vector.load %arg2[%c0, %c0_0, %c0_1] : memref<1x256x128xf32, #tpu.memory_space<vmem>>, vector<1x256x128xf32>
    %1 = vector.shape_cast %0 : vector<1x256x128xf32> to vector<256x128xf32>
    %2 = arith.truncf %1 : vector<256x128xf32> to vector<256x128xbf16>
    %c0_2 = arith.constant 0 : index
    %c0_3 = arith.constant 0 : index
    %3 = vector.load %arg3[%c0_2, %c0_3] : memref<128x384xbf16, #tpu.memory_space<vmem>>, vector<128x384xbf16>
    %cst = arith.constant dense<0.000000e+00> : vector<256x384xf32>
    %4 = tpu.matmul %2, %3, %cst {dimension_numbers = #tpu.dot_dimension_numbers<[1], [0], [0], [1], [0, 0, 1, 1], [], []>} : vector<256x128xbf16>, vector<128x384xbf16>, vector<256x384xf32> -> vector<256x384xf32>
    %c0_4 = arith.constant 0 : index
    %c0_5 = arith.constant 0 : index
    %5 = vector.load %arg4[%c0_4, %c0_5] : memref<1x384xf32, #tpu.memory_space<vmem>>, vector<1x384xf32>
    %6 = vector.broadcast %5 : vector<1x384xf32> to vector<256x384xf32>
    %7 = arith.addf %4, %6 : vector<256x384xf32>
    %8 = vector.extract_strided_slice %7 {offsets = [0, 0], sizes = [256, 128], strides = [1, 1]} : vector<256x384xf32> to vector<256x128xf32>
    %9 = arith.truncf %8 : vector<256x128xf32> to vector<256x128xbf16>
    %c0_6 = arith.constant 0 : index
    %c0_7 = arith.constant 0 : index
    %c0_8 = arith.constant 0 : index
    %10 = vector.load %arg5[%c0_6, %c0_7, %c0_8] : memref<1x256x128xbf16, #tpu.memory_space<vmem>>, vector<1x256x128xbf16>
    %11 = vector.shape_cast %10 : vector<1x256x128xbf16> to vector<256x128xbf16>
    %12 = vector.shape_cast %9 : vector<256x128xbf16> to vector<1x256x128xbf16>
    tpu.vector_store %arg5[%c0_6, %c0_7, %c0_8], %12 {strides = array<i32>} : memref<1x256x128xbf16, #tpu.memory_space<vmem>>, vector<1x256x128xbf16>,
    %13 = vector.extract_strided_slice %7 {offsets = [0, 128], sizes = [256, 128], strides = [1, 1]} : vector<256x384xf32> to vector<256x128xf32>
    %14 = arith.truncf %13 : vector<256x128xf32> to vector<256x128xbf16>
    %c0_9 = arith.constant 0 : index
    %c0_10 = arith.constant 0 : index
    %c0_11 = arith.constant 0 : index
    %15 = vector.load %arg6[%c0_9, %c0_10, %c0_11] : memref<1x256x128xbf16, #tpu.memory_space<vmem>>, vector<1x256x128xbf16>
    %16 = vector.shape_cast %15 : vector<1x256x128xbf16> to vector<256x128xbf16>
    %17 = vector.shape_cast %14 : vector<256x128xbf16> to vector<1x256x128xbf16>
    tpu.vector_store %arg6[%c0_9, %c0_10, %c0_11], %17 {strides = array<i32>} : memref<1x256x128xbf16, #tpu.memory_space<vmem>>, vector<1x256x128xbf16>,
    %18 = vector.extract_strided_slice %7 {offsets = [0, 256], sizes = [256, 128], strides = [1, 1]} : vector<256x384xf32> to vector<256x128xf32>
    %19 = arith.truncf %18 : vector<256x128xf32> to vector<256x128xbf16>
    %c0_12 = arith.constant 0 : index
    %c0_13 = arith.constant 0 : index
    %c0_14 = arith.constant 0 : index
    %20 = vector.load %arg7[%c0_12, %c0_13, %c0_14] : memref<1x256x128xbf16, #tpu.memory_space<vmem>>, vector<1x256x128xbf16>
    %21 = vector.shape_cast %20 : vector<1x256x128xbf16> to vector<256x128xbf16>
    %22 = vector.shape_cast %19 : vector<256x128xbf16> to vector<1x256x128xbf16>
    tpu.vector_store %arg7[%c0_12, %c0_13, %c0_14], %22 {strides = array<i32>} : memref<1x256x128xbf16, #tpu.memory_space<vmem>>, vector<1x256x128xbf16>,
    return
  }
  func.func @transform_0(%arg0: i32, %arg1: i32) -> (i32, i32, i32) {
    %c0_i32 = arith.constant 0 : i32
    %c0_i32_0 = arith.constant 0 : i32
    return %arg0, %arg1, %c0_i32 : i32, i32, i32
  }
  func.func @transform_1(%arg0: i32, %arg1: i32) -> (i32, i32) {
    %c0_i32 = arith.constant 0 : i32
    %c0_i32_0 = arith.constant 0 : i32
    %c0_i32_1 = arith.constant 0 : i32
    return %c0_i32, %c0_i32_0 : i32, i32
  }
  func.func @transform_2(%arg0: i32, %arg1: i32) -> (i32, i32) {
    %c0_i32 = arith.constant 0 : i32
    %c0_i32_0 = arith.constant 0 : i32
    %c0_i32_1 = arith.constant 0 : i32
    return %c0_i32, %c0_i32_0 : i32, i32
  }
  func.func @transform_3(%arg0: i32, %arg1: i32) -> (i32, i32, i32) {
    %c0_i32 = arith.constant 0 : i32
    %c0_i32_0 = arith.constant 0 : i32
    return %arg0, %arg1, %c0_i32 : i32, i32, i32
  }
  func.func @transform_4(%arg0: i32, %arg1: i32) -> (i32, i32, i32) {
    %c0_i32 = arith.constant 0 : i32
    %c0_i32_0 = arith.constant 0 : i32
    return %arg0, %arg1, %c0_i32 : i32, i32, i32
  }
  func.func @transform_5(%arg0: i32, %arg1: i32) -> (i32, i32, i32) {
    %c0_i32 = arith.constant 0 : i32
    %c0_i32_0 = arith.constant 0 : i32
    return %arg0, %arg1, %c0_i32 : i32, i32, i32
  }
}

</mosaic_0001>

<llo_original>
// kernel: self_attention_forward.2
$region0: #{self_attention_forward.2}
  #allocation0 [shape = 'u32[]', space=smem, size = 0x4, offset = 0x4, fixed_abs, tag = 'smem constant byte address 0x4 - core index']
  #allocation1 [shape = 'u32[144,128]{1,0:T(1,128)}', space=vmem, size = 0x12000, scoped, tag = 'internal scratch']
  %s0 = inlined_call_operand.vmem [shape: f32[2,256,128], index: 0, kind: input, shape index: {}]
  %s1 = inlined_call_operand.vmem [shape: bf16[128,384], index: 1, kind: input, shape index: {}]
  %s2 = inlined_call_operand.vmem [shape: f32[1,384], index: 2, kind: input, shape index: {}]
  %s3 = inlined_call_operand.vmem [shape: bf16[2,256,128], index: 3, kind: output, shape index: {0}]
  %s4 = inlined_call_operand.vmem [shape: bf16[2,256,128], index: 4, kind: output, shape index: {1}]
  %s5 = inlined_call_operand.vmem [shape: bf16[2,256,128], index: 5, kind: output, shape index: {2}]
  %6 = xla_tuple %s3, %s4, %s5
  %s7 = sld [smem:[#allocation0]]
  $region61: #{self_attention_forward.2} parent=0
    _
  %s9 = ssub.s32 1, %s7
  %s10 = scalar_select 0, %s9, %s7
  loop: start=0, step=1, limit=4
  $region2: #{self_attention_forward.2} parent=0 // loop_pre_header
    _
  $region3: #{self_attention_forward.2} parent=0 // loop_header
    %s12 = sphi 0, %s16
    %p13 = scmp.ge.s32.totalorder %s12, 4
    %s19 = sphi 0, %s31
    %s20 = sphi 0, %s27
    %s21 = sphi 0, %s19
    %s22 = sphi 0, %s20
    %s23 = sphi 0, %s21
    %s24 = sphi 0, %s22
    %s36 = sphi 0, %s38
    %s39 = sphi 0, %s36
    %s40 = sphi 0, %s39
    %s56 = sphi 0, %s40
    %s60 = sphi 0, %s60
    %s62 = sphi 0, %s60
    %s63 = sphi 0, %s62
    %s77 = sphi 0, %s63
    %s81 = sphi 0, %s81
    %s83 = sphi 0, %s81
    %s84 = sphi 0, %s83
    %s98 = sphi 0, %s84
    %s106 = sphi 0, %s108
    %s109 = sphi 0, %s106
    %s110 = sphi 0, %s109
    %s126 = sphi 0, %s110
    %s134 = sphi 0, %s136
    %s137 = sphi 0, %s134
    %s138 = sphi 0, %s137
    %s154 = sphi 0, %s138
    %s162 = sphi 0, %s164
    %s165 = sphi 0, %s162
    %s166 = sphi 0, %s165
    %s182 = sphi 0, %s166
  $region4: #{self_attention_forward.2} parent=0 // loop_header_branch
    %15 = sbr.rel (%p13) target = $region8
  $region5: #{self_attention_forward.2} parent=0 // loop_body
    %s17 = ssub.s32 %s12, 1
    %s18 = ssub.s32 %s12, 2
    %s25 = sadd.s32 1, %s20
    %p26 = scmp.ge.s32.totalorder %s25, 1
    %s27 = scalar_select %p26, 0, %s25
    %s28 = sadd.s32 1, %s19
    %s29 = scalar_select %p26, %s28, %s19
    %p30 = scmp.ge.s32.totalorder %s29, 2
    %s31 = scalar_select %p30, 0, %s29
    %s32 = ssub.s32 %s19, %s31
    %s33 = ssub.s32 %s20, %s27
    %s34 = sor.u32 %s32, %s33
    %p35 = scmp.eq.s32.totalorder %s34, 0
    %s37 = sadd.s32 %s36, 1
    %s38 = scalar_select %p35, %s36, %s37
    %p41 = pneg %p35
    %p42 = scmp.eq.s32.totalorder %s12, 1
    %p43 = por %p41, %p42
    %p44 = scmp.ne.s32.totalorder %s36, %s39
    %p45 = scmp.eq.s32.totalorder %s12, 0
    %p46 = por %p44, %p45
    %p47 = scmp.ne.s32.totalorder %s36, %s39
    %p48 = scmp.eq.s32.totalorder %s17, 1
    %p49 = por %p47, %p48
    %p50 = scmp.ne.s32.totalorder %s39, %s40
    %p51 = scmp.eq.s32.totalorder %s17, 0
    %p52 = por %p50, %p51
    %p53 = scmp.ne.s32.totalorder %s39, %s40
    %p54 = scmp.eq.s32.totalorder %s18, 1
    %p55 = por %p53, %p54
    %p57 = scmp.ne.s32.totalorder %s40, %s56
    %p58 = scmp.eq.s32.totalorder %s18, 0
    %p59 = por %p57, %p58
    %s61 = sadd.s32 %s60, 1
    %p64 = scmp.eq.s32.totalorder %s12, 1
    %p65 = scmp.ne.s32.totalorder %s60, %s62
    %p66 = scmp.eq.s32.totalorder %s12, 0
    %p67 = por %p65, %p66
    %p68 = scmp.ne.s32.totalorder %s60, %s62
    %p69 = scmp.eq.s32.totalorder %s17, 1
    %p70 = por %p68, %p69
    %p71 = scmp.ne.s32.totalorder %s62, %s63
    %p72 = scmp.eq.s32.totalorder %s17, 0
    %p73 = por %p71, %p72
    %p74 = scmp.ne.s32.totalorder %s62, %s63
    %p75 = scmp.eq.s32.totalorder %s18, 1
    %p76 = por %p74, %p75
    %p78 = scmp.ne.s32.totalorder %s63, %s77
    %p79 = scmp.eq.s32.totalorder %s18, 0
    %p80 = por %p78, %p79
    %s82 = sadd.s32 %s81, 1
    %p85 = scmp.eq.s32.totalorder %s12, 1
    %p86 = scmp.ne.s32.totalorder %s81, %s83
    %p87 = scmp.eq.s32.totalorder %s12, 0
    %p88 = por %p86, %p87
    %p89 = scmp.ne.s32.totalorder %s81, %s83
    %p90 = scmp.eq.s32.totalorder %s17, 1
    %p91 = por %p89, %p90
    %p92 = scmp.ne.s32.totalorder %s83, %s84
    %p93 = scmp.eq.s32.totalorder %s17, 0
    %p94 = por %p92, %p93
    %p95 = scmp.ne.s32.totalorder %s83, %s84
    %p96 = scmp.eq.s32.totalorder %s18, 1
    %p97 = por %p95, %p96
    %p99 = scmp.ne.s32.totalorder %s84, %s98
    %p100 = scmp.eq.s32.totalorder %s18, 0
    %p101 = por %p99, %p100
    %s102 = ssub.s32 %s19, %s31
    %s103 = ssub.s32 %s20, %s27
    %s104 = sor.u32 %s102, %s103
    %p105 = scmp.eq.s32.totalorder %s104, 0
    %s107 = sadd.s32 %s106, 1
    %s108 = scalar_select %p105, %s106, %s107
    %p111 = pneg %p105
    %p112 = scmp.eq.s32.totalorder %s12, 1
    %p113 = por %p111, %p112
    %p114 = scmp.ne.s32.totalorder %s106, %s109
    %p115 = scmp.eq.s32.totalorder %s12, 0
    %p116 = por %p114, %p115
    %p117 = scmp.ne.s32.totalorder %s106, %s109
    %p118 = scmp.eq.s32.totalorder %s17, 1
    %p119 = por %p117, %p118
    %p120 = scmp.ne.s32.totalorder %s109, %s110
    %p121 = scmp.eq.s32.totalorder %s17, 0
    %p122 = por %p120, %p121
    %p123 = scmp.ne.s32.totalorder %s109, %s110
    %p124 = scmp.eq.s32.totalorder %s18, 1
    %p125 = por %p123, %p124
    %p127 = scmp.ne.s32.totalorder %s110, %s126
    %p128 = scmp.eq.s32.totalorder %s18, 0
    %p129 = por %p127, %p128
    %s130 = ssub.s32 %s19, %s31
    %s131 = ssub.s32 %s20, %s27
    %s132 = sor.u32 %s130, %s131
    %p133 = scmp.eq.s32.totalorder %s132, 0
    %s135 = sadd.s32 %s134, 1
    %s136 = scalar_select %p133, %s134, %s135
    %p139 = pneg %p133
    %p140 = scmp.eq.s32.totalorder %s12, 1
    %p141 = por %p139, %p140
    %p142 = scmp.ne.s32.totalorder %s134, %s137
    %p143 = scmp.eq.s32.totalorder %s12, 0
    %p144 = por %p142, %p143
    %p145 = scmp.ne.s32.totalorder %s134, %s137
    %p146 = scmp.eq.s32.totalorder %s17, 1
    %p147 = por %p145, %p146
    %p148 = scmp.ne.s32.totalorder %s137, %s138
    %p149 = scmp.eq.s32.totalorder %s17, 0
    %p150 = por %p148, %p149
    %p151 = scmp.ne.s32.totalorder %s137, %s138
    %p152 = scmp.eq.s32.totalorder %s18, 1
    %p153 = por %p151, %p152
    %p155 = scmp.ne.s32.totalorder %s138, %s154
    %p156 = scmp.eq.s32.totalorder %s18, 0
    %p157 = por %p155, %p156
    %s158 = ssub.s32 %s19, %s31
    %s159 = ssub.s32 %s20, %s27
    %s160 = sor.u32 %s158, %s159
    %p161 = scmp.eq.s32.totalorder %s160, 0
    %s163 = sadd.s32 %s162, 1
    %s164 = scalar_select %p161, %s162, %s163
    %p167 = pneg %p161
    %p168 = scmp.eq.s32.totalorder %s12, 1
    %p169 = por %p167, %p168
    %p170 = scmp.ne.s32.totalorder %s162, %s165
    %p171 = scmp.eq.s32.totalorder %s12, 0
    %p172 = por %p170, %p171
    %p173 = scmp.ne.s32.totalorder %s162, %s165
    %p174 = scmp.eq.s32.totalorder %s17, 1
    %p175 = por %p173, %p174
    %p176 = scmp.ne.s32.totalorder %s165, %s166
    %p177 = scmp.eq.s32.totalorder %s17, 0
    %p178 = por %p176, %p177
    %p179 = scmp.ne.s32.totalorder %s165, %s166
    %p180 = scmp.eq.s32.totalorder %s18, 1
    %p181 = por %p179, %p180
    %p183 = scmp.ne.s32.totalorder %s166, %s182
    %p184 = scmp.eq.s32.totalorder %s18, 0
    %p185 = por %p183, %p184
    %p186 = scmp.le.s32.totalorder 1, %s12
    %p187 = scmp.lt.s32.totalorder %s12, 3
    %p188 = pnand %p186, %p187
    %p189 = pneg %p188
    // Predicated region
    $region9: #{self_attention_forward.2} parent=5 // pred_check
      _
    $region10: #{self_attention_forward.2} parent=5 // pred_check_branch
      %191 = sbr.rel (%p188) target = $region12
    $region11: #{self_attention_forward.2} parent=5 // pred_region
      %s192 = ssub.s32 %s12, 1
      // Predicated region
      $region13: #{self_attention_forward.2} parent=11 // pred_check
        %p193 = pneg %p73
      $region14: #{self_attention_forward.2} parent=11 // pred_check_branch
        %195 = sbr.rel (%p193) target = $region16
      $region15: #{self_attention_forward.2} parent=11 // pred_region
        _
      $region16: #{self_attention_forward.2} parent=11 // pred_fallthru
        _
      // Predicated region
      $region17: #{self_attention_forward.2} parent=11 // pred_check
        %p196 = pneg %p94
      $region18: #{self_attention_forward.2} parent=11 // pred_check_branch
        %198 = sbr.rel (%p196) target = $region20
      $region19: #{self_attention_forward.2} parent=11 // pred_region
        _
      $region20: #{self_attention_forward.2} parent=11 // pred_fallthru
        _
    $region12: #{self_attention_forward.2} parent=5 // pred_fallthru
      _
    %p199 = scmp.lt.s32.totalorder %s12, 2
    // Predicated region
    $region21: #{self_attention_forward.2} parent=5 // pred_check
      %p200 = pneg %p199
    $region22: #{self_attention_forward.2} parent=5 // pred_check_branch
      %202 = sbr.rel (%p200) target = $region24
    $region23: #{self_attention_forward.2} parent=5 // pred_region
      // Predicated region
      $region25: #{self_attention_forward.2} parent=23 // pred_check
        %p203 = pneg %p46
      $region26: #{self_attention_forward.2} parent=23 // pred_check_branch
        %205 = sbr.rel (%p203) target = $region28
      $region27: #{self_attention_forward.2} parent=23 // pred_region
        %s206 = smul.u32 32, %s20
        %p207 = scmp.lt.s32.totalorder %s19, 1
        %s208 = scalar_select %p207, %s19, 1
        %p209 = scmp.lt.s32.totalorder %s206, 31
        %s210 = scalar_select %p209, %s206, 31
        %s211 = smul.addr %s208, 32
        %s212 = sadd.s32 %s210, %s211
        %s213 = smul.addr %s212, 8
        %s214 = scalar_lea.vmem %s0, %s213
        %s215 = smul.u32 32, %s20
      $region28: #{self_attention_forward.2} parent=23 // pred_fallthru
        _
    $region24: #{self_attention_forward.2} parent=5 // pred_fallthru
      _
    %p216 = scmp.le.s32.totalorder 1, %s12
    %p217 = scmp.lt.s32.totalorder %s12, 3
    %p218 = pnand %p216, %p217
    %p219 = pneg %p218
    // Predicated region
    $region29: #{self_attention_forward.2} parent=5 // pred_check
      _
    $region30: #{self_attention_forward.2} parent=5 // pred_check_branch
      %221 = sbr.rel (%p218) target = $region32
    $region31: #{self_attention_forward.2} parent=5 // pred_region
      %s222 = ssub.s32 %s12, 1
      %s223 = smul.u32 32, %s22
      %p224 = scmp.lt.s32.totalorder %s21, 1
      %s225 = scalar_select %p224, %s21, 1
      %p226 = scmp.lt.s32.totalorder %s223, 31
      %s227 = scalar_select %p226, %s223, 31
      %s228 = smul.addr %s225, 32
      %s229 = sadd.s32 %s227, %s228
      %s230 = smul.addr %s229, 8
      %s231 = scalar_lea.vmem %s0, %s230
      %p232 = pneg %p52
      %p233 = pneg %p49
      %p234 = pneg %p73
      %p235 = pneg %p70
      %p236 = pneg %p94
      %p237 = pneg %p91
      %p238 = pneg %p122
      %p239 = pneg %p119
      %s240 = smul.u32 32, %s22
      %p241 = scmp.lt.s32.totalorder %s21, 1
      %s242 = scalar_select %p241, %s21, 1
      %p243 = scmp.lt.s32.totalorder %s240, 31
      %s244 = scalar_select %p243, %s240, 31
      %s245 = smul.addr %s242, 32
      %s246 = sadd.s32 %s244, %s245
      %s247 = smul.addr %s246, 4
      %s248 = scalar_lea.vmem %s3, %s247
      %p249 = pneg %p150
      %p250 = pneg %p147
      %s251 = smul.u32 32, %s22
      %p252 = scmp.lt.s32.totalorder %s21, 1
      %s253 = scalar_select %p252, %s21, 1
      %p254 = scmp.lt.s32.totalorder %s251, 31
      %s255 = scalar_select %p254, %s251, 31
      %s256 = smul.addr %s253, 32
      %s257 = sadd.s32 %s255, %s256
      %s258 = smul.addr %s257, 4
      %s259 = scalar_lea.vmem %s4, %s258
      %p260 = pneg %p178
      %p261 = pneg %p175
      %s262 = smul.u32 32, %s22
      %p263 = scmp.lt.s32.totalorder %s21, 1
      %s264 = scalar_select %p263, %s21, 1
      %p265 = scmp.lt.s32.totalorder %s262, 31
      %s266 = scalar_select %p265, %s262, 31
      %s267 = smul.addr %s264, 32
      %s268 = sadd.s32 %s266, %s267
      %s269 = smul.addr %s268, 4
      %s270 = scalar_lea.vmem %s5, %s269
      %s271 = smul.u32 32, %s22
      %p272 = scmp.lt.s32.totalorder %s21, 1
      %s273 = scalar_select %p272, %s21, 1
      %p274 = scmp.lt.s32.totalorder %s271, 31
      %s275 = scalar_select %p274, %s271, 31
      %s276 = smul.addr %s273, 32
      %s277 = sadd.s32 %s275, %s276
      %s278 = smul.addr %s277, 8
      %s279 = scalar_lea.vmem %s0, %s278
      %s280 = smul.u32 32, %s22
      %s281 = smul.u32 32, %s22
      %p282 = scmp.lt.s32.totalorder %s21, 1
      %s283 = scalar_select %p282, %s21, 1
      %p284 = scmp.lt.s32.totalorder %s281, 31
      %s285 = scalar_select %p284, %s281, 31
      %s286 = smul.addr %s283, 32
      %s287 = sadd.s32 %s285, %s286
      %s288 = smul.addr %s287, 4
      %s289 = scalar_lea.vmem %s3, %s288
      %s290 = smul.u32 32, %s22
      %s291 = smul.u32 32, %s22
      %p292 = scmp.lt.s32.totalorder %s21, 1
      %s293 = scalar_select %p292, %s21, 1
      %p294 = scmp.lt.s32.totalorder %s291, 31
      %s295 = scalar_select %p294, %s291, 31
      %s296 = smul.addr %s293, 32
      %s297 = sadd.s32 %s295, %s296
      %s298 = smul.addr %s297, 4
      %s299 = scalar_lea.vmem %s4, %s298
      %s300 = smul.u32 32, %s22
      %s301 = smul.u32 32, %s22
      %p302 = scmp.lt.s32.totalorder %s21, 1
      %s303 = scalar_select %p302, %s21, 1
      %p304 = scmp.lt.s32.totalorder %s301, 31
      %s305 = scalar_select %p304, %s301, 31
      %s306 = smul.addr %s303, 32
      %s307 = sadd.s32 %s305, %s306
      %s308 = smul.addr %s307, 4
      %s309 = scalar_lea.vmem %s5, %s308
      %s310 = smul.u32 32, %s22
      %v312 = vld [vmem:[%s279] sm:$0xff]
      %v313 = vld [vmem:[%s279 + $0x8] sm:$0xff]
      %v314 = vld [vmem:[%s279 + $0x10] sm:$0xff]
      %v315 = vld [vmem:[%s279 + $0x18] sm:$0xff]
      %v316 = vld [vmem:[%s279 + $0x20] sm:$0xff]
      %v317 = vld [vmem:[%s279 + $0x28] sm:$0xff]
      %v318 = vld [vmem:[%s279 + $0x30] sm:$0xff]
      %v319 = vld [vmem:[%s279 + $0x38] sm:$0xff]
      %v320 = vld [vmem:[%s279 + $0x40] sm:$0xff]
      %v321 = vld [vmem:[%s279 + $0x48] sm:$0xff]
      %v322 = vld [vmem:[%s279 + $0x50] sm:$0xff]
      %v323 = vld [vmem:[%s279 + $0x58] sm:$0xff]
      %v324 = vld [vmem:[%s279 + $0x60] sm:$0xff]
      %v325 = vld [vmem:[%s279 + $0x68] sm:$0xff]
      %v326 = vld [vmem:[%s279 + $0x70] sm:$0xff]
      %v327 = vld [vmem:[%s279 + $0x78] sm:$0xff]
      %v328 = vld [vmem:[%s279 + $0x80] sm:$0xff]
      %v329 = vld [vmem:[%s279 + $0x88] sm:$0xff]
      %v330 = vld [vmem:[%s279 + $0x90] sm:$0xff]
      %v331 = vld [vmem:[%s279 + $0x98] sm:$0xff]
      %v332 = vld [vmem:[%s279 + $0xa0] sm:$0xff]
      %v333 = vld [vmem:[%s279 + $0xa8] sm:$0xff]
      %v334 = vld [vmem:[%s279 + $0xb0] sm:$0xff]
      %v335 = vld [vmem:[%s279 + $0xb8] sm:$0xff]
      %v336 = vld [vmem:[%s279 + $0xc0] sm:$0xff]
      %v337 = vld [vmem:[%s279 + $0xc8] sm:$0xff]
      %v338 = vld [vmem:[%s279 + $0xd0] sm:$0xff]
      %v339 = vld [vmem:[%s279 + $0xd8] sm:$0xff]
      %v340 = vld [vmem:[%s279 + $0xe0] sm:$0xff]
      %v341 = vld [vmem:[%s279 + $0xe8] sm:$0xff]
      %v342 = vld [vmem:[%s279 + $0xf0] sm:$0xff]
      %v343 = vld [vmem:[%s279 + $0xf8] sm:$0xff]
      %v344 = vpack.c.bf16 %v313, %v312
      %v345 = vpack.c.bf16 %v315, %v314
      %v346 = vpack.c.bf16 %v317, %v316
      %v347 = vpack.c.bf16 %v319, %v318
      %v348 = vpack.c.bf16 %v321, %v320
      %v349 = vpack.c.bf16 %v323, %v322
      %v350 = vpack.c.bf16 %v325, %v324
      %v351 = vpack.c.bf16 %v327, %v326
      %v352 = vpack.c.bf16 %v329, %v328
      %v353 = vpack.c.bf16 %v331, %v330
      %v354 = vpack.c.bf16 %v333, %v332
      %v355 = vpack.c.bf16 %v335, %v334
      %v356 = vpack.c.bf16 %v337, %v336
      %v357 = vpack.c.bf16 %v339, %v338
      %v358 = vpack.c.bf16 %v341, %v340
      %v359 = vpack.c.bf16 %v343, %v342
      %v360 = vld [vmem:[%s1] sm:$0xff]
      %v361 = vld [vmem:[%s1 + $0x8] sm:$0xf]
      %v362 = vld [vmem:[%s1 + $0xc] sm:$0xff]
      %v363 = vld [vmem:[%s1 + $0x14] sm:$0xf]
      %v364 = vld [vmem:[%s1 + $0x18] sm:$0xff]
      %v365 = vld [vmem:[%s1 + $0x20] sm:$0xf]
      %v366 = vld [vmem:[%s1 + $0x24] sm:$0xff]
      %v367 = vld [vmem:[%s1 + $0x2c] sm:$0xf]
      %v368 = vld [vmem:[%s1 + $0x30] sm:$0xff]
      %v369 = vld [vmem:[%s1 + $0x38] sm:$0xf]
      %v370 = vld [vmem:[%s1 + $0x3c] sm:$0xff]
      %v371 = vld [vmem:[%s1 + $0x44] sm:$0xf]
      %v372 = vld [vmem:[%s1 + $0x48] sm:$0xff]
      %v373 = vld [vmem:[%s1 + $0x50] sm:$0xf]
      %v374 = vld [vmem:[%s1 + $0x54] sm:$0xff]
      %v375 = vld [vmem:[%s1 + $0x5c] sm:$0xf]
      %v376 = vld [vmem:[%s1 + $0x60] sm:$0xff]
      %v377 = vld [vmem:[%s1 + $0x68] sm:$0xf]
      %v378 = vld [vmem:[%s1 + $0x6c] sm:$0xff]
      %v379 = vld [vmem:[%s1 + $0x74] sm:$0xf]
      %v380 = vld [vmem:[%s1 + $0x78] sm:$0xff]
      %v381 = vld [vmem:[%s1 + $0x80] sm:$0xf]
      %v382 = vld [vmem:[%s1 + $0x84] sm:$0xff]
      %v383 = vld [vmem:[%s1 + $0x8c] sm:$0xf]
      %v384 = vld [vmem:[%s1 + $0x90] sm:$0xff]
      %v385 = vld [vmem:[%s1 + $0x98] sm:$0xf]
      %v386 = vld [vmem:[%s1 + $0x9c] sm:$0xff]
      %v387 = vld [vmem:[%s1 + $0xa4] sm:$0xf]
      %v388 = vld [vmem:[%s1 + $0xa8] sm:$0xff]
      %v389 = vld [vmem:[%s1 + $0xb0] sm:$0xf]
      %v390 = vld [vmem:[%s1 + $0xb4] sm:$0xff]
      %v391 = vld [vmem:[%s1 + $0xbc] sm:$0xf]
      %v392 = vld [vmem:[%s2] sm:$0x7]
      %v394 = vlaneseq
      %v395 = vshrl.u32 %v394, 7
      %v396 = vsub.s32 0, %v395
      %v397 = vrot.slane %v392, %v396
      %v398 = vlaneseq
      %v399 = vshrl.u32 %v398, 7
      %v400 = vsub.s32 1, %v399
      %v401 = vrot.slane %v392, %v400
      %v402 = vlaneseq
      %v403 = vshrl.u32 %v402, 7
      %v404 = vsub.s32 2, %v403
      %v405 = vrot.slane %v392, %v404
      %v441 = vunpack.c.l.b16 %v360
      %v442 = vunpack.c.h.b16 %v360
      %v443 = vunpack.c.l.b16 %v361
      %v444 = vunpack.c.l.b16 %v362
      %v445 = vunpack.c.h.b16 %v362
      %v446 = vunpack.c.l.b16 %v363
      %v447 = vunpack.c.l.b16 %v364
      %v448 = vunpack.c.h.b16 %v364
      %v449 = vunpack.c.l.b16 %v365
      %v450 = vunpack.c.l.b16 %v366
      %v451 = vunpack.c.h.b16 %v366
      %v452 = vunpack.c.l.b16 %v367
      %v453 = vunpack.c.l.b16 %v368
      %v454 = vunpack.c.h.b16 %v368
      %v455 = vunpack.c.l.b16 %v369
      %v456 = vunpack.c.l.b16 %v370
      %v457 = vunpack.c.h.b16 %v370
      %v458 = vunpack.c.l.b16 %v371
      %v459 = vunpack.c.l.b16 %v372
      %v460 = vunpack.c.h.b16 %v372
      %v461 = vunpack.c.l.b16 %v373
      %v462 = vunpack.c.l.b16 %v374
      %v463 = vunpack.c.h.b16 %v374
      %v464 = vunpack.c.l.b16 %v375
      %v465 = vunpack.c.l.b16 %v376
      %v466 = vunpack.c.h.b16 %v376
      %v467 = vunpack.c.l.b16 %v377
      %v468 = vunpack.c.l.b16 %v378
      %v469 = vunpack.c.h.b16 %v378
      %v470 = vunpack.c.l.b16 %v379
      %v471 = vunpack.c.l.b16 %v380
      %v472 = vunpack.c.h.b16 %v380
      %v473 = vunpack.c.l.b16 %v381
      %v474 = vunpack.c.l.b16 %v382
      %v475 = vunpack.c.h.b16 %v382
      %v476 = vunpack.c.l.b16 %v383
      %v477 = vunpack.c.l.b16 %v384
      %v478 = vunpack.c.h.b16 %v384
      %v479 = vunpack.c.l.b16 %v385
      %v480 = vunpack.c.l.b16 %v386
      %v481 = vunpack.c.h.b16 %v386
      %v482 = vunpack.c.l.b16 %v387
      %v483 = vunpack.c.l.b16 %v388
      %v484 = vunpack.c.h.b16 %v388
      %v485 = vunpack.c.l.b16 %v389
      %v486 = vunpack.c.l.b16 %v390
      %v487 = vunpack.c.h.b16 %v390
      %v488 = vunpack.c.l.b16 %v391
      %v489 = vpack.c.b16 %v444, %v441
      %v490 = vpack.c.b16 %v445, %v442
      %v491 = vpack.c.b16 %v446, %v443
      %v492 = vpack.c.b16 %v450, %v447
      %v493 = vpack.c.b16 %v451, %v448
      %v494 = vpack.c.b16 %v452, %v449
      %v495 = vpack.c.b16 %v456, %v453
      %v496 = vpack.c.b16 %v457, %v454
      %v497 = vpack.c.b16 %v458, %v455
      %v498 = vpack.c.b16 %v462, %v459
      %v499 = vpack.c.b16 %v463, %v460
      %v500 = vpack.c.b16 %v464, %v461
      %v501 = vpack.c.b16 %v468, %v465
      %v502 = vpack.c.b16 %v469, %v466
      %v503 = vpack.c.b16 %v470, %v467
      %v504 = vpack.c.b16 %v474, %v471
      %v505 = vpack.c.b16 %v475, %v472
      %v506 = vpack.c.b16 %v476, %v473
      %v507 = vpack.c.b16 %v480, %v477
      %v508 = vpack.c.b16 %v481, %v478
      %v509 = vpack.c.b16 %v482, %v479
      %v510 = vpack.c.b16 %v486, %v483
      %v511 = vpack.c.b16 %v487, %v484
      %v512 = vpack.c.b16 %v488, %v485
      %537 = vmatprep.subr.bf16.mxu0 %v490
      %538 = vmatpush1.bf16.msra.mxu0 %v489
      %539 = vmatprep.subr.bf16.mxu0 %v493
      %540 = vmatpush1.bf16.msra.mxu0 %v492
      %541 = vmatprep.subr.bf16.mxu0 %v496
      %542 = vmatpush1.bf16.msra.mxu0 %v495
      %543 = vmatprep.subr.bf16.mxu0 %v499
      %544 = vmatpush1.bf16.msra.mxu0 %v498
      %545 = vmatprep.subr.bf16.mxu0 %v502
      %546 = vmatpush1.bf16.msra.mxu0 %v501
      %547 = vmatprep.subr.bf16.mxu0 %v505
      %548 = vmatpush1.bf16.msra.mxu0 %v504
      %549 = vmatprep.subr.bf16.mxu0 %v508
      %550 = vmatpush1.bf16.msra.mxu0 %v507
      %551 = vmatprep.subr.bf16.mxu0 %v511
      %552 = vmatpush1.bf16.msra.mxu0 %v510
      %553 = vmatprep.subr.bf16.mxu0 0
      %554 = vmatpush1.bf16.msra.mxu0 0
      %555 = vmatprep.subr.bf16.mxu0 0
      %556 = vmatpush1.bf16.msra.mxu0 0
      %557 = vmatprep.subr.bf16.mxu0 0
      %558 = vmatpush1.bf16.msra.mxu0 0
      %559 = vmatprep.subr.bf16.mxu0 0
      %560 = vmatpush1.bf16.msra.mxu0 0
      %561 = vmatprep.subr.bf16.mxu0 0
      %562 = vmatpush1.bf16.msra.mxu0 0
      %563 = vmatprep.subr.bf16.mxu0 0
      %564 = vmatpush1.bf16.msra.mxu0 0
      %565 = vmatprep.subr.bf16.mxu0 0
      %566 = vmatpush1.bf16.msra.mxu0 0
      %567 = vmatprep.subr.bf16.mxu0 0
      %568 = vmatpush1.bf16.msra.mxu0 0
      %569 = vmatprep.mubr.bf16.mxu0 0
      %570 = vmatmul.mubr.bf16.gmra.mrb[0].mxu0 %v344
      %v571 = vpop.f32.mrb[0].mxu0
      %v572 = vadd.f32 %v397, %v571
      %v573 = vpop.f32.mrb[0].mxu0
      %v574 = vadd.f32 %v401, %v573
      %v575 = vpop.f32.mrb[0].mxu0
      %v576 = vadd.f32 %v397, %v575
      %v577 = vpop.f32.mrb[0].mxu0
      %v578 = vadd.f32 %v401, %v577
      %579 = vmatprep.mubr.bf16.mxu0 0
      %580 = vmatmul.mubr.bf16.gmra.mrb[0].mxu0 %v345
      %v581 = vpop.f32.mrb[0].mxu0
      %v582 = vadd.f32 %v397, %v581
      %v583 = vpop.f32.mrb[0].mxu0
      %v584 = vadd.f32 %v401, %v583
      %v585 = vpop.f32.mrb[0].mxu0
      %v586 = vadd.f32 %v397, %v585
      %v587 = vpop.f32.mrb[0].mxu0
      %v588 = vadd.f32 %v401, %v587
      %589 = vmatprep.mubr.bf16.mxu0 0
      %590 = vmatmul.mubr.bf16.gmra.mrb[0].mxu0 %v346
      %v591 = vpop.f32.mrb[0].mxu0
      %v592 = vadd.f32 %v397, %v591
      %v593 = vpop.f32.mrb[0].mxu0
      %v594 = vadd.f32 %v401, %v593
      %v595 = vpop.f32.mrb[0].mxu0
      %v596 = vadd.f32 %v397, %v595
      %v597 = vpop.f32.mrb[0].mxu0
      %v598 = vadd.f32 %v401, %v597
      %599 = vmatprep.mubr.bf16.mxu0 0
      %600 = vmatmul.mubr.bf16.gmra.mrb[0].mxu0 %v347
      %v601 = vpop.f32.mrb[0].mxu0
      %v602 = vadd.f32 %v397, %v601
      %v603 = vpop.f32.mrb[0].mxu0
      %v604 = vadd.f32 %v401, %v603
      %v605 = vpop.f32.mrb[0].mxu0
      %v606 = vadd.f32 %v397, %v605
      %v607 = vpop.f32.mrb[0].mxu0
      %v608 = vadd.f32 %v401, %v607
      %609 = vmatprep.mubr.bf16.mxu0 0
      %610 = vmatmul.mubr.bf16.gmra.mrb[0].mxu0 %v348
      %v611 = vpop.f32.mrb[0].mxu0
      %v612 = vadd.f32 %v397, %v611
      %v613 = vpop.f32.mrb[0].mxu0
      %v614 = vadd.f32 %v401, %v613
      %v615 = vpop.f32.mrb[0].mxu0
      %v616 = vadd.f32 %v397, %v615
      %v617 = vpop.f32.mrb[0].mxu0
      %v618 = vadd.f32 %v401, %v617
      %619 = vmatprep.mubr.bf16.mxu0 0
      %620 = vmatmul.mubr.bf16.gmra.mrb[0].mxu0 %v349
      %v621 = vpop.f32.mrb[0].mxu0
      %v622 = vadd.f32 %v397, %v621
      %v623 = vpop.f32.mrb[0].mxu0
      %v624 = vadd.f32 %v401, %v623
      %v625 = vpop.f32.mrb[0].mxu0
      %v626 = vadd.f32 %v397, %v625
      %v627 = vpop.f32.mrb[0].mxu0
      %v628 = vadd.f32 %v401, %v627
      %629 = vmatprep.mubr.bf16.mxu0 0
      %630 = vmatmul.mubr.bf16.gmra.mrb[0].mxu0 %v350
      %v631 = vpop.f32.mrb[0].mxu0
      %v632 = vadd.f32 %v397, %v631
      %v633 = vpop.f32.mrb[0].mxu0
      %v634 = vadd.f32 %v401, %v633
      %v635 = vpop.f32.mrb[0].mxu0
      %v636 = vadd.f32 %v397, %v635
      %v637 = vpop.f32.mrb[0].mxu0
      %v638 = vadd.f32 %v401, %v637
      %639 = vmatprep.mubr.bf16.mxu0 0
      %640 = vmatmul.mubr.bf16.gmra.mrb[0].mxu0 %v351
      %v641 = vpop.f32.mrb[0].mxu0
      %v642 = vadd.f32 %v397, %v641
      %v643 = vpop.f32.mrb[0].mxu0
      %v644 = vadd.f32 %v401, %v643
      %v645 = vpop.f32.mrb[0].mxu0
      %v646 = vadd.f32 %v397, %v645
      %v647 = vpop.f32.mrb[0].mxu0
      %v648 = vadd.f32 %v401, %v647
      %649 = vmatprep.mubr.bf16.mxu0 0
      %650 = vmatmul.mubr.bf16.gmra.mrb[0].mxu0 %v352
      %v651 = vpop.f32.mrb[0].mxu0
      %v652 = vadd.f32 %v397, %v651
      %v653 = vpop.f32.mrb[0].mxu0
      %v654 = vadd.f32 %v401, %v653
      %v655 = vpop.f32.mrb[0].mxu0
      %v656 = vadd.f32 %v397, %v655
      %v657 = vpop.f32.mrb[0].mxu0
      %v658 = vadd.f32 %v401, %v657
      %659 = vmatprep.mubr.bf16.mxu0 0
      %660 = vmatmul.mubr.bf16.gmra.mrb[0].mxu0 %v353
      %v661 = vpop.f32.mrb[0].mxu0
      %v662 = vadd.f32 %v397, %v661
      %v663 = vpop.f32.mrb[0].mxu0
      %v664 = vadd.f32 %v401, %v663
      %v665 = vpop.f32.mrb[0].mxu0
      %v666 = vadd.f32 %v397, %v665
      %v667 = vpop.f32.mrb[0].mxu0
      %v668 = vadd.f32 %v401, %v667
      %669 = vmatprep.mubr.bf16.mxu0 0
      %670 = vmatmul.mubr.bf16.gmra.mrb[0].mxu0 %v354
      %v671 = vpop.f32.mrb[0].mxu0
      %v672 = vadd.f32 %v397, %v671
      %v673 = vpop.f32.mrb[0].mxu0
      %v674 = vadd.f32 %v401, %v673
      %v675 = vpop.f32.mrb[0].mxu0
      %v676 = vadd.f32 %v397, %v675
      %v677 = vpop.f32.mrb[0].mxu0
      %v678 = vadd.f32 %v401, %v677
      %679 = vmatprep.mubr.bf16.mxu0 0
      %680 = vmatmul.mubr.bf16.gmra.mrb[0].mxu0 %v355
      %v681 = vpop.f32.mrb[0].mxu0
      %v682 = vadd.f32 %v397, %v681
      %v683 = vpop.f32.mrb[0].mxu0
      %v684 = vadd.f32 %v401, %v683
      %v685 = vpop.f32.mrb[0].mxu0
      %v686 = vadd.f32 %v397, %v685
      %v687 = vpop.f32.mrb[0].mxu0
      %v688 = vadd.f32 %v401, %v687
      %689 = vmatprep.mubr.bf16.mxu0 0
      %690 = vmatmul.mubr.bf16.gmra.mrb[0].mxu0 %v356
      %v691 = vpop.f32.mrb[0].mxu0
      %v692 = vadd.f32 %v397, %v691
      %v693 = vpop.f32.mrb[0].mxu0
      %v694 = vadd.f32 %v401, %v693
      %v695 = vpop.f32.mrb[0].mxu0
      %v696 = vadd.f32 %v397, %v695
      %v697 = vpop.f32.mrb[0].mxu0
      %v698 = vadd.f32 %v401, %v697
      %699 = vmatprep.mubr.bf16.mxu0 0
      %700 = vmatmul.mubr.bf16.gmra.mrb[0].mxu0 %v357
      %v701 = vpop.f32.mrb[0].mxu0
      %v702 = vadd.f32 %v397, %v701
      %v703 = vpop.f32.mrb[0].mxu0
      %v704 = vadd.f32 %v401, %v703
      %v705 = vpop.f32.mrb[0].mxu0
      %v706 = vadd.f32 %v397, %v705
      %v707 = vpop.f32.mrb[0].mxu0
      %v708 = vadd.f32 %v401, %v707
      %709 = vmatprep.mubr.bf16.mxu0 0
      %710 = vmatmul.mubr.bf16.gmra.mrb[0].mxu0 %v358
      %v711 = vpop.f32.mrb[0].mxu0
      %v712 = vadd.f32 %v397, %v711
      %v713 = vpop.f32.mrb[0].mxu0
      %v714 = vadd.f32 %v401, %v713
      %v715 = vpop.f32.mrb[0].mxu0
      %v716 = vadd.f32 %v397, %v715
      %v717 = vpop.f32.mrb[0].mxu0
      %v718 = vadd.f32 %v401, %v717
      %719 = vmatprep.mubr.bf16.mxu0 0
      %720 = vmatmul.mubr.bf16.gmra.mrb[0].mxu0 %v359
      %v721 = vpop.f32.mrb[0].mxu0
      %v722 = vadd.f32 %v397, %v721
      %v723 = vpop.f32.mrb[0].mxu0
      %v724 = vadd.f32 %v401, %v723
      %v725 = vpop.f32.mrb[0].mxu0
      %v726 = vadd.f32 %v397, %v725
      %v727 = vpop.f32.mrb[0].mxu0
      %v728 = vadd.f32 %v401, %v727
      %729 = vdwg.mxu0
      %730 = vmatprep.subr.bf16.mxu0 0
      %731 = vmatpush1.bf16.msra.mxu0 %v491
      %732 = vmatprep.subr.bf16.mxu0 0
      %733 = vmatpush1.bf16.msra.mxu0 %v494
      %734 = vmatprep.subr.bf16.mxu0 0
      %735 = vmatpush1.bf16.msra.mxu0 %v497
      %736 = vmatprep.subr.bf16.mxu0 0
      %737 = vmatpush1.bf16.msra.mxu0 %v500
      %738 = vmatprep.subr.bf16.mxu0 0
      %739 = vmatpush1.bf16.msra.mxu0 %v503
      %740 = vmatprep.subr.bf16.mxu0 0
      %741 = vmatpush1.bf16.msra.mxu0 %v506
      %742 = vmatprep.subr.bf16.mxu0 0
      %743 = vmatpush1.bf16.msra.mxu0 %v509
      %744 = vmatprep.subr.bf16.mxu0 0
      %745 = vmatpush1.bf16.msra.mxu0 %v512
      %746 = vmatprep.subr.bf16.mxu0 0
      %747 = vmatpush1.bf16.msra.mxu0 0
      %748 = vmatprep.subr.bf16.mxu0 0
      %749 = vmatpush1.bf16.msra.mxu0 0
      %750 = vmatprep.subr.bf16.mxu0 0
      %751 = vmatpush1.bf16.msra.mxu0 0
      %752 = vmatprep.subr.bf16.mxu0 0
      %753 = vmatpush1.bf16.msra.mxu0 0
      %754 = vmatprep.subr.bf16.mxu0 0
      %755 = vmatpush1.bf16.msra.mxu0 0
      %756 = vmatprep.subr.bf16.mxu0 0
      %757 = vmatpush1.bf16.msra.mxu0 0
      %758 = vmatprep.subr.bf16.mxu0 0
      %759 = vmatpush1.bf16.msra.mxu0 0
      %760 = vmatprep.subr.bf16.mxu0 0
      %761 = vmatpush1.bf16.msra.mxu0 0
      %762 = vmatprep.mubr.bf16.mxu0 0
      %763 = vmatmul.mubr.bf16.gmra.mrb[0].mxu0 %v344
      %v764 = vpop.f32.mrb[0].mxu0
      %v765 = vadd.f32 %v405, %v764
      %v766 = vpop.f32.mrb[0].mxu0
      %v767 = vpop.f32.mrb[0].mxu0
      %v768 = vadd.f32 %v405, %v767
      %v769 = vpop.f32.mrb[0].mxu0
      %770 = vmatprep.mubr.bf16.mxu0 0
      %771 = vmatmul.mubr.bf16.gmra.mrb[0].mxu0 %v345
      %v772 = vpop.f32.mrb[0].mxu0
      %v773 = vadd.f32 %v405, %v772
      %v774 = vpop.f32.mrb[0].mxu0
      %v775 = vpop.f32.mrb[0].mxu0
      %v776 = vadd.f32 %v405, %v775
      %v777 = vpop.f32.mrb[0].mxu0
      %778 = vmatprep.mubr.bf16.mxu0 0
      %779 = vmatmul.mubr.bf16.gmra.mrb[0].mxu0 %v346
      %v780 = vpop.f32.mrb[0].mxu0
      %v781 = vadd.f32 %v405, %v780
      %v782 = vpop.f32.mrb[0].mxu0
      %v783 = vpop.f32.mrb[0].mxu0
      %v784 = vadd.f32 %v405, %v783
      %v785 = vpop.f32.mrb[0].mxu0
      %786 = vmatprep.mubr.bf16.mxu0 0
      %787 = vmatmul.mubr.bf16.gmra.mrb[0].mxu0 %v347
      %v788 = vpop.f32.mrb[0].mxu0
      %v789 = vadd.f32 %v405, %v788
      %v790 = vpop.f32.mrb[0].mxu0
      %v791 = vpop.f32.mrb[0].mxu0
      %v792 = vadd.f32 %v405, %v791
      %v793 = vpop.f32.mrb[0].mxu0
      %794 = vmatprep.mubr.bf16.mxu0 0
      %795 = vmatmul.mubr.bf16.gmra.mrb[0].mxu0 %v348
      %v796 = vpop.f32.mrb[0].mxu0
      %v797 = vadd.f32 %v405, %v796
      %v798 = vpop.f32.mrb[0].mxu0
      %v799 = vpop.f32.mrb[0].mxu0
      %v800 = vadd.f32 %v405, %v799
      %v801 = vpop.f32.mrb[0].mxu0
      %802 = vmatprep.mubr.bf16.mxu0 0
      %803 = vmatmul.mubr.bf16.gmra.mrb[0].mxu0 %v349
      %v804 = vpop.f32.mrb[0].mxu0
      %v805 = vadd.f32 %v405, %v804
      %v806 = vpop.f32.mrb[0].mxu0
      %v807 = vpop.f32.mrb[0].mxu0
      %v808 = vadd.f32 %v405, %v807
      %v809 = vpop.f32.mrb[0].mxu0
      %810 = vmatprep.mubr.bf16.mxu0 0
      %811 = vmatmul.mubr.bf16.gmra.mrb[0].mxu0 %v350
      %v812 = vpop.f32.mrb[0].mxu0
      %v813 = vadd.f32 %v405, %v812
      %v814 = vpop.f32.mrb[0].mxu0
      %v815 = vpop.f32.mrb[0].mxu0
      %v816 = vadd.f32 %v405, %v815
      %v817 = vpop.f32.mrb[0].mxu0
      %818 = vmatprep.mubr.bf16.mxu0 0
      %819 = vmatmul.mubr.bf16.gmra.mrb[0].mxu0 %v351
      %v820 = vpop.f32.mrb[0].mxu0
      %v821 = vadd.f32 %v405, %v820
      %v822 = vpop.f32.mrb[0].mxu0
      %v823 = vpop.f32.mrb[0].mxu0
      %v824 = vadd.f32 %v405, %v823
      %v825 = vpop.f32.mrb[0].mxu0
      %826 = vmatprep.mubr.bf16.mxu0 0
      %827 = vmatmul.mubr.bf16.gmra.mrb[0].mxu0 %v352
      %v828 = vpop.f32.mrb[0].mxu0
      %v829 = vadd.f32 %v405, %v828
      %v830 = vpop.f32.mrb[0].mxu0
      %v831 = vpop.f32.mrb[0].mxu0
      %v832 = vadd.f32 %v405, %v831
      %v833 = vpop.f32.mrb[0].mxu0
      %834 = vmatprep.mubr.bf16.mxu0 0
      %835 = vmatmul.mubr.bf16.gmra.mrb[0].mxu0 %v353
      %v836 = vpop.f32.mrb[0].mxu0
      %v837 = vadd.f32 %v405, %v836
      %v838 = vpop.f32.mrb[0].mxu0
      %v839 = vpop.f32.mrb[0].mxu0
      %v840 = vadd.f32 %v405, %v839
      %v841 = vpop.f32.mrb[0].mxu0
      %842 = vmatprep.mubr.bf16.mxu0 0
      %843 = vmatmul.mubr.bf16.gmra.mrb[0].mxu0 %v354
      %v844 = vpop.f32.mrb[0].mxu0
      %v845 = vadd.f32 %v405, %v844
      %v846 = vpop.f32.mrb[0].mxu0
      %v847 = vpop.f32.mrb[0].mxu0
      %v848 = vadd.f32 %v405, %v847
      %v849 = vpop.f32.mrb[0].mxu0
      %850 = vmatprep.mubr.bf16.mxu0 0
      %851 = vmatmul.mubr.bf16.gmra.mrb[0].mxu0 %v355
      %v852 = vpop.f32.mrb[0].mxu0
      %v853 = vadd.f32 %v405, %v852
      %v854 = vpop.f32.mrb[0].mxu0
      %v855 = vpop.f32.mrb[0].mxu0
      %v856 = vadd.f32 %v405, %v855
      %v857 = vpop.f32.mrb[0].mxu0
      %858 = vmatprep.mubr.bf16.mxu0 0
      %859 = vmatmul.mubr.bf16.gmra.mrb[0].mxu0 %v356
      %v860 = vpop.f32.mrb[0].mxu0
      %v861 = vadd.f32 %v405, %v860
      %v862 = vpop.f32.mrb[0].mxu0
      %v863 = vpop.f32.mrb[0].mxu0
      %v864 = vadd.f32 %v405, %v863
      %v865 = vpop.f32.mrb[0].mxu0
      %866 = vmatprep.mubr.bf16.mxu0 0
      %867 = vmatmul.mubr.bf16.gmra.mrb[0].mxu0 %v357
      %v868 = vpop.f32.mrb[0].mxu0
      %v869 = vadd.f32 %v405, %v868
      %v870 = vpop.f32.mrb[0].mxu0
      %v871 = vpop.f32.mrb[0].mxu0
      %v872 = vadd.f32 %v405, %v871
      %v873 = vpop.f32.mrb[0].mxu0
      %874 = vmatprep.mubr.bf16.mxu0 0
      %875 = vmatmul.mubr.bf16.gmra.mrb[0].mxu0 %v358
      %v876 = vpop.f32.mrb[0].mxu0
      %v877 = vadd.f32 %v405, %v876
      %v878 = vpop.f32.mrb[0].mxu0
      %v879 = vpop.f32.mrb[0].mxu0
      %v880 = vadd.f32 %v405, %v879
      %v881 = vpop.f32.mrb[0].mxu0
      %882 = vmatprep.mubr.bf16.mxu0 0
      %883 = vmatmul.mubr.bf16.gmra.mrb[0].mxu0 %v359
      %v884 = vpop.f32.mrb[0].mxu0
      %v885 = vadd.f32 %v405, %v884
      %v886 = vpop.f32.mrb[0].mxu0
      %v887 = vpop.f32.mrb[0].mxu0
      %v888 = vadd.f32 %v405, %v887
      %v889 = vpop.f32.mrb[0].mxu0
      %890 = vdwg.mxu0
      %v891 = vpack.c.bf16 %v576, %v572
      %v892 = vpack.c.bf16 %v586, %v582
      %v893 = vpack.c.bf16 %v596, %v592
      %v894 = vpack.c.bf16 %v606, %v602
      %v895 = vpack.c.bf16 %v616, %v612
      %v896 = vpack.c.bf16 %v626, %v622
      %v897 = vpack.c.bf16 %v636, %v632
      %v898 = vpack.c.bf16 %v646, %v642
      %v899 = vpack.c.bf16 %v656, %v652
      %v900 = vpack.c.bf16 %v666, %v662
      %v901 = vpack.c.bf16 %v676, %v672
      %v902 = vpack.c.bf16 %v686, %v682
      %v903 = vpack.c.bf16 %v696, %v692
      %v904 = vpack.c.bf16 %v706, %v702
      %v905 = vpack.c.bf16 %v716, %v712
      %v906 = vpack.c.bf16 %v726, %v722
      %v923 = vunpack.c.l.b16 %v891
      %v924 = vunpack.c.h.b16 %v891
      %v925 = vunpack.c.l.b16 %v892
      %v926 = vunpack.c.h.b16 %v892
      %v927 = vunpack.c.l.b16 %v893
      %v928 = vunpack.c.h.b16 %v893
      %v929 = vunpack.c.l.b16 %v894
      %v930 = vunpack.c.h.b16 %v894
      %v931 = vunpack.c.l.b16 %v895
      %v932 = vunpack.c.h.b16 %v895
      %v933 = vunpack.c.l.b16 %v896
      %v934 = vunpack.c.h.b16 %v896
      %v935 = vunpack.c.l.b16 %v897
      %v936 = vunpack.c.h.b16 %v897
      %v937 = vunpack.c.l.b16 %v898
      %v938 = vunpack.c.h.b16 %v898
      %v939 = vunpack.c.l.b16 %v899
      %v940 = vunpack.c.h.b16 %v899
      %v941 = vunpack.c.l.b16 %v900
      %v942 = vunpack.c.h.b16 %v900
      %v943 = vunpack.c.l.b16 %v901
      %v944 = vunpack.c.h.b16 %v901
      %v945 = vunpack.c.l.b16 %v902
      %v946 = vunpack.c.h.b16 %v902
      %v947 = vunpack.c.l.b16 %v903
      %v948 = vunpack.c.h.b16 %v903
      %v949 = vunpack.c.l.b16 %v904
      %v950 = vunpack.c.h.b16 %v904
      %v951 = vunpack.c.l.b16 %v905
      %v952 = vunpack.c.h.b16 %v905
      %v953 = vunpack.c.l.b16 %v906
      %v954 = vunpack.c.h.b16 %v906
      %v955 = vpack.c.b16 %v923, %v923
      %v956 = vpack.c.b16 %v924, %v924
      %v957 = vpack.c.b16 %v925, %v925
      %v958 = vpack.c.b16 %v926, %v926
      %v959 = vpack.c.b16 %v927, %v927
      %v960 = vpack.c.b16 %v928, %v928
      %v961 = vpack.c.b16 %v929, %v929
      %v962 = vpack.c.b16 %v930, %v930
      %v963 = vpack.c.b16 %v931, %v931
      %v964 = vpack.c.b16 %v932, %v932
      %v965 = vpack.c.b16 %v933, %v933
      %v966 = vpack.c.b16 %v934, %v934
      %v967 = vpack.c.b16 %v935, %v935
      %v968 = vpack.c.b16 %v936, %v936
      %v969 = vpack.c.b16 %v937, %v937
      %v970 = vpack.c.b16 %v938, %v938
      %v971 = vpack.c.b16 %v939, %v939
      %v972 = vpack.c.b16 %v940, %v940
      %v973 = vpack.c.b16 %v941, %v941
      %v974 = vpack.c.b16 %v942, %v942
      %v975 = vpack.c.b16 %v943, %v943
      %v976 = vpack.c.b16 %v944, %v944
      %v977 = vpack.c.b16 %v945, %v945
      %v978 = vpack.c.b16 %v946, %v946
      %v979 = vpack.c.b16 %v947, %v947
      %v980 = vpack.c.b16 %v948, %v948
      %v981 = vpack.c.b16 %v949, %v949
      %v982 = vpack.c.b16 %v950, %v950
      %v983 = vpack.c.b16 %v951, %v951
      %v984 = vpack.c.b16 %v952, %v952
      %v985 = vpack.c.b16 %v953, %v953
      %v986 = vpack.c.b16 %v954, %v954
      %1019 = vst [vmem:[%s289] sm:$0xf] %v955
      %1020 = vst [vmem:[%s289 + $0x4] sm:$0xf] %v956
      %1021 = vst [vmem:[%s289 + $0x8] sm:$0xf] %v957
      %1022 = vst [vmem:[%s289 + $0xc] sm:$0xf] %v958
      %1023 = vst [vmem:[%s289 + $0x10] sm:$0xf] %v959
      %1024 = vst [vmem:[%s289 + $0x14] sm:$0xf] %v960
      %1025 = vst [vmem:[%s289 + $0x18] sm:$0xf] %v961
      %1026 = vst [vmem:[%s289 + $0x1c] sm:$0xf] %v962
      %1027 = vst [vmem:[%s289 + $0x20] sm:$0xf] %v963
      %1028 = vst [vmem:[%s289 + $0x24] sm:$0xf] %v964
      %1029 = vst [vmem:[%s289 + $0x28] sm:$0xf] %v965
      %1030 = vst [vmem:[%s289 + $0x2c] sm:$0xf] %v966
      %1031 = vst [vmem:[%s289 + $0x30] sm:$0xf] %v967
      %1032 = vst [vmem:[%s289 + $0x34] sm:$0xf] %v968
      %1033 = vst [vmem:[%s289 + $0x38] sm:$0xf] %v969
      %1034 = vst [vmem:[%s289 + $0x3c] sm:$0xf] %v970
      %1035 = vst [vmem:[%s289 + $0x40] sm:$0xf] %v971
      %1036 = vst [vmem:[%s289 + $0x44] sm:$0xf] %v972
      %1037 = vst [vmem:[%s289 + $0x48] sm:$0xf] %v973
      %1038 = vst [vmem:[%s289 + $0x4c] sm:$0xf] %v974
      %1039 = vst [vmem:[%s289 + $0x50] sm:$0xf] %v975
      %1040 = vst [vmem:[%s289 + $0x54] sm:$0xf] %v976
      %1041 = vst [vmem:[%s289 + $0x58] sm:$0xf] %v977
      %1042 = vst [vmem:[%s289 + $0x5c] sm:$0xf] %v978
      %1043 = vst [vmem:[%s289 + $0x60] sm:$0xf] %v979
      %1044 = vst [vmem:[%s289 + $0x64] sm:$0xf] %v980
      %1045 = vst [vmem:[%s289 + $0x68] sm:$0xf] %v981
      %1046 = vst [vmem:[%s289 + $0x6c] sm:$0xf] %v982
      %1047 = vst [vmem:[%s289 + $0x70] sm:$0xf] %v983
      %1048 = vst [vmem:[%s289 + $0x74] sm:$0xf] %v984
      %1049 = vst [vmem:[%s289 + $0x78] sm:$0xf] %v985
      %1050 = vst [vmem:[%s289 + $0x7c] sm:$0xf] %v986
      %v1051 = vpack.c.bf16 %v578, %v574
      %v1052 = vpack.c.bf16 %v588, %v584
      %v1053 = vpack.c.bf16 %v598, %v594
      %v1054 = vpack.c.bf16 %v608, %v604
      %v1055 = vpack.c.bf16 %v618, %v614
      %v1056 = vpack.c.bf16 %v628, %v624
      %v1057 = vpack.c.bf16 %v638, %v634
      %v1058 = vpack.c.bf16 %v648, %v644
      %v1059 = vpack.c.bf16 %v658, %v654
      %v1060 = vpack.c.bf16 %v668, %v664
      %v1061 = vpack.c.bf16 %v678, %v674
      %v1062 = vpack.c.bf16 %v688, %v684
      %v1063 = vpack.c.bf16 %v698, %v694
      %v1064 = vpack.c.bf16 %v708, %v704
      %v1065 = vpack.c.bf16 %v718, %v714
      %v1066 = vpack.c.bf16 %v728, %v724
      %v1083 = vunpack.c.l.b16 %v1051
      %v1084 = vunpack.c.h.b16 %v1051
      %v1085 = vunpack.c.l.b16 %v1052
      %v1086 = vunpack.c.h.b16 %v1052
      %v1087 = vunpack.c.l.b16 %v1053
      %v1088 = vunpack.c.h.b16 %v1053
      %v1089 = vunpack.c.l.b16 %v1054
      %v1090 = vunpack.c.h.b16 %v1054
      %v1091 = vunpack.c.l.b16 %v1055
      %v1092 = vunpack.c.h.b16 %v1055
      %v1093 = vunpack.c.l.b16 %v1056
      %v1094 = vunpack.c.h.b16 %v1056
      %v1095 = vunpack.c.l.b16 %v1057
      %v1096 = vunpack.c.h.b16 %v1057
      %v1097 = vunpack.c.l.b16 %v1058
      %v1098 = vunpack.c.h.b16 %v1058
      %v1099 = vunpack.c.l.b16 %v1059
      %v1100 = vunpack.c.h.b16 %v1059
      %v1101 = vunpack.c.l.b16 %v1060
      %v1102 = vunpack.c.h.b16 %v1060
      %v1103 = vunpack.c.l.b16 %v1061
      %v1104 = vunpack.c.h.b16 %v1061
      %v1105 = vunpack.c.l.b16 %v1062
      %v1106 = vunpack.c.h.b16 %v1062
      %v1107 = vunpack.c.l.b16 %v1063
      %v1108 = vunpack.c.h.b16 %v1063
      %v1109 = vunpack.c.l.b16 %v1064
      %v1110 = vunpack.c.h.b16 %v1064
      %v1111 = vunpack.c.l.b16 %v1065
      %v1112 = vunpack.c.h.b16 %v1065
      %v1113 = vunpack.c.l.b16 %v1066
      %v1114 = vunpack.c.h.b16 %v1066
      %v1115 = vpack.c.b16 %v1083, %v1083
      %v1116 = vpack.c.b16 %v1084, %v1084
      %v1117 = vpack.c.b16 %v1085, %v1085
      %v1118 = vpack.c.b16 %v1086, %v1086
      %v1119 = vpack.c.b16 %v1087, %v1087
      %v1120 = vpack.c.b16 %v1088, %v1088
      %v1121 = vpack.c.b16 %v1089, %v1089
      %v1122 = vpack.c.b16 %v1090, %v1090
      %v1123 = vpack.c.b16 %v1091, %v1091
      %v1124 = vpack.c.b16 %v1092, %v1092
      %v1125 = vpack.c.b16 %v1093, %v1093
      %v1126 = vpack.c.b16 %v1094, %v1094
      %v1127 = vpack.c.b16 %v1095, %v1095
      %v1128 = vpack.c.b16 %v1096, %v1096
      %v1129 = vpack.c.b16 %v1097, %v1097
      %v1130 = vpack.c.b16 %v1098, %v1098
      %v1131 = vpack.c.b16 %v1099, %v1099
      %v1132 = vpack.c.b16 %v1100, %v1100
      %v1133 = vpack.c.b16 %v1101, %v1101
      %v1134 = vpack.c.b16 %v1102, %v1102
      %v1135 = vpack.c.b16 %v1103, %v1103
      %v1136 = vpack.c.b16 %v1104, %v1104
      %v1137 = vpack.c.b16 %v1105, %v1105
      %v1138 = vpack.c.b16 %v1106, %v1106
      %v1139 = vpack.c.b16 %v1107, %v1107
      %v1140 = vpack.c.b16 %v1108, %v1108
      %v1141 = vpack.c.b16 %v1109, %v1109
      %v1142 = vpack.c.b16 %v1110, %v1110
      %v1143 = vpack.c.b16 %v1111, %v1111
      %v1144 = vpack.c.b16 %v1112, %v1112
      %v1145 = vpack.c.b16 %v1113, %v1113
      %v1146 = vpack.c.b16 %v1114, %v1114
      %1179 = vst [vmem:[%s299] sm:$0xf] %v1115
      %1180 = vst [vmem:[%s299 + $0x4] sm:$0xf] %v1116
      %1181 = vst [vmem:[%s299 + $0x8] sm:$0xf] %v1117
      %1182 = vst [vmem:[%s299 + $0xc] sm:$0xf] %v1118
      %1183 = vst [vmem:[%s299 + $0x10] sm:$0xf] %v1119
      %1184 = vst [vmem:[%s299 + $0x14] sm:$0xf] %v1120
      %1185 = vst [vmem:[%s299 + $0x18] sm:$0xf] %v1121
      %1186 = vst [vmem:[%s299 + $0x1c] sm:$0xf] %v1122
      %1187 = vst [vmem:[%s299 + $0x20] sm:$0xf] %v1123
      %1188 = vst [vmem:[%s299 + $0x24] sm:$0xf] %v1124
      %1189 = vst [vmem:[%s299 + $0x28] sm:$0xf] %v1125
      %1190 = vst [vmem:[%s299 + $0x2c] sm:$0xf] %v1126
      %1191 = vst [vmem:[%s299 + $0x30] sm:$0xf] %v1127
      %1192 = vst [vmem:[%s299 + $0x34] sm:$0xf] %v1128
      %1193 = vst [vmem:[%s299 + $0x38] sm:$0xf] %v1129
      %1194 = vst [vmem:[%s299 + $0x3c] sm:$0xf] %v1130
      %1195 = vst [vmem:[%s299 + $0x40] sm:$0xf] %v1131
      %1196 = vst [vmem:[%s299 + $0x44] sm:$0xf] %v1132
      %1197 = vst [vmem:[%s299 + $0x48] sm:$0xf] %v1133
      %1198 = vst [vmem:[%s299 + $0x4c] sm:$0xf] %v1134
      %1199 = vst [vmem:[%s299 + $0x50] sm:$0xf] %v1135
      %1200 = vst [vmem:[%s299 + $0x54] sm:$0xf] %v1136
      %1201 = vst [vmem:[%s299 + $0x58] sm:$0xf] %v1137
      %1202 = vst [vmem:[%s299 + $0x5c] sm:$0xf] %v1138
      %1203 = vst [vmem:[%s299 + $0x60] sm:$0xf] %v1139
      %1204 = vst [vmem:[%s299 + $0x64] sm:$0xf] %v1140
      %1205 = vst [vmem:[%s299 + $0x68] sm:$0xf] %v1141
      %1206 = vst [vmem:[%s299 + $0x6c] sm:$0xf] %v1142
      %1207 = vst [vmem:[%s299 + $0x70] sm:$0xf] %v1143
      %1208 = vst [vmem:[%s299 + $0x74] sm:$0xf] %v1144
      %1209 = vst [vmem:[%s299 + $0x78] sm:$0xf] %v1145
      %1210 = vst [vmem:[%s299 + $0x7c] sm:$0xf] %v1146
      %v1211 = vpack.c.bf16 %v768, %v765
      %v1212 = vpack.c.bf16 %v776, %v773
      %v1213 = vpack.c.bf16 %v784, %v781
      %v1214 = vpack.c.bf16 %v792, %v789
      %v1215 = vpack.c.bf16 %v800, %v797
      %v1216 = vpack.c.bf16 %v808, %v805
      %v1217 = vpack.c.bf16 %v816, %v813
      %v1218 = vpack.c.bf16 %v824, %v821
      %v1219 = vpack.c.bf16 %v832, %v829
      %v1220 = vpack.c.bf16 %v840, %v837
      %v1221 = vpack.c.bf16 %v848, %v845
      %v1222 = vpack.c.bf16 %v856, %v853
      %v1223 = vpack.c.bf16 %v864, %v861
      %v1224 = vpack.c.bf16 %v872, %v869
      %v1225 = vpack.c.bf16 %v880, %v877
      %v1226 = vpack.c.bf16 %v888, %v885
      %v1243 = vunpack.c.l.b16 %v1211
      %v1244 = vunpack.c.h.b16 %v1211
      %v1245 = vunpack.c.l.b16 %v1212
      %v1246 = vunpack.c.h.b16 %v1212
      %v1247 = vunpack.c.l.b16 %v1213
      %v1248 = vunpack.c.h.b16 %v1213
      %v1249 = vunpack.c.l.b16 %v1214
      %v1250 = vunpack.c.h.b16 %v1214
      %v1251 = vunpack.c.l.b16 %v1215
      %v1252 = vunpack.c.h.b16 %v1215
      %v1253 = vunpack.c.l.b16 %v1216
      %v1254 = vunpack.c.h.b16 %v1216
      %v1255 = vunpack.c.l.b16 %v1217
      %v1256 = vunpack.c.h.b16 %v1217
      %v1257 = vunpack.c.l.b16 %v1218
      %v1258 = vunpack.c.h.b16 %v1218
      %v1259 = vunpack.c.l.b16 %v1219
      %v1260 = vunpack.c.h.b16 %v1219
      %v1261 = vunpack.c.l.b16 %v1220
      %v1262 = vunpack.c.h.b16 %v1220
      %v1263 = vunpack.c.l.b16 %v1221
      %v1264 = vunpack.c.h.b16 %v1221
      %v1265 = vunpack.c.l.b16 %v1222
      %v1266 = vunpack.c.h.b16 %v1222
      %v1267 = vunpack.c.l.b16 %v1223
      %v1268 = vunpack.c.h.b16 %v1223
      %v1269 = vunpack.c.l.b16 %v1224
      %v1270 = vunpack.c.h.b16 %v1224
      %v1271 = vunpack.c.l.b16 %v1225
      %v1272 = vunpack.c.h.b16 %v1225
      %v1273 = vunpack.c.l.b16 %v1226
      %v1274 = vunpack.c.h.b16 %v1226
      %v1275 = vpack.c.b16 %v1243, %v1243
      %v1276 = vpack.c.b16 %v1244, %v1244
      %v1277 = vpack.c.b16 %v1245, %v1245
      %v1278 = vpack.c.b16 %v1246, %v1246
      %v1279 = vpack.c.b16 %v1247, %v1247
      %v1280 = vpack.c.b16 %v1248, %v1248
      %v1281 = vpack.c.b16 %v1249, %v1249
      %v1282 = vpack.c.b16 %v1250, %v1250
      %v1283 = vpack.c.b16 %v1251, %v1251
      %v1284 = vpack.c.b16 %v1252, %v1252
      %v1285 = vpack.c.b16 %v1253, %v1253
      %v1286 = vpack.c.b16 %v1254, %v1254
      %v1287 = vpack.c.b16 %v1255, %v1255
      %v1288 = vpack.c.b16 %v1256, %v1256
      %v1289 = vpack.c.b16 %v1257, %v1257
      %v1290 = vpack.c.b16 %v1258, %v1258
      %v1291 = vpack.c.b16 %v1259, %v1259
      %v1292 = vpack.c.b16 %v1260, %v1260
      %v1293 = vpack.c.b16 %v1261, %v1261
      %v1294 = vpack.c.b16 %v1262, %v1262
      %v1295 = vpack.c.b16 %v1263, %v1263
      %v1296 = vpack.c.b16 %v1264, %v1264
      %v1297 = vpack.c.b16 %v1265, %v1265
      %v1298 = vpack.c.b16 %v1266, %v1266
      %v1299 = vpack.c.b16 %v1267, %v1267
      %v1300 = vpack.c.b16 %v1268, %v1268
      %v1301 = vpack.c.b16 %v1269, %v1269
      %v1302 = vpack.c.b16 %v1270, %v1270
      %v1303 = vpack.c.b16 %v1271, %v1271
      %v1304 = vpack.c.b16 %v1272, %v1272
      %v1305 = vpack.c.b16 %v1273, %v1273
      %v1306 = vpack.c.b16 %v1274, %v1274
      %1339 = vst [vmem:[%s309] sm:$0xf] %v1275
      %1340 = vst [vmem:[%s309 + $0x4] sm:$0xf] %v1276
      %1341 = vst [vmem:[%s309 + $0x8] sm:$0xf] %v1277
      %1342 = vst [vmem:[%s309 + $0xc] sm:$0xf] %v1278
      %1343 = vst [vmem:[%s309 + $0x10] sm:$0xf] %v1279
      %1344 = vst [vmem:[%s309 + $0x14] sm:$0xf] %v1280
      %1345 = vst [vmem:[%s309 + $0x18] sm:$0xf] %v1281
      %1346 = vst [vmem:[%s309 + $0x1c] sm:$0xf] %v1282
      %1347 = vst [vmem:[%s309 + $0x20] sm:$0xf] %v1283
      %1348 = vst [vmem:[%s309 + $0x24] sm:$0xf] %v1284
      %1349 = vst [vmem:[%s309 + $0x28] sm:$0xf] %v1285
      %1350 = vst [vmem:[%s309 + $0x2c] sm:$0xf] %v1286
      %1351 = vst [vmem:[%s309 + $0x30] sm:$0xf] %v1287
      %1352 = vst [vmem:[%s309 + $0x34] sm:$0xf] %v1288
      %1353 = vst [vmem:[%s309 + $0x38] sm:$0xf] %v1289
      %1354 = vst [vmem:[%s309 + $0x3c] sm:$0xf] %v1290
      %1355 = vst [vmem:[%s309 + $0x40] sm:$0xf] %v1291
      %1356 = vst [vmem:[%s309 + $0x44] sm:$0xf] %v1292
      %1357 = vst [vmem:[%s309 + $0x48] sm:$0xf] %v1293
      %1358 = vst [vmem:[%s309 + $0x4c] sm:$0xf] %v1294
      %1359 = vst [vmem:[%s309 + $0x50] sm:$0xf] %v1295
      %1360 = vst [vmem:[%s309 + $0x54] sm:$0xf] %v1296
      %1361 = vst [vmem:[%s309 + $0x58] sm:$0xf] %v1297
      %1362 = vst [vmem:[%s309 + $0x5c] sm:$0xf] %v1298
      %1363 = vst [vmem:[%s309 + $0x60] sm:$0xf] %v1299
      %1364 = vst [vmem:[%s309 + $0x64] sm:$0xf] %v1300
      %1365 = vst [vmem:[%s309 + $0x68] sm:$0xf] %v1301
      %1366 = vst [vmem:[%s309 + $0x6c] sm:$0xf] %v1302
      %1367 = vst [vmem:[%s309 + $0x70] sm:$0xf] %v1303
      %1368 = vst [vmem:[%s309 + $0x74] sm:$0xf] %v1304
      %1369 = vst [vmem:[%s309 + $0x78] sm:$0xf] %v1305
      %1370 = vst [vmem:[%s309 + $0x7c] sm:$0xf] %v1306
      %s1371 = smul.u32 32, %s22
      %p1372 = scmp.lt.s32.totalorder %s21, 1
      %s1373 = scalar_select %p1372, %s21, 1
      %p1374 = scmp.lt.s32.totalorder %s1371, 31
      %s1375 = scalar_select %p1374, %s1371, 31
      %s1376 = smul.addr %s1373, 32
      %s1377 = sadd.s32 %s1375, %s1376
      %s1378 = smul.addr %s1377, 4
      %s1379 = scalar_lea.vmem %s3, %s1378
      %s1380 = smul.u32 32, %s22
      %p1381 = scmp.lt.s32.totalorder %s21, 1
      %s1382 = scalar_select %p1381, %s21, 1
      %p1383 = scmp.lt.s32.totalorder %s1380, 31
      %s1384 = scalar_select %p1383, %s1380, 31
      %s1385 = smul.addr %s1382, 32
      %s1386 = sadd.s32 %s1384, %s1385
      %s1387 = smul.addr %s1386, 4
      %s1388 = scalar_lea.vmem %s4, %s1387
      %s1389 = smul.u32 32, %s22
      %p1390 = scmp.lt.s32.totalorder %s21, 1
      %s1391 = scalar_select %p1390, %s21, 1
      %p1392 = scmp.lt.s32.totalorder %s1389, 31
      %s1393 = scalar_select %p1392, %s1389, 31
      %s1394 = smul.addr %s1391, 32
      %s1395 = sadd.s32 %s1393, %s1394
      %s1396 = smul.addr %s1395, 4
      %s1397 = scalar_lea.vmem %s5, %s1396
      // Predicated region
      $region33: #{self_attention_forward.2} parent=31 // pred_check
        %p1398 = pneg %p119
      $region34: #{self_attention_forward.2} parent=31 // pred_check_branch
        %1400 = sbr.rel (%p1398) target = $region36
      $region35: #{self_attention_forward.2} parent=31 // pred_region
        %s1401 = smul.u32 32, %s22
      $region36: #{self_attention_forward.2} parent=31 // pred_fallthru
        _
      // Predicated region
      $region37: #{self_attention_forward.2} parent=31 // pred_check
        %p1402 = pneg %p147
      $region38: #{self_attention_forward.2} parent=31 // pred_check_branch
        %1404 = sbr.rel (%p1402) target = $region40
      $region39: #{self_attention_forward.2} parent=31 // pred_region
        %s1405 = smul.u32 32, %s22
      $region40: #{self_attention_forward.2} parent=31 // pred_fallthru
        _
      // Predicated region
      $region41: #{self_attention_forward.2} parent=31 // pred_check
        %p1406 = pneg %p175
      $region42: #{self_attention_forward.2} parent=31 // pred_check_branch
        %1408 = sbr.rel (%p1406) target = $region44
      $region43: #{self_attention_forward.2} parent=31 // pred_region
        %s1409 = smul.u32 32, %s22
      $region44: #{self_attention_forward.2} parent=31 // pred_fallthru
        _
    $region32: #{self_attention_forward.2} parent=5 // pred_fallthru
      _
    %p1410 = scmp.le.s32.totalorder 2, %s12
    // Predicated region
    $region45: #{self_attention_forward.2} parent=5 // pred_check
      %p1411 = pneg %p1410
    $region46: #{self_attention_forward.2} parent=5 // pred_check_branch
      %1413 = sbr.rel (%p1411) target = $region48
    $region47: #{self_attention_forward.2} parent=5 // pred_region
      %s1414 = ssub.s32 %s12, 2
      // Predicated region
      $region49: #{self_attention_forward.2} parent=47 // pred_check
        %p1415 = pneg %p125
      $region50: #{self_attention_forward.2} parent=47 // pred_check_branch
        %1417 = sbr.rel (%p1415) target = $region52
      $region51: #{self_attention_forward.2} parent=47 // pred_region
        %s1418 = smul.u32 32, %s24
        %p1419 = scmp.lt.s32.totalorder %s23, 1
        %s1420 = scalar_select %p1419, %s23, 1
        %p1421 = scmp.lt.s32.totalorder %s1418, 31
        %s1422 = scalar_select %p1421, %s1418, 31
        %s1423 = smul.addr %s1420, 32
        %s1424 = sadd.s32 %s1422, %s1423
        %s1425 = smul.addr %s1424, 4
        %s1426 = scalar_lea.vmem %s3, %s1425
      $region52: #{self_attention_forward.2} parent=47 // pred_fallthru
        _
      // Predicated region
      $region53: #{self_attention_forward.2} parent=47 // pred_check
        %p1427 = pneg %p153
      $region54: #{self_attention_forward.2} parent=47 // pred_check_branch
        %1429 = sbr.rel (%p1427) target = $region56
      $region55: #{self_attention_forward.2} parent=47 // pred_region
        %s1430 = smul.u32 32, %s24
        %p1431 = scmp.lt.s32.totalorder %s23, 1
        %s1432 = scalar_select %p1431, %s23, 1
        %p1433 = scmp.lt.s32.totalorder %s1430, 31
        %s1434 = scalar_select %p1433, %s1430, 31
        %s1435 = smul.addr %s1432, 32
        %s1436 = sadd.s32 %s1434, %s1435
        %s1437 = smul.addr %s1436, 4
        %s1438 = scalar_lea.vmem %s4, %s1437
      $region56: #{self_attention_forward.2} parent=47 // pred_fallthru
        _
      // Predicated region
      $region57: #{self_attention_forward.2} parent=47 // pred_check
        %p1439 = pneg %p181
      $region58: #{self_attention_forward.2} parent=47 // pred_check_branch
        %1441 = sbr.rel (%p1439) target = $region60
      $region59: #{self_attention_forward.2} parent=47 // pred_region
        %s1442 = smul.u32 32, %s24
        %p1443 = scmp.lt.s32.totalorder %s23, 1
        %s1444 = scalar_select %p1443, %s23, 1
        %p1445 = scmp.lt.s32.totalorder %s1442, 31
        %s1446 = scalar_select %p1445, %s1442, 31
        %s1447 = smul.addr %s1444, 32
        %s1448 = sadd.s32 %s1446, %s1447
        %s1449 = smul.addr %s1448, 4
        %s1450 = scalar_lea.vmem %s5, %s1449
      $region60: #{self_attention_forward.2} parent=47 // pred_fallthru
        _
    $region48: #{self_attention_forward.2} parent=5 // pred_fallthru
      _
  $region6: #{self_attention_forward.2} parent=0 // loop_footer
    %s16 = sadd.s32 1, %s12
  $region7: #{self_attention_forward.2} parent=0 // loop_footer_branch
    %11 = sbr.rel target = $region3
  $region8: #{self_attention_forward.2} parent=0 // loop_exit
    _

// kernel: self_attention_forward.3
$region0: #{self_attention_forward.3}
  #allocation0 [shape = 'u32[]', space=smem, size = 0x4, offset = 0x4, fixed_abs, tag = 'smem constant byte address 0x4 - core index']
  #allocation1 [shape = 'u32[144,128]{1,0:T(1,128)}', space=vmem, size = 0x12000, scoped, tag = 'internal scratch']
  #allocation2 [shape = 'f32[256,1]{1,0:T(8,128)}', space=vmem, size = 0x20000, scoped, tag = 'scratch operand']
  #allocation3 [shape = 'f32[256,1]{1,0:T(8,128)}', space=vmem, size = 0x20000, scoped, tag = 'scratch operand']
  #allocation4 [shape = 'f32[256,128]{1,0:T(8,128)}', space=vmem, size = 0x20000, scoped, tag = 'scratch operand']
  #allocation5 [shape = 'f32[1]{0:T(128)S(6)}', space=smem, size = 0x200, scoped, tag = 'scoped memory for self_attention_forward.3']
  %s0 = inlined_call_operand.vmem [shape: bf16[2,256,128], index: 0, kind: input, shape index: {}]
  %s1 = inlined_call_operand.vmem [shape: bf16[2,256,128], index: 1, kind: input, shape index: {}]
  %s2 = inlined_call_operand.vmem [shape: bf16[2,256,128], index: 2, kind: input, shape index: {}]
  %s3 = inlined_call_operand.vmem [shape: f32[2,256,128], index: 3, kind: input, shape index: {}]
  %s4 = inlined_call_operand.vmem [shape: bf16[128,128], index: 4, kind: input, shape index: {}]
  %s5 = inlined_call_operand.vmem [shape: f32[1,128], index: 5, kind: input, shape index: {}]
  %s6 = inlined_call_operand.<no memory space> [shape: f32[1], index: 6, kind: input, shape index: {}]
  %s7 = inlined_call_operand.hbm [shape: f32[2,256,128], index: 7, kind: output, shape index: {}]
  %s8 = sld [smem:[#allocation0]]
  $region69: #{self_attention_forward.3} parent=0
    _
  %s10 = ssub.s32 1, %s8
  %s11 = scalar_select 0, %s10, %s8
  %12 = sst [smem:[#allocation5]] %s6
  $region1: #{self_attention_forward.3} parent=0
    #allocation6 [shape = 'u8[262144]{0}', space=vmem, size = 0x40000, scoped, tag = 'output window, operand 0']
    #allocation7 [shape = 's32[2]{0}', space=sflag, size = 0x8, scoped, tag = 'scoped memory for self_attention_forward.3']
    %13 = vsyncpa [#allocation7], 0
    %s14 = scalar_lea.sflag [#allocation7], 1
    %15 = vsyncpa %s14, 0
    loop: start=0, step=1, limit=4
    $region2: #{self_attention_forward.3} parent=1 // loop_pre_header
      _
    $region3: #{self_attention_forward.3} parent=1 // loop_header
      %s17 = sphi 0, %s21
      %p18 = scmp.ge.s32.totalorder %s17, 4
      %s24 = sphi 0, %s43
      %s25 = sphi 0, %s39
      %s26 = sphi 0, %s35
      %s27 = sphi 0, %s24
      %s28 = sphi 0, %s25
      %s29 = sphi 0, %s26
      %s30 = sphi 0, %s27
      %s31 = sphi 0, %s28
      %s32 = sphi 0, %s29
      %s48 = sphi 0, %s50
      %s51 = sphi 0, %s48
      %s52 = sphi 0, %s51
      %s68 = sphi 0, %s52
      %s76 = sphi 0, %s78
      %s79 = sphi 0, %s76
      %s80 = sphi 0, %s79
      %s96 = sphi 0, %s80
      %s104 = sphi 0, %s106
      %s107 = sphi 0, %s104
      %s108 = sphi 0, %s107
      %s124 = sphi 0, %s108
      %s132 = sphi 0, %s134
      %s135 = sphi 0, %s132
      %s136 = sphi 0, %s135
      %s152 = sphi 0, %s136
      %s156 = sphi 0, %s156
      %s158 = sphi 0, %s156
      %s159 = sphi 0, %s158
      %s173 = sphi 0, %s159
      %s177 = sphi 0, %s177
      %s179 = sphi 0, %s177
      %s180 = sphi 0, %s179
      %s194 = sphi 0, %s180
      %s198 = sphi 0, %s198
      %s200 = sphi 0, %s198
      %s201 = sphi 0, %s200
      %s215 = sphi 0, %s201
      %s223 = sphi 0, %s225
      %s226 = sphi 0, %s223
      %s227 = sphi 0, %s226
      %s243 = sphi 0, %s227
    $region4: #{self_attention_forward.3} parent=1 // loop_header_branch
      %20 = sbr.rel (%p18) target = $region8
    $region5: #{self_attention_forward.3} parent=1 // loop_body
      %s22 = ssub.s32 %s17, 1
      %s23 = ssub.s32 %s17, 2
      %s33 = sadd.s32 1, %s26
      %p34 = scmp.ge.s32.totalorder %s33, 1
      %s35 = scalar_select %p34, 0, %s33
      %s36 = sadd.s32 1, %s25
      %s37 = scalar_select %p34, %s36, %s25
      %p38 = scmp.ge.s32.totalorder %s37, 1
      %s39 = scalar_select %p38, 0, %s37
      %s40 = sadd.s32 1, %s24
      %s41 = scalar_select %p38, %s40, %s24
      %p42 = scmp.ge.s32.totalorder %s41, 2
      %s43 = scalar_select %p42, 0, %s41
      %s44 = ssub.s32 %s24, %s43
      %s45 = ssub.s32 %s25, %s39
      %s46 = sor.u32 %s44, %s45
      %p47 = scmp.eq.s32.totalorder %s46, 0
      %s49 = sadd.s32 %s48, 1
      %s50 = scalar_select %p47, %s48, %s49
      %p53 = pneg %p47
      %p54 = scmp.eq.s32.totalorder %s17, 1
      %p55 = por %p53, %p54
      %p56 = scmp.ne.s32.totalorder %s48, %s51
      %p57 = scmp.eq.s32.totalorder %s17, 0
      %p58 = por %p56, %p57
      %p59 = scmp.ne.s32.totalorder %s48, %s51
      %p60 = scmp.eq.s32.totalorder %s22, 1
      %p61 = por %p59, %p60
      %p62 = scmp.ne.s32.totalorder %s51, %s52
      %p63 = scmp.eq.s32.totalorder %s22, 0
      %p64 = por %p62, %p63
      %p65 = scmp.ne.s32.totalorder %s51, %s52
      %p66 = scmp.eq.s32.totalorder %s23, 1
      %p67 = por %p65, %p66
      %p69 = scmp.ne.s32.totalorder %s52, %s68
      %p70 = scmp.eq.s32.totalorder %s23, 0
      %p71 = por %p69, %p70
      %s72 = ssub.s32 %s24, %s43
      %s73 = ssub.s32 %s26, %s35
      %s74 = sor.u32 %s72, %s73
      %p75 = scmp.eq.s32.totalorder %s74, 0
      %s77 = sadd.s32 %s76, 1
      %s78 = scalar_select %p75, %s76, %s77
      %p81 = pneg %p75
      %p82 = scmp.eq.s32.totalorder %s17, 1
      %p83 = por %p81, %p82
      %p84 = scmp.ne.s32.totalorder %s76, %s79
      %p85 = scmp.eq.s32.totalorder %s17, 0
      %p86 = por %p84, %p85
      %p87 = scmp.ne.s32.totalorder %s76, %s79
      %p88 = scmp.eq.s32.totalorder %s22, 1
      %p89 = por %p87, %p88
      %p90 = scmp.ne.s32.totalorder %s79, %s80
      %p91 = scmp.eq.s32.totalorder %s22, 0
      %p92 = por %p90, %p91
      %p93 = scmp.ne.s32.totalorder %s79, %s80
      %p94 = scmp.eq.s32.totalorder %s23, 1
      %p95 = por %p93, %p94
      %p97 = scmp.ne.s32.totalorder %s80, %s96
      %p98 = scmp.eq.s32.totalorder %s23, 0
      %p99 = por %p97, %p98
      %s100 = ssub.s32 %s24, %s43
      %s101 = ssub.s32 %s26, %s35
      %s102 = sor.u32 %s100, %s101
      %p103 = scmp.eq.s32.totalorder %s102, 0
      %s105 = sadd.s32 %s104, 1
      %s106 = scalar_select %p103, %s104, %s105
      %p109 = pneg %p103
      %p110 = scmp.eq.s32.totalorder %s17, 1
      %p111 = por %p109, %p110
      %p112 = scmp.ne.s32.totalorder %s104, %s107
      %p113 = scmp.eq.s32.totalorder %s17, 0
      %p114 = por %p112, %p113
      %p115 = scmp.ne.s32.totalorder %s104, %s107
      %p116 = scmp.eq.s32.totalorder %s22, 1
      %p117 = por %p115, %p116
      %p118 = scmp.ne.s32.totalorder %s107, %s108
      %p119 = scmp.eq.s32.totalorder %s22, 0
      %p120 = por %p118, %p119
      %p121 = scmp.ne.s32.totalorder %s107, %s108
      %p122 = scmp.eq.s32.totalorder %s23, 1
      %p123 = por %p121, %p122
      %p125 = scmp.ne.s32.totalorder %s108, %s124
      %p126 = scmp.eq.s32.totalorder %s23, 0
      %p127 = por %p125, %p126
      %s128 = ssub.s32 %s24, %s43
      %s129 = ssub.s32 %s25, %s39
      %s130 = sor.u32 %s128, %s129
      %p131 = scmp.eq.s32.totalorder %s130, 0
      %s133 = sadd.s32 %s132, 1
      %s134 = scalar_select %p131, %s132, %s133
      %p137 = pneg %p131
      %p138 = scmp.eq.s32.totalorder %s17, 1
      %p139 = por %p137, %p138
      %p140 = scmp.ne.s32.totalorder %s132, %s135
      %p141 = scmp.eq.s32.totalorder %s17, 0
      %p142 = por %p140, %p141
      %p143 = scmp.ne.s32.totalorder %s132, %s135
      %p144 = scmp.eq.s32.totalorder %s22, 1
      %p145 = por %p143, %p144
      %p146 = scmp.ne.s32.totalorder %s135, %s136
      %p147 = scmp.eq.s32.totalorder %s22, 0
      %p148 = por %p146, %p147
      %p149 = scmp.ne.s32.totalorder %s135, %s136
      %p150 = scmp.eq.s32.totalorder %s23, 1
      %p151 = por %p149, %p150
      %p153 = scmp.ne.s32.totalorder %s136, %s152
      %p154 = scmp.eq.s32.totalorder %s23, 0
      %p155 = por %p153, %p154
      %s157 = sadd.s32 %s156, 1
      %p160 = scmp.eq.s32.totalorder %s17, 1
      %p161 = scmp.ne.s32.totalorder %s156, %s158
      %p162 = scmp.eq.s32.totalorder %s17, 0
      %p163 = por %p161, %p162
      %p164 = scmp.ne.s32.totalorder %s156, %s158
      %p165 = scmp.eq.s32.totalorder %s22, 1
      %p166 = por %p164, %p165
      %p167 = scmp.ne.s32.totalorder %s158, %s159
      %p168 = scmp.eq.s32.totalorder %s22, 0
      %p169 = por %p167, %p168
      %p170 = scmp.ne.s32.totalorder %s158, %s159
      %p171 = scmp.eq.s32.totalorder %s23, 1
      %p172 = por %p170, %p171
      %p174 = scmp.ne.s32.totalorder %s159, %s173
      %p175 = scmp.eq.s32.totalorder %s23, 0
      %p176 = por %p174, %p175
      %s178 = sadd.s32 %s177, 1
      %p181 = scmp.eq.s32.totalorder %s17, 1
      %p182 = scmp.ne.s32.totalorder %s177, %s179
      %p183 = scmp.eq.s32.totalorder %s17, 0
      %p184 = por %p182, %p183
      %p185 = scmp.ne.s32.totalorder %s177, %s179
      %p186 = scmp.eq.s32.totalorder %s22, 1
      %p187 = por %p185, %p186
      %p188 = scmp.ne.s32.totalorder %s179, %s180
      %p189 = scmp.eq.s32.totalorder %s22, 0
      %p190 = por %p188, %p189
      %p191 = scmp.ne.s32.totalorder %s179, %s180
      %p192 = scmp.eq.s32.totalorder %s23, 1
      %p193 = por %p191, %p192
      %p195 = scmp.ne.s32.totalorder %s180, %s194
      %p196 = scmp.eq.s32.totalorder %s23, 0
      %p197 = por %p195, %p196
      %s199 = sadd.s32 %s198, 1
      %p202 = scmp.eq.s32.totalorder %s17, 1
      %p203 = scmp.ne.s32.totalorder %s198, %s200
      %p204 = scmp.eq.s32.totalorder %s17, 0
      %p205 = por %p203, %p204
      %p206 = scmp.ne.s32.totalorder %s198, %s200
      %p207 = scmp.eq.s32.totalorder %s22, 1
      %p208 = por %p206, %p207
      %p209 = scmp.ne.s32.totalorder %s200, %s201
      %p210 = scmp.eq.s32.totalorder %s22, 0
      %p211 = por %p209, %p210
      %p212 = scmp.ne.s32.totalorder %s200, %s201
      %p213 = scmp.eq.s32.totalorder %s23, 1
      %p214 = por %p212, %p213
      %p216 = scmp.ne.s32.totalorder %s201, %s215
      %p217 = scmp.eq.s32.totalorder %s23, 0
      %p218 = por %p216, %p217
      %s219 = ssub.s32 %s24, %s43
      %s220 = ssub.s32 %s25, %s39
      %s221 = sor.u32 %s219, %s220
      %p222 = scmp.eq.s32.totalorder %s221, 0
      %s224 = sadd.s32 %s223, 1
      %s225 = scalar_select %p222, %s223, %s224
      %p228 = pneg %p222
      %p229 = scmp.eq.s32.totalorder %s17, 1
      %p230 = por %p228, %p229
      %p231 = scmp.ne.s32.totalorder %s223, %s226
      %p232 = scmp.eq.s32.totalorder %s17, 0
      %p233 = por %p231, %p232
      %p234 = scmp.ne.s32.totalorder %s223, %s226
      %p235 = scmp.eq.s32.totalorder %s22, 1
      %p236 = por %p234, %p235
      %p237 = scmp.ne.s32.totalorder %s226, %s227
      %p238 = scmp.eq.s32.totalorder %s22, 0
      %p239 = por %p237, %p238
      %p240 = scmp.ne.s32.totalorder %s226, %s227
      %p241 = scmp.eq.s32.totalorder %s23, 1
      %p242 = por %p240, %p241
      %p244 = scmp.ne.s32.totalorder %s227, %s243
      %p245 = scmp.eq.s32.totalorder %s23, 0
      %p246 = por %p244, %p245
      %p247 = scmp.le.s32.totalorder 1, %s17
      %p248 = scmp.lt.s32.totalorder %s17, 3
      %p249 = pnand %p247, %p248
      %p250 = pneg %p249
      // Predicated region
      $region9: #{self_attention_forward.3} parent=5 // pred_check
        _
      $region10: #{self_attention_forward.3} parent=5 // pred_check_branch
        %252 = sbr.rel (%p249) target = $region12
      $region11: #{self_attention_forward.3} parent=5 // pred_region
        %s253 = ssub.s32 %s17, 1
        // Predicated region
        $region13: #{self_attention_forward.3} parent=11 // pred_check
          %p254 = pneg %p169
        $region14: #{self_attention_forward.3} parent=11 // pred_check_branch
          %256 = sbr.rel (%p254) target = $region16
        $region15: #{self_attention_forward.3} parent=11 // pred_region
          _
        $region16: #{self_attention_forward.3} parent=11 // pred_fallthru
          _
        // Predicated region
        $region17: #{self_attention_forward.3} parent=11 // pred_check
          %p257 = pneg %p190
        $region18: #{self_attention_forward.3} parent=11 // pred_check_branch
          %259 = sbr.rel (%p257) target = $region20
        $region19: #{self_attention_forward.3} parent=11 // pred_region
          _
        $region20: #{self_attention_forward.3} parent=11 // pred_fallthru
          _
        // Predicated region
        $region21: #{self_attention_forward.3} parent=11 // pred_check
          %p260 = pneg %p211
        $region22: #{self_attention_forward.3} parent=11 // pred_check_branch
          %262 = sbr.rel (%p260) target = $region24
        $region23: #{self_attention_forward.3} parent=11 // pred_region
          _
        $region24: #{self_attention_forward.3} parent=11 // pred_fallthru
          _
      $region12: #{self_attention_forward.3} parent=5 // pred_fallthru
        _
      %p263 = scmp.lt.s32.totalorder %s17, 2
      // Predicated region
      $region25: #{self_attention_forward.3} parent=5 // pred_check
        %p264 = pneg %p263
      $region26: #{self_attention_forward.3} parent=5 // pred_check_branch
        %266 = sbr.rel (%p264) target = $region28
      $region27: #{self_attention_forward.3} parent=5 // pred_region
        // Predicated region
        $region29: #{self_attention_forward.3} parent=27 // pred_check
          %p267 = pneg %p58
        $region30: #{self_attention_forward.3} parent=27 // pred_check_branch
          %269 = sbr.rel (%p267) target = $region32
        $region31: #{self_attention_forward.3} parent=27 // pred_region
          %s270 = smul.u32 32, %s25
          %p271 = scmp.lt.s32.totalorder %s24, 1
          %s272 = scalar_select %p271, %s24, 1
          %p273 = scmp.lt.s32.totalorder %s270, 31
          %s274 = scalar_select %p273, %s270, 31
          %s275 = smul.addr %s272, 32
          %s276 = sadd.s32 %s274, %s275
          %s277 = smul.addr %s276, 4
          %s278 = scalar_lea.vmem %s0, %s277
          %s279 = smul.u32 32, %s25
        $region32: #{self_attention_forward.3} parent=27 // pred_fallthru
          _
        // Predicated region
        $region33: #{self_attention_forward.3} parent=27 // pred_check
          %p280 = pneg %p86
        $region34: #{self_attention_forward.3} parent=27 // pred_check_branch
          %282 = sbr.rel (%p280) target = $region36
        $region35: #{self_attention_forward.3} parent=27 // pred_region
          %s283 = smul.u32 32, %s26
          %p284 = scmp.lt.s32.totalorder %s24, 1
          %s285 = scalar_select %p284, %s24, 1
          %p286 = scmp.lt.s32.totalorder %s283, 31
          %s287 = scalar_select %p286, %s283, 31
          %s288 = smul.addr %s285, 32
          %s289 = sadd.s32 %s287, %s288
          %s290 = smul.addr %s289, 4
          %s291 = scalar_lea.vmem %s1, %s290
          %s292 = smul.u32 32, %s26
        $region36: #{self_attention_forward.3} parent=27 // pred_fallthru
          _
        // Predicated region
        $region37: #{self_attention_forward.3} parent=27 // pred_check
          %p293 = pneg %p114
        $region38: #{self_attention_forward.3} parent=27 // pred_check_branch
          %295 = sbr.rel (%p293) target = $region40
        $region39: #{self_attention_forward.3} parent=27 // pred_region
          %s296 = smul.u32 32, %s26
          %p297 = scmp.lt.s32.totalorder %s24, 1
          %s298 = scalar_select %p297, %s24, 1
          %p299 = scmp.lt.s32.totalorder %s296, 31
          %s300 = scalar_select %p299, %s296, 31
          %s301 = smul.addr %s298, 32
          %s302 = sadd.s32 %s300, %s301
          %s303 = smul.addr %s302, 4
          %s304 = scalar_lea.vmem %s2, %s303
          %s305 = smul.u32 32, %s26
        $region40: #{self_attention_forward.3} parent=27 // pred_fallthru
          _
        // Predicated region
        $region41: #{self_attention_forward.3} parent=27 // pred_check
          %p306 = pneg %p142
        $region42: #{self_attention_forward.3} parent=27 // pred_check_branch
          %308 = sbr.rel (%p306) target = $region44
        $region43: #{self_attention_forward.3} parent=27 // pred_region
          %s309 = smul.u32 32, %s25
          %p310 = scmp.lt.s32.totalorder %s24, 1
          %s311 = scalar_select %p310, %s24, 1
          %p312 = scmp.lt.s32.totalorder %s309, 31
          %s313 = scalar_select %p312, %s309, 31
          %s314 = smul.addr %s311, 32
          %s315 = sadd.s32 %s313, %s314
          %s316 = smul.addr %s315, 8
          %s317 = scalar_lea.vmem %s3, %s316
          %s318 = smul.u32 32, %s25
        $region44: #{self_attention_forward.3} parent=27 // pred_fallthru
          _
      $region28: #{self_attention_forward.3} parent=5 // pred_fallthru
        _
      %p319 = scmp.le.s32.totalorder 1, %s17
      %p320 = scmp.lt.s32.totalorder %s17, 3
      %p321 = pnand %p319, %p320
      %p322 = pneg %p321
      // Predicated region
      $region45: #{self_attention_forward.3} parent=5 // pred_check
        _
      $region46: #{self_attention_forward.3} parent=5 // pred_check_branch
        %324 = sbr.rel (%p321) target = $region48
      $region47: #{self_attention_forward.3} parent=5 // pred_region
        %s325 = ssub.s32 %s17, 1
        %s326 = smul.u32 32, %s28
        %p327 = scmp.lt.s32.totalorder %s27, 1
        %s328 = scalar_select %p327, %s27, 1
        %p329 = scmp.lt.s32.totalorder %s326, 31
        %s330 = scalar_select %p329, %s326, 31
        %s331 = smul.addr %s328, 32
        %s332 = sadd.s32 %s330, %s331
        %s333 = smul.addr %s332, 4
        %s334 = scalar_lea.vmem %s0, %s333
        %p335 = pneg %p64
        %p336 = pneg %p61
        %s337 = smul.u32 32, %s29
        %p338 = scmp.lt.s32.totalorder %s27, 1
        %s339 = scalar_select %p338, %s27, 1
        %p340 = scmp.lt.s32.totalorder %s337, 31
        %s341 = scalar_select %p340, %s337, 31
        %s342 = smul.addr %s339, 32
        %s343 = sadd.s32 %s341, %s342
        %s344 = smul.addr %s343, 4
        %s345 = scalar_lea.vmem %s1, %s344
        %p346 = pneg %p92
        %p347 = pneg %p89
        %s348 = smul.u32 32, %s29
        %p349 = scmp.lt.s32.totalorder %s27, 1
        %s350 = scalar_select %p349, %s27, 1
        %p351 = scmp.lt.s32.totalorder %s348, 31
        %s352 = scalar_select %p351, %s348, 31
        %s353 = smul.addr %s350, 32
        %s354 = sadd.s32 %s352, %s353
        %s355 = smul.addr %s354, 4
        %s356 = scalar_lea.vmem %s2, %s355
        %p357 = pneg %p120
        %p358 = pneg %p117
        %s359 = smul.u32 32, %s28
        %p360 = scmp.lt.s32.totalorder %s27, 1
        %s361 = scalar_select %p360, %s27, 1
        %p362 = scmp.lt.s32.totalorder %s359, 31
        %s363 = scalar_select %p362, %s359, 31
        %s364 = smul.addr %s361, 32
        %s365 = sadd.s32 %s363, %s364
        %s366 = smul.addr %s365, 8
        %s367 = scalar_lea.vmem %s3, %s366
        %p368 = pneg %p148
        %p369 = pneg %p145
        %p370 = pneg %p169
        %p371 = pneg %p166
        %p372 = pneg %p190
        %p373 = pneg %p187
        %p374 = pneg %p211
        %p375 = pneg %p208
        %p376 = pneg %p239
        %p377 = pneg %p236
        %s378 = sand.u32 %s226, 1
        %s379 = scalar_lea.sflag [#allocation7], %s378
        %s380 = sand.u32 %s226, 1
        %s381 = smul.addr %s380, 256
        %s382 = scalar_lea.vmem [#allocation6], %s381
        %s383 = smul.u32 32, %s28
        %p384 = scmp.lt.s32.totalorder %s27, 1
        %s385 = scalar_select %p384, %s27, 1
        %p386 = scmp.lt.s32.totalorder %s383, 31
        %s387 = scalar_select %p386, %s383, 31
        %s388 = smul.addr %s385, 32
        %s389 = sadd.s32 %s387, %s388
        %s390 = smul.addr %s389, 4
        %s391 = scalar_lea.vmem %s0, %s390
        %s392 = smul.u32 32, %s28
        %s393 = smul.u32 32, %s29
        %p394 = scmp.lt.s32.totalorder %s27, 1
        %s395 = scalar_select %p394, %s27, 1
        %p396 = scmp.lt.s32.totalorder %s393, 31
        %s397 = scalar_select %p396, %s393, 31
        %s398 = smul.addr %s395, 32
        %s399 = sadd.s32 %s397, %s398
        %s400 = smul.addr %s399, 4
        %s401 = scalar_lea.vmem %s1, %s400
        %s402 = smul.u32 32, %s29
        %s403 = smul.u32 32, %s29
        %p404 = scmp.lt.s32.totalorder %s27, 1
        %s405 = scalar_select %p404, %s27, 1
        %p406 = scmp.lt.s32.totalorder %s403, 31
        %s407 = scalar_select %p406, %s403, 31
        %s408 = smul.addr %s405, 32
        %s409 = sadd.s32 %s407, %s408
        %s410 = smul.addr %s409, 4
        %s411 = scalar_lea.vmem %s2, %s410
        %s412 = smul.u32 32, %s29
        %s413 = smul.u32 32, %s28
        %p414 = scmp.lt.s32.totalorder %s27, 1
        %s415 = scalar_select %p414, %s27, 1
        %p416 = scmp.lt.s32.totalorder %s413, 31
        %s417 = scalar_select %p416, %s413, 31
        %s418 = smul.addr %s415, 32
        %s419 = sadd.s32 %s417, %s418
        %s420 = smul.addr %s419, 8
        %s421 = scalar_lea.vmem %s3, %s420
        %s422 = smul.u32 32, %s28
        %s423 = smul.u32 32, %s28
        %p425 = scmp.eq.s32.totalorder %s29, 0
        // Predicated region
        $region49: #{self_attention_forward.3} parent=47 // pred_check
          %p426 = pneg %p425
        $region50: #{self_attention_forward.3} parent=47 // pred_check_branch
          %428 = sbr.rel (%p426) target = $region52
        $region51: #{self_attention_forward.3} parent=47 // pred_region
          %vm429 = vcmask 7168
          %430 = vst.msk [vmem:[#allocation2] sm:$0xff] %vm429, -inf
          %431 = vst.msk [vmem:[#allocation2 + $0x8] sm:$0xff] %vm429, -inf
          %432 = vst.msk [vmem:[#allocation2 + $0x10] sm:$0xff] %vm429, -inf
          %433 = vst.msk [vmem:[#allocation2 + $0x18] sm:$0xff] %vm429, -inf
          %434 = vst.msk [vmem:[#allocation2 + $0x20] sm:$0xff] %vm429, -inf
          %435 = vst.msk [vmem:[#allocation2 + $0x28] sm:$0xff] %vm429, -inf
          %436 = vst.msk [vmem:[#allocation2 + $0x30] sm:$0xff] %vm429, -inf
          %437 = vst.msk [vmem:[#allocation2 + $0x38] sm:$0xff] %vm429, -inf
          %438 = vst.msk [vmem:[#allocation2 + $0x40] sm:$0xff] %vm429, -inf
          %439 = vst.msk [vmem:[#allocation2 + $0x48] sm:$0xff] %vm429, -inf
          %440 = vst.msk [vmem:[#allocation2 + $0x50] sm:$0xff] %vm429, -inf
          %441 = vst.msk [vmem:[#allocation2 + $0x58] sm:$0xff] %vm429, -inf
          %442 = vst.msk [vmem:[#allocation2 + $0x60] sm:$0xff] %vm429, -inf
          %443 = vst.msk [vmem:[#allocation2 + $0x68] sm:$0xff] %vm429, -inf
          %444 = vst.msk [vmem:[#allocation2 + $0x70] sm:$0xff] %vm429, -inf
          %445 = vst.msk [vmem:[#allocation2 + $0x78] sm:$0xff] %vm429, -inf
          %446 = vst.msk [vmem:[#allocation2 + $0x80] sm:$0xff] %vm429, -inf
          %447 = vst.msk [vmem:[#allocation2 + $0x88] sm:$0xff] %vm429, -inf
          %448 = vst.msk [vmem:[#allocation2 + $0x90] sm:$0xff] %vm429, -inf
          %449 = vst.msk [vmem:[#allocation2 + $0x98] sm:$0xff] %vm429, -inf
          %450 = vst.msk [vmem:[#allocation2 + $0xa0] sm:$0xff] %vm429, -inf
          %451 = vst.msk [vmem:[#allocation2 + $0xa8] sm:$0xff] %vm429, -inf
          %452 = vst.msk [vmem:[#allocation2 + $0xb0] sm:$0xff] %vm429, -inf
          %453 = vst.msk [vmem:[#allocation2 + $0xb8] sm:$0xff] %vm429, -inf
          %454 = vst.msk [vmem:[#allocation2 + $0xc0] sm:$0xff] %vm429, -inf
          %455 = vst.msk [vmem:[#allocation2 + $0xc8] sm:$0xff] %vm429, -inf
          %456 = vst.msk [vmem:[#allocation2 + $0xd0] sm:$0xff] %vm429, -inf
          %457 = vst.msk [vmem:[#allocation2 + $0xd8] sm:$0xff] %vm429, -inf
          %458 = vst.msk [vmem:[#allocation2 + $0xe0] sm:$0xff] %vm429, -inf
          %459 = vst.msk [vmem:[#allocation2 + $0xe8] sm:$0xff] %vm429, -inf
          %460 = vst.msk [vmem:[#allocation2 + $0xf0] sm:$0xff] %vm429, -inf
          %461 = vst.msk [vmem:[#allocation2 + $0xf8] sm:$0xff] %vm429, -inf
          %462 = vst.msk [vmem:[#allocation3] sm:$0xff] %vm429, 0.0
          %463 = vst.msk [vmem:[#allocation3 + $0x8] sm:$0xff] %vm429, 0.0
          %464 = vst.msk [vmem:[#allocation3 + $0x10] sm:$0xff] %vm429, 0.0
          %465 = vst.msk [vmem:[#allocation3 + $0x18] sm:$0xff] %vm429, 0.0
          %466 = vst.msk [vmem:[#allocation3 + $0x20] sm:$0xff] %vm429, 0.0
          %467 = vst.msk [vmem:[#allocation3 + $0x28] sm:$0xff] %vm429, 0.0
          %468 = vst.msk [vmem:[#allocation3 + $0x30] sm:$0xff] %vm429, 0.0
          %469 = vst.msk [vmem:[#allocation3 + $0x38] sm:$0xff] %vm429, 0.0
          %470 = vst.msk [vmem:[#allocation3 + $0x40] sm:$0xff] %vm429, 0.0
          %471 = vst.msk [vmem:[#allocation3 + $0x48] sm:$0xff] %vm429, 0.0
          %472 = vst.msk [vmem:[#allocation3 + $0x50] sm:$0xff] %vm429, 0.0
          %473 = vst.msk [vmem:[#allocation3 + $0x58] sm:$0xff] %vm429, 0.0
          %474 = vst.msk [vmem:[#allocation3 + $0x60] sm:$0xff] %vm429, 0.0
          %475 = vst.msk [vmem:[#allocation3 + $0x68] sm:$0xff] %vm429, 0.0
          %476 = vst.msk [vmem:[#allocation3 + $0x70] sm:$0xff] %vm429, 0.0
          %477 = vst.msk [vmem:[#allocation3 + $0x78] sm:$0xff] %vm429, 0.0
          %478 = vst.msk [vmem:[#allocation3 + $0x80] sm:$0xff] %vm429, 0.0
          %479 = vst.msk [vmem:[#allocation3 + $0x88] sm:$0xff] %vm429, 0.0
          %480 = vst.msk [vmem:[#allocation3 + $0x90] sm:$0xff] %vm429, 0.0
          %481 = vst.msk [vmem:[#allocation3 + $0x98] sm:$0xff] %vm429, 0.0
          %482 = vst.msk [vmem:[#allocation3 + $0xa0] sm:$0xff] %vm429, 0.0
          %483 = vst.msk [vmem:[#allocation3 + $0xa8] sm:$0xff] %vm429, 0.0
          %484 = vst.msk [vmem:[#allocation3 + $0xb0] sm:$0xff] %vm429, 0.0
          %485 = vst.msk [vmem:[#allocation3 + $0xb8] sm:$0xff] %vm429, 0.0
          %486 = vst.msk [vmem:[#allocation3 + $0xc0] sm:$0xff] %vm429, 0.0
          %487 = vst.msk [vmem:[#allocation3 + $0xc8] sm:$0xff] %vm429, 0.0
          %488 = vst.msk [vmem:[#allocation3 + $0xd0] sm:$0xff] %vm429, 0.0
          %489 = vst.msk [vmem:[#allocation3 + $0xd8] sm:$0xff] %vm429, 0.0
          %490 = vst.msk [vmem:[#allocation3 + $0xe0] sm:$0xff] %vm429, 0.0
          %491 = vst.msk [vmem:[#allocation3 + $0xe8] sm:$0xff] %vm429, 0.0
          %492 = vst.msk [vmem:[#allocation3 + $0xf0] sm:$0xff] %vm429, 0.0
          %493 = vst.msk [vmem:[#allocation3 + $0xf8] sm:$0xff] %vm429, 0.0
          %494 = vst [vmem:[#allocation4] sm:$0xff] 0.0
          %495 = vst [vmem:[#allocation4 + $0x8] sm:$0xff] 0.0
          %496 = vst [vmem:[#allocation4 + $0x10] sm:$0xff] 0.0
          %497 = vst [vmem:[#allocation4 + $0x18] sm:$0xff] 0.0
          %498 = vst [vmem:[#allocation4 + $0x20] sm:$0xff] 0.0
          %499 = vst [vmem:[#allocation4 + $0x28] sm:$0xff] 0.0
          %500 = vst [vmem:[#allocation4 + $0x30] sm:$0xff] 0.0
          %501 = vst [vmem:[#allocation4 + $0x38] sm:$0xff] 0.0
          %502 = vst [vmem:[#allocation4 + $0x40] sm:$0xff] 0.0
          %503 = vst [vmem:[#allocation4 + $0x48] sm:$0xff] 0.0
          %504 = vst [vmem:[#allocation4 + $0x50] sm:$0xff] 0.0
          %505 = vst [vmem:[#allocation4 + $0x58] sm:$0xff] 0.0
          %506 = vst [vmem:[#allocation4 + $0x60] sm:$0xff] 0.0
          %507 = vst [vmem:[#allocation4 + $0x68] sm:$0xff] 0.0
          %508 = vst [vmem:[#allocation4 + $0x70] sm:$0xff] 0.0
          %509 = vst [vmem:[#allocation4 + $0x78] sm:$0xff] 0.0
          %510 = vst [vmem:[#allocation4 + $0x80] sm:$0xff] 0.0
          %511 = vst [vmem:[#allocation4 + $0x88] sm:$0xff] 0.0
          %512 = vst [vmem:[#allocation4 + $0x90] sm:$0xff] 0.0
          %513 = vst [vmem:[#allocation4 + $0x98] sm:$0xff] 0.0
          %514 = vst [vmem:[#allocation4 + $0xa0] sm:$0xff] 0.0
          %515 = vst [vmem:[#allocation4 + $0xa8] sm:$0xff] 0.0
          %516 = vst [vmem:[#allocation4 + $0xb0] sm:$0xff] 0.0
          %517 = vst [vmem:[#allocation4 + $0xb8] sm:$0xff] 0.0
          %518 = vst [vmem:[#allocation4 + $0xc0] sm:$0xff] 0.0
          %519 = vst [vmem:[#allocation4 + $0xc8] sm:$0xff] 0.0
          %520 = vst [vmem:[#allocation4 + $0xd0] sm:$0xff] 0.0
          %521 = vst [vmem:[#allocation4 + $0xd8] sm:$0xff] 0.0
          %522 = vst [vmem:[#allocation4 + $0xe0] sm:$0xff] 0.0
          %523 = vst [vmem:[#allocation4 + $0xe8] sm:$0xff] 0.0
          %524 = vst [vmem:[#allocation4 + $0xf0] sm:$0xff] 0.0
          %525 = vst [vmem:[#allocation4 + $0xf8] sm:$0xff] 0.0
        $region52: #{self_attention_forward.3} parent=47 // pred_fallthru
          _
        %v526 = vld [vmem:[%s391] sm:$0xf]
        %v527 = vld [vmem:[%s391 + $0x4] sm:$0xf]
        %v528 = vld [vmem:[%s391 + $0x8] sm:$0xf]
        %v529 = vld [vmem:[%s391 + $0xc] sm:$0xf]
        %v530 = vld [vmem:[%s391 + $0x10] sm:$0xf]
        %v531 = vld [vmem:[%s391 + $0x14] sm:$0xf]
        %v532 = vld [vmem:[%s391 + $0x18] sm:$0xf]
        %v533 = vld [vmem:[%s391 + $0x1c] sm:$0xf]
        %v534 = vld [vmem:[%s391 + $0x20] sm:$0xf]
        %v535 = vld [vmem:[%s391 + $0x24] sm:$0xf]
        %v536 = vld [vmem:[%s391 + $0x28] sm:$0xf]
        %v537 = vld [vmem:[%s391 + $0x2c] sm:$0xf]
        %v538 = vld [vmem:[%s391 + $0x30] sm:$0xf]
        %v539 = vld [vmem:[%s391 + $0x34] sm:$0xf]
        %v540 = vld [vmem:[%s391 + $0x38] sm:$0xf]
        %v541 = vld [vmem:[%s391 + $0x3c] sm:$0xf]
        %v542 = vld [vmem:[%s391 + $0x40] sm:$0xf]
        %v543 = vld [vmem:[%s391 + $0x44] sm:$0xf]
        %v544 = vld [vmem:[%s391 + $0x48] sm:$0xf]
        %v545 = vld [vmem:[%s391 + $0x4c] sm:$0xf]
        %v546 = vld [vmem:[%s391 + $0x50] sm:$0xf]
        %v547 = vld [vmem:[%s391 + $0x54] sm:$0xf]
        %v548 = vld [vmem:[%s391 + $0x58] sm:$0xf]
        %v549 = vld [vmem:[%s391 + $0x5c] sm:$0xf]
        %v550 = vld [vmem:[%s391 + $0x60] sm:$0xf]
        %v551 = vld [vmem:[%s391 + $0x64] sm:$0xf]
        %v552 = vld [vmem:[%s391 + $0x68] sm:$0xf]
        %v553 = vld [vmem:[%s391 + $0x6c] sm:$0xf]
        %v554 = vld [vmem:[%s391 + $0x70] sm:$0xf]
        %v555 = vld [vmem:[%s391 + $0x74] sm:$0xf]
        %v556 = vld [vmem:[%s391 + $0x78] sm:$0xf]
        %v557 = vld [vmem:[%s391 + $0x7c] sm:$0xf]
        %v558 = vld [vmem:[%s401] sm:$0xf]
        %v559 = vld [vmem:[%s401 + $0x4] sm:$0xf]
        %v560 = vld [vmem:[%s401 + $0x8] sm:$0xf]
        %v561 = vld [vmem:[%s401 + $0xc] sm:$0xf]
        %v562 = vld [vmem:[%s401 + $0x10] sm:$0xf]
        %v563 = vld [vmem:[%s401 + $0x14] sm:$0xf]
        %v564 = vld [vmem:[%s401 + $0x18] sm:$0xf]
        %v565 = vld [vmem:[%s401 + $0x1c] sm:$0xf]
        %v566 = vld [vmem:[%s401 + $0x20] sm:$0xf]
        %v567 = vld [vmem:[%s401 + $0x24] sm:$0xf]
        %v568 = vld [vmem:[%s401 + $0x28] sm:$0xf]
        %v569 = vld [vmem:[%s401 + $0x2c] sm:$0xf]
        %v570 = vld [vmem:[%s401 + $0x30] sm:$0xf]
        %v571 = vld [vmem:[%s401 + $0x34] sm:$0xf]
        %v572 = vld [vmem:[%s401 + $0x38] sm:$0xf]
        %v573 = vld [vmem:[%s401 + $0x3c] sm:$0xf]
        %v574 = vld [vmem:[%s401 + $0x40] sm:$0xf]
        %v575 = vld [vmem:[%s401 + $0x44] sm:$0xf]
        %v576 = vld [vmem:[%s401 + $0x48] sm:$0xf]
        %v577 = vld [vmem:[%s401 + $0x4c] sm:$0xf]
        %v578 = vld [vmem:[%s401 + $0x50] sm:$0xf]
        %v579 = vld [vmem:[%s401 + $0x54] sm:$0xf]
        %v580 = vld [vmem:[%s401 + $0x58] sm:$0xf]
        %v581 = vld [vmem:[%s401 + $0x5c] sm:$0xf]
        %v582 = vld [vmem:[%s401 + $0x60] sm:$0xf]
        %v583 = vld [vmem:[%s401 + $0x64] sm:$0xf]
        %v584 = vld [vmem:[%s401 + $0x68] sm:$0xf]
        %v585 = vld [vmem:[%s401 + $0x6c] sm:$0xf]
        %v586 = vld [vmem:[%s401 + $0x70] sm:$0xf]
        %v587 = vld [vmem:[%s401 + $0x74] sm:$0xf]
        %v588 = vld [vmem:[%s401 + $0x78] sm:$0xf]
        %v589 = vld [vmem:[%s401 + $0x7c] sm:$0xf]
        %v622 = vunpack.c.l.b16 %v526
        %v623 = vunpack.c.l.b16 %v527
        %v624 = vunpack.c.l.b16 %v528
        %v625 = vunpack.c.l.b16 %v529
        %v626 = vunpack.c.l.b16 %v530
        %v627 = vunpack.c.l.b16 %v531
        %v628 = vunpack.c.l.b16 %v532
        %v629 = vunpack.c.l.b16 %v533
        %v630 = vunpack.c.l.b16 %v534
        %v631 = vunpack.c.l.b16 %v535
        %v632 = vunpack.c.l.b16 %v536
        %v633 = vunpack.c.l.b16 %v537
        %v634 = vunpack.c.l.b16 %v538
        %v635 = vunpack.c.l.b16 %v539
        %v636 = vunpack.c.l.b16 %v540
        %v637 = vunpack.c.l.b16 %v541
        %v638 = vunpack.c.l.b16 %v542
        %v639 = vunpack.c.l.b16 %v543
        %v640 = vunpack.c.l.b16 %v544
        %v641 = vunpack.c.l.b16 %v545
        %v642 = vunpack.c.l.b16 %v546
        %v643 = vunpack.c.l.b16 %v547
        %v644 = vunpack.c.l.b16 %v548
        %v645 = vunpack.c.l.b16 %v549
        %v646 = vunpack.c.l.b16 %v550
        %v647 = vunpack.c.l.b16 %v551
        %v648 = vunpack.c.l.b16 %v552
        %v649 = vunpack.c.l.b16 %v553
        %v650 = vunpack.c.l.b16 %v554
        %v651 = vunpack.c.l.b16 %v555
        %v652 = vunpack.c.l.b16 %v556
        %v653 = vunpack.c.l.b16 %v557
        %v654 = vpack.c.b16 %v623, %v622
        %v655 = vpack.c.b16 %v625, %v624
        %v656 = vpack.c.b16 %v627, %v626
        %v657 = vpack.c.b16 %v629, %v628
        %v658 = vpack.c.b16 %v631, %v630
        %v659 = vpack.c.b16 %v633, %v632
        %v660 = vpack.c.b16 %v635, %v634
        %v661 = vpack.c.b16 %v637, %v636
        %v662 = vpack.c.b16 %v639, %v638
        %v663 = vpack.c.b16 %v641, %v640
        %v664 = vpack.c.b16 %v643, %v642
        %v665 = vpack.c.b16 %v645, %v644
        %v666 = vpack.c.b16 %v647, %v646
        %v667 = vpack.c.b16 %v649, %v648
        %v668 = vpack.c.b16 %v651, %v650
        %v669 = vpack.c.b16 %v653, %v652
        %v718 = vunpack.c.l.b16 %v558
        %v719 = vunpack.c.l.b16 %v559
        %v720 = vunpack.c.l.b16 %v560
        %v721 = vunpack.c.l.b16 %v561
        %v722 = vunpack.c.l.b16 %v562
        %v723 = vunpack.c.l.b16 %v563
        %v724 = vunpack.c.l.b16 %v564
        %v725 = vunpack.c.l.b16 %v565
        %v726 = vunpack.c.l.b16 %v566
        %v727 = vunpack.c.l.b16 %v567
        %v728 = vunpack.c.l.b16 %v568
        %v729 = vunpack.c.l.b16 %v569
        %v730 = vunpack.c.l.b16 %v570
        %v731 = vunpack.c.l.b16 %v571
        %v732 = vunpack.c.l.b16 %v572
        %v733 = vunpack.c.l.b16 %v573
        %v734 = vunpack.c.l.b16 %v574
        %v735 = vunpack.c.l.b16 %v575
        %v736 = vunpack.c.l.b16 %v576
        %v737 = vunpack.c.l.b16 %v577
        %v738 = vunpack.c.l.b16 %v578
        %v739 = vunpack.c.l.b16 %v579
        %v740 = vunpack.c.l.b16 %v580
        %v741 = vunpack.c.l.b16 %v581
        %v742 = vunpack.c.l.b16 %v582
        %v743 = vunpack.c.l.b16 %v583
        %v744 = vunpack.c.l.b16 %v584
        %v745 = vunpack.c.l.b16 %v585
        %v746 = vunpack.c.l.b16 %v586
        %v747 = vunpack.c.l.b16 %v587
        %v748 = vunpack.c.l.b16 %v588
        %v749 = vunpack.c.l.b16 %v589
        %v750 = vpack.c.b16 %v719, %v718
        %v751 = vpack.c.b16 %v721, %v720
        %v752 = vpack.c.b16 %v723, %v722
        %v753 = vpack.c.b16 %v725, %v724
        %v754 = vpack.c.b16 %v727, %v726
        %v755 = vpack.c.b16 %v729, %v728
        %v756 = vpack.c.b16 %v731, %v730
        %v757 = vpack.c.b16 %v733, %v732
        %v758 = vpack.c.b16 %v735, %v734
        %v759 = vpack.c.b16 %v737, %v736
        %v760 = vpack.c.b16 %v739, %v738
        %v761 = vpack.c.b16 %v741, %v740
        %v762 = vpack.c.b16 %v743, %v742
        %v763 = vpack.c.b16 %v745, %v744
        %v764 = vpack.c.b16 %v747, %v746
        %v765 = vpack.c.b16 %v749, %v748
        %782 = vmatprep.subr.bf16.mxu0 0
        %783 = vmatpush1.bf16.xpose.msra.mxu0 %v750
        %784 = vmatprep.subr.bf16.mxu0 0
        %785 = vmatpush1.bf16.xpose.msra.mxu0 %v751
        %786 = vmatprep.subr.bf16.mxu0 0
        %787 = vmatpush1.bf16.xpose.msra.mxu0 %v752
        %788 = vmatprep.subr.bf16.mxu0 0
        %789 = vmatpush1.bf16.xpose.msra.mxu0 %v753
        %790 = vmatprep.subr.bf16.mxu0 0
        %791 = vmatpush1.bf16.xpose.msra.mxu0 %v754
        %792 = vmatprep.subr.bf16.mxu0 0
        %793 = vmatpush1.bf16.xpose.msra.mxu0 %v755
        %794 = vmatprep.subr.bf16.mxu0 0
        %795 = vmatpush1.bf16.xpose.msra.mxu0 %v756
        %796 = vmatprep.subr.bf16.mxu0 0
        %797 = vmatpush1.bf16.xpose.msra.mxu0 %v757
        %798 = vmatprep.subr.bf16.mxu0 0
        %799 = vmatpush1.bf16.xpose.msra.mxu0 %v758
        %800 = vmatprep.subr.bf16.mxu0 0
        %801 = vmatpush1.bf16.xpose.msra.mxu0 %v759
        %802 = vmatprep.subr.bf16.mxu0 0
        %803 = vmatpush1.bf16.xpose.msra.mxu0 %v760
        %804 = vmatprep.subr.bf16.mxu0 0
        %805 = vmatpush1.bf16.xpose.msra.mxu0 %v761
        %806 = vmatprep.subr.bf16.mxu0 0
        %807 = vmatpush1.bf16.xpose.msra.mxu0 %v762
        %808 = vmatprep.subr.bf16.mxu0 0
        %809 = vmatpush1.bf16.xpose.msra.mxu0 %v763
        %810 = vmatprep.subr.bf16.mxu0 0
        %811 = vmatpush1.bf16.xpose.msra.mxu0 %v764
        %812 = vmatprep.subr.bf16.mxu0 0
        %813 = vmatpush1.bf16.xpose.msra.mxu0 %v765
        %814 = vmatprep.mubr.bf16.mxu0 0
        %815 = vmatmul.mubr.bf16.gmra.mrb[0].mxu0 %v654
        %v816 = vpop.f32.mrb[0].mxu0
        %v817 = vadd.f32 0.0, %v816
        %v818 = vpop.f32.mrb[0].mxu0
        %v819 = vadd.f32 0.0, %v818
        %v820 = vpop.f32.mrb[0].mxu0
        %v821 = vadd.f32 0.0, %v820
        %v822 = vpop.f32.mrb[0].mxu0
        %v823 = vadd.f32 0.0, %v822
        %824 = vmatprep.mubr.bf16.mxu0 0
        %825 = vmatmul.mubr.bf16.gmra.mrb[0].mxu0 %v655
        %v826 = vpop.f32.mrb[0].mxu0
        %v827 = vadd.f32 0.0, %v826
        %v828 = vpop.f32.mrb[0].mxu0
        %v829 = vadd.f32 0.0, %v828
        %v830 = vpop.f32.mrb[0].mxu0
        %v831 = vadd.f32 0.0, %v830
        %v832 = vpop.f32.mrb[0].mxu0
        %v833 = vadd.f32 0.0, %v832
        %834 = vmatprep.mubr.bf16.mxu0 0
        %835 = vmatmul.mubr.bf16.gmra.mrb[0].mxu0 %v656
        %v836 = vpop.f32.mrb[0].mxu0
        %v837 = vadd.f32 0.0, %v836
        %v838 = vpop.f32.mrb[0].mxu0
        %v839 = vadd.f32 0.0, %v838
        %v840 = vpop.f32.mrb[0].mxu0
        %v841 = vadd.f32 0.0, %v840
        %v842 = vpop.f32.mrb[0].mxu0
        %v843 = vadd.f32 0.0, %v842
        %844 = vmatprep.mubr.bf16.mxu0 0
        %845 = vmatmul.mubr.bf16.gmra.mrb[0].mxu0 %v657
        %v846 = vpop.f32.mrb[0].mxu0
        %v847 = vadd.f32 0.0, %v846
        %v848 = vpop.f32.mrb[0].mxu0
        %v849 = vadd.f32 0.0, %v848
        %v850 = vpop.f32.mrb[0].mxu0
        %v851 = vadd.f32 0.0, %v850
        %v852 = vpop.f32.mrb[0].mxu0
        %v853 = vadd.f32 0.0, %v852
        %854 = vmatprep.mubr.bf16.mxu0 0
        %855 = vmatmul.mubr.bf16.gmra.mrb[0].mxu0 %v658
        %v856 = vpop.f32.mrb[0].mxu0
        %v857 = vadd.f32 0.0, %v856
        %v858 = vpop.f32.mrb[0].mxu0
        %v859 = vadd.f32 0.0, %v858
        %v860 = vpop.f32.mrb[0].mxu0
        %v861 = vadd.f32 0.0, %v860
        %v862 = vpop.f32.mrb[0].mxu0
        %v863 = vadd.f32 0.0, %v862
        %864 = vmatprep.mubr.bf16.mxu0 0
        %865 = vmatmul.mubr.bf16.gmra.mrb[0].mxu0 %v659
        %v866 = vpop.f32.mrb[0].mxu0
        %v867 = vadd.f32 0.0, %v866
        %v868 = vpop.f32.mrb[0].mxu0
        %v869 = vadd.f32 0.0, %v868
        %v870 = vpop.f32.mrb[0].mxu0
        %v871 = vadd.f32 0.0, %v870
        %v872 = vpop.f32.mrb[0].mxu0
        %v873 = vadd.f32 0.0, %v872
        %874 = vmatprep.mubr.bf16.mxu0 0
        %875 = vmatmul.mubr.bf16.gmra.mrb[0].mxu0 %v660
        %v876 = vpop.f32.mrb[0].mxu0
        %v877 = vadd.f32 0.0, %v876
        %v878 = vpop.f32.mrb[0].mxu0
        %v879 = vadd.f32 0.0, %v878
        %v880 = vpop.f32.mrb[0].mxu0
        %v881 = vadd.f32 0.0, %v880
        %v882 = vpop.f32.mrb[0].mxu0
        %v883 = vadd.f32 0.0, %v882
        %884 = vmatprep.mubr.bf16.mxu0 0
        %885 = vmatmul.mubr.bf16.gmra.mrb[0].mxu0 %v661
        %v886 = vpop.f32.mrb[0].mxu0
        %v887 = vadd.f32 0.0, %v886
        %v888 = vpop.f32.mrb[0].mxu0
        %v889 = vadd.f32 0.0, %v888
        %v890 = vpop.f32.mrb[0].mxu0
        %v891 = vadd.f32 0.0, %v890
        %v892 = vpop.f32.mrb[0].mxu0
        %v893 = vadd.f32 0.0, %v892
        %894 = vmatprep.mubr.bf16.mxu0 0
        %895 = vmatmul.mubr.bf16.gmra.mrb[0].mxu0 %v662
        %v896 = vpop.f32.mrb[0].mxu0
        %v897 = vadd.f32 0.0, %v896
        %v898 = vpop.f32.mrb[0].mxu0
        %v899 = vadd.f32 0.0, %v898
        %v900 = vpop.f32.mrb[0].mxu0
        %v901 = vadd.f32 0.0, %v900
        %v902 = vpop.f32.mrb[0].mxu0
        %v903 = vadd.f32 0.0, %v902
        %904 = vmatprep.mubr.bf16.mxu0 0
        %905 = vmatmul.mubr.bf16.gmra.mrb[0].mxu0 %v663
        %v906 = vpop.f32.mrb[0].mxu0
        %v907 = vadd.f32 0.0, %v906
        %v908 = vpop.f32.mrb[0].mxu0
        %v909 = vadd.f32 0.0, %v908
        %v910 = vpop.f32.mrb[0].mxu0
        %v911 = vadd.f32 0.0, %v910
        %v912 = vpop.f32.mrb[0].mxu0
        %v913 = vadd.f32 0.0, %v912
        %914 = vmatprep.mubr.bf16.mxu0 0
        %915 = vmatmul.mubr.bf16.gmra.mrb[0].mxu0 %v664
        %v916 = vpop.f32.mrb[0].mxu0
        %v917 = vadd.f32 0.0, %v916
        %v918 = vpop.f32.mrb[0].mxu0
        %v919 = vadd.f32 0.0, %v918
        %v920 = vpop.f32.mrb[0].mxu0
        %v921 = vadd.f32 0.0, %v920
        %v922 = vpop.f32.mrb[0].mxu0
        %v923 = vadd.f32 0.0, %v922
        %924 = vmatprep.mubr.bf16.mxu0 0
        %925 = vmatmul.mubr.bf16.gmra.mrb[0].mxu0 %v665
        %v926 = vpop.f32.mrb[0].mxu0
        %v927 = vadd.f32 0.0, %v926
        %v928 = vpop.f32.mrb[0].mxu0
        %v929 = vadd.f32 0.0, %v928
        %v930 = vpop.f32.mrb[0].mxu0
        %v931 = vadd.f32 0.0, %v930
        %v932 = vpop.f32.mrb[0].mxu0
        %v933 = vadd.f32 0.0, %v932
        %934 = vmatprep.mubr.bf16.mxu0 0
        %935 = vmatmul.mubr.bf16.gmra.mrb[0].mxu0 %v666
        %v936 = vpop.f32.mrb[0].mxu0
        %v937 = vadd.f32 0.0, %v936
        %v938 = vpop.f32.mrb[0].mxu0
        %v939 = vadd.f32 0.0, %v938
        %v940 = vpop.f32.mrb[0].mxu0
        %v941 = vadd.f32 0.0, %v940
        %v942 = vpop.f32.mrb[0].mxu0
        %v943 = vadd.f32 0.0, %v942
        %944 = vmatprep.mubr.bf16.mxu0 0
        %945 = vmatmul.mubr.bf16.gmra.mrb[0].mxu0 %v667
        %v946 = vpop.f32.mrb[0].mxu0
        %v947 = vadd.f32 0.0, %v946
        %v948 = vpop.f32.mrb[0].mxu0
        %v949 = vadd.f32 0.0, %v948
        %v950 = vpop.f32.mrb[0].mxu0
        %v951 = vadd.f32 0.0, %v950
        %v952 = vpop.f32.mrb[0].mxu0
        %v953 = vadd.f32 0.0, %v952
        %954 = vmatprep.mubr.bf16.mxu0 0
        %955 = vmatmul.mubr.bf16.gmra.mrb[0].mxu0 %v668
        %v956 = vpop.f32.mrb[0].mxu0
        %v957 = vadd.f32 0.0, %v956
        %v958 = vpop.f32.mrb[0].mxu0
        %v959 = vadd.f32 0.0, %v958
        %v960 = vpop.f32.mrb[0].mxu0
        %v961 = vadd.f32 0.0, %v960
        %v962 = vpop.f32.mrb[0].mxu0
        %v963 = vadd.f32 0.0, %v962
        %964 = vmatprep.mubr.bf16.mxu0 0
        %965 = vmatmul.mubr.bf16.gmra.mrb[0].mxu0 %v669
        %v966 = vpop.f32.mrb[0].mxu0
        %v967 = vadd.f32 0.0, %v966
        %v968 = vpop.f32.mrb[0].mxu0
        %v969 = vadd.f32 0.0, %v968
        %v970 = vpop.f32.mrb[0].mxu0
        %v971 = vadd.f32 0.0, %v970
        %v972 = vpop.f32.mrb[0].mxu0
        %v973 = vadd.f32 0.0, %v972
        %974 = vdwg.mxu0
        %v975 = vld [vmem:[#allocation2] sm:$0xff]
        %v976 = vld [vmem:[#allocation2 + $0x8] sm:$0xff]
        %v977 = vld [vmem:[#allocation2 + $0x10] sm:$0xff]
        %v978 = vld [vmem:[#allocation2 + $0x18] sm:$0xff]
        %v979 = vld [vmem:[#allocation2 + $0x20] sm:$0xff]
        %v980 = vld [vmem:[#allocation2 + $0x28] sm:$0xff]
        %v981 = vld [vmem:[#allocation2 + $0x30] sm:$0xff]
        %v982 = vld [vmem:[#allocation2 + $0x38] sm:$0xff]
        %v983 = vld [vmem:[#allocation2 + $0x40] sm:$0xff]
        %v984 = vld [vmem:[#allocation2 + $0x48] sm:$0xff]
        %v985 = vld [vmem:[#allocation2 + $0x50] sm:$0xff]
        %v986 = vld [vmem:[#allocation2 + $0x58] sm:$0xff]
        %v987 = vld [vmem:[#allocation2 + $0x60] sm:$0xff]
        %v988 = vld [vmem:[#allocation2 + $0x68] sm:$0xff]
        %v989 = vld [vmem:[#allocation2 + $0x70] sm:$0xff]
        %v990 = vld [vmem:[#allocation2 + $0x78] sm:$0xff]
        %v991 = vld [vmem:[#allocation2 + $0x80] sm:$0xff]
        %v992 = vld [vmem:[#allocation2 + $0x88] sm:$0xff]
        %v993 = vld [vmem:[#allocation2 + $0x90] sm:$0xff]
        %v994 = vld [vmem:[#allocation2 + $0x98] sm:$0xff]
        %v995 = vld [vmem:[#allocation2 + $0xa0] sm:$0xff]
        %v996 = vld [vmem:[#allocation2 + $0xa8] sm:$0xff]
        %v997 = vld [vmem:[#allocation2 + $0xb0] sm:$0xff]
        %v998 = vld [vmem:[#allocation2 + $0xb8] sm:$0xff]
        %v999 = vld [vmem:[#allocation2 + $0xc0] sm:$0xff]
        %v1000 = vld [vmem:[#allocation2 + $0xc8] sm:$0xff]
        %v1001 = vld [vmem:[#allocation2 + $0xd0] sm:$0xff]
        %v1002 = vld [vmem:[#allocation2 + $0xd8] sm:$0xff]
        %v1003 = vld [vmem:[#allocation2 + $0xe0] sm:$0xff]
        %v1004 = vld [vmem:[#allocation2 + $0xe8] sm:$0xff]
        %v1005 = vld [vmem:[#allocation2 + $0xf0] sm:$0xff]
        %v1006 = vld [vmem:[#allocation2 + $0xf8] sm:$0xff]
        %v1007 = vmax.f32 %v817, %v819
        %1008 = vmax.xlane.f32.xlu0 %v1007
        %v1009 = vpop.xlane.xlu0 %1008
        %v1010 = vmax.f32 %v821, %v823
        %1011 = vmax.xlane.f32.xlu0 %v1010
        %v1012 = vpop.xlane.xlu0 %1011
        %v1013 = vmax.f32 %v827, %v829
        %1014 = vmax.xlane.f32.xlu0 %v1013
        %v1015 = vpop.xlane.xlu0 %1014
        %v1016 = vmax.f32 %v831, %v833
        %1017 = vmax.xlane.f32.xlu0 %v1016
        %v1018 = vpop.xlane.xlu0 %1017
        %v1019 = vmax.f32 %v837, %v839
        %1020 = vmax.xlane.f32.xlu0 %v1019
        %v1021 = vpop.xlane.xlu0 %1020
        %v1022 = vmax.f32 %v841, %v843
        %1023 = vmax.xlane.f32.xlu0 %v1022
        %v1024 = vpop.xlane.xlu0 %1023
        %v1025 = vmax.f32 %v847, %v849
        %1026 = vmax.xlane.f32.xlu0 %v1025
        %v1027 = vpop.xlane.xlu0 %1026
        %v1028 = vmax.f32 %v851, %v853
        %1029 = vmax.xlane.f32.xlu0 %v1028
        %v1030 = vpop.xlane.xlu0 %1029
        %v1031 = vmax.f32 %v857, %v859
        %1032 = vmax.xlane.f32.xlu0 %v1031
        %v1033 = vpop.xlane.xlu0 %1032
        %v1034 = vmax.f32 %v861, %v863
        %1035 = vmax.xlane.f32.xlu0 %v1034
        %v1036 = vpop.xlane.xlu0 %1035
        %v1037 = vmax.f32 %v867, %v869
        %1038 = vmax.xlane.f32.xlu0 %v1037
        %v1039 = vpop.xlane.xlu0 %1038
        %v1040 = vmax.f32 %v871, %v873
        %1041 = vmax.xlane.f32.xlu0 %v1040
        %v1042 = vpop.xlane.xlu0 %1041
        %v1043 = vmax.f32 %v877, %v879
        %1044 = vmax.xlane.f32.xlu0 %v1043
        %v1045 = vpop.xlane.xlu0 %1044
        %v1046 = vmax.f32 %v881, %v883
        %1047 = vmax.xlane.f32.xlu0 %v1046
        %v1048 = vpop.xlane.xlu0 %1047
        %v1049 = vmax.f32 %v887, %v889
        %1050 = vmax.xlane.f32.xlu0 %v1049
        %v1051 = vpop.xlane.xlu0 %1050
        %v1052 = vmax.f32 %v891, %v893
        %1053 = vmax.xlane.f32.xlu0 %v1052
        %v1054 = vpop.xlane.xlu0 %1053
        %v1055 = vmax.f32 %v897, %v899
        %1056 = vmax.xlane.f32.xlu0 %v1055
        %v1057 = vpop.xlane.xlu0 %1056
        %v1058 = vmax.f32 %v901, %v903
        %1059 = vmax.xlane.f32.xlu0 %v1058
        %v1060 = vpop.xlane.xlu0 %1059
        %v1061 = vmax.f32 %v907, %v909
        %1062 = vmax.xlane.f32.xlu0 %v1061
        %v1063 = vpop.xlane.xlu0 %1062
        %v1064 = vmax.f32 %v911, %v913
        %1065 = vmax.xlane.f32.xlu0 %v1064
        %v1066 = vpop.xlane.xlu0 %1065
        %v1067 = vmax.f32 %v917, %v919
        %1068 = vmax.xlane.f32.xlu0 %v1067
        %v1069 = vpop.xlane.xlu0 %1068
        %v1070 = vmax.f32 %v921, %v923
        %1071 = vmax.xlane.f32.xlu0 %v1070
        %v1072 = vpop.xlane.xlu0 %1071
        %v1073 = vmax.f32 %v927, %v929
        %1074 = vmax.xlane.f32.xlu0 %v1073
        %v1075 = vpop.xlane.xlu0 %1074
        %v1076 = vmax.f32 %v931, %v933
        %1077 = vmax.xlane.f32.xlu0 %v1076
        %v1078 = vpop.xlane.xlu0 %1077
        %v1079 = vmax.f32 %v937, %v939
        %1080 = vmax.xlane.f32.xlu0 %v1079
        %v1081 = vpop.xlane.xlu0 %1080
        %v1082 = vmax.f32 %v941, %v943
        %1083 = vmax.xlane.f32.xlu0 %v1082
        %v1084 = vpop.xlane.xlu0 %1083
        %v1085 = vmax.f32 %v947, %v949
        %1086 = vmax.xlane.f32.xlu0 %v1085
        %v1087 = vpop.xlane.xlu0 %1086
        %v1088 = vmax.f32 %v951, %v953
        %1089 = vmax.xlane.f32.xlu0 %v1088
        %v1090 = vpop.xlane.xlu0 %1089
        %v1091 = vmax.f32 %v957, %v959
        %1092 = vmax.xlane.f32.xlu0 %v1091
        %v1093 = vpop.xlane.xlu0 %1092
        %v1094 = vmax.f32 %v961, %v963
        %1095 = vmax.xlane.f32.xlu0 %v1094
        %v1096 = vpop.xlane.xlu0 %1095
        %v1097 = vmax.f32 %v967, %v969
        %1098 = vmax.xlane.f32.xlu0 %v1097
        %v1099 = vpop.xlane.xlu0 %1098
        %v1100 = vmax.f32 %v971, %v973
        %1101 = vmax.xlane.f32.xlu0 %v1100
        %v1102 = vpop.xlane.xlu0 %1101
        %v1103 = vmax.f32 %v975, %v1009
        %v1104 = vmax.f32 %v976, %v1012
        %v1105 = vmax.f32 %v977, %v1015
        %v1106 = vmax.f32 %v978, %v1018
        %v1107 = vmax.f32 %v979, %v1021
        %v1108 = vmax.f32 %v980, %v1024
        %v1109 = vmax.f32 %v981, %v1027
        %v1110 = vmax.f32 %v982, %v1030
        %v1111 = vmax.f32 %v983, %v1033
        %v1112 = vmax.f32 %v984, %v1036
        %v1113 = vmax.f32 %v985, %v1039
        %v1114 = vmax.f32 %v986, %v1042
        %v1115 = vmax.f32 %v987, %v1045
        %v1116 = vmax.f32 %v988, %v1048
        %v1117 = vmax.f32 %v989, %v1051
        %v1118 = vmax.f32 %v990, %v1054
        %v1119 = vmax.f32 %v991, %v1057
        %v1120 = vmax.f32 %v992, %v1060
        %v1121 = vmax.f32 %v993, %v1063
        %v1122 = vmax.f32 %v994, %v1066
        %v1123 = vmax.f32 %v995, %v1069
        %v1124 = vmax.f32 %v996, %v1072
        %v1125 = vmax.f32 %v997, %v1075
        %v1126 = vmax.f32 %v998, %v1078
        %v1127 = vmax.f32 %v999, %v1081
        %v1128 = vmax.f32 %v1000, %v1084
        %v1129 = vmax.f32 %v1001, %v1087
        %v1130 = vmax.f32 %v1002, %v1090
        %v1131 = vmax.f32 %v1003, %v1093
        %v1132 = vmax.f32 %v1004, %v1096
        %v1133 = vmax.f32 %v1005, %v1099
        %v1134 = vmax.f32 %v1006, %v1102
        %v1135 = vsub.f32 %v975, %v1103
        %v1136 = vsub.f32 %v976, %v1104
        %v1137 = vsub.f32 %v977, %v1105
        %v1138 = vsub.f32 %v978, %v1106
        %v1139 = vsub.f32 %v979, %v1107
        %v1140 = vsub.f32 %v980, %v1108
        %v1141 = vsub.f32 %v981, %v1109
        %v1142 = vsub.f32 %v982, %v1110
        %v1143 = vsub.f32 %v983, %v1111
        %v1144 = vsub.f32 %v984, %v1112
        %v1145 = vsub.f32 %v985, %v1113
        %v1146 = vsub.f32 %v986, %v1114
        %v1147 = vsub.f32 %v987, %v1115
        %v1148 = vsub.f32 %v988, %v1116
        %v1149 = vsub.f32 %v989, %v1117
        %v1150 = vsub.f32 %v990, %v1118
        %v1151 = vsub.f32 %v991, %v1119
        %v1152 = vsub.f32 %v992, %v1120
        %v1153 = vsub.f32 %v993, %v1121
        %v1154 = vsub.f32 %v994, %v1122
        %v1155 = vsub.f32 %v995, %v1123
        %v1156 = vsub.f32 %v996, %v1124
        %v1157 = vsub.f32 %v997, %v1125
        %v1158 = vsub.f32 %v998, %v1126
        %v1159 = vsub.f32 %v999, %v1127
        %v1160 = vsub.f32 %v1000, %v1128
        %v1161 = vsub.f32 %v1001, %v1129
        %v1162 = vsub.f32 %v1002, %v1130
        %v1163 = vsub.f32 %v1003, %v1131
        %v1164 = vsub.f32 %v1004, %v1132
        %v1165 = vsub.f32 %v1005, %v1133
        %v1166 = vsub.f32 %v1006, %v1134
        %v1167 = vmul.f32 %v1135, 1.442695
        %v1168 = vpow.pop %v1167
        %v1169 = vmul.f32 %v1136, 1.442695
        %v1170 = vpow.pop %v1169
        %v1171 = vmul.f32 %v1137, 1.442695
        %v1172 = vpow.pop %v1171
        %v1173 = vmul.f32 %v1138, 1.442695
        %v1174 = vpow.pop %v1173
        %v1175 = vmul.f32 %v1139, 1.442695
        %v1176 = vpow.pop %v1175
        %v1177 = vmul.f32 %v1140, 1.442695
        %v1178 = vpow.pop %v1177
        %v1179 = vmul.f32 %v1141, 1.442695
        %v1180 = vpow.pop %v1179
        %v1181 = vmul.f32 %v1142, 1.442695
        %v1182 = vpow.pop %v1181
        %v1183 = vmul.f32 %v1143, 1.442695
        %v1184 = vpow.pop %v1183
        %v1185 = vmul.f32 %v1144, 1.442695
        %v1186 = vpow.pop %v1185
        %v1187 = vmul.f32 %v1145, 1.442695
        %v1188 = vpow.pop %v1187
        %v1189 = vmul.f32 %v1146, 1.442695
        %v1190 = vpow.pop %v1189
        %v1191 = vmul.f32 %v1147, 1.442695
        %v1192 = vpow.pop %v1191
        %v1193 = vmul.f32 %v1148, 1.442695
        %v1194 = vpow.pop %v1193
        %v1195 = vmul.f32 %v1149, 1.442695
        %v1196 = vpow.pop %v1195
        %v1197 = vmul.f32 %v1150, 1.442695
        %v1198 = vpow.pop %v1197
        %v1199 = vmul.f32 %v1151, 1.442695
        %v1200 = vpow.pop %v1199
        %v1201 = vmul.f32 %v1152, 1.442695
        %v1202 = vpow.pop %v1201
        %v1203 = vmul.f32 %v1153, 1.442695
        %v1204 = vpow.pop %v1203
        %v1205 = vmul.f32 %v1154, 1.442695
        %v1206 = vpow.pop %v1205
        %v1207 = vmul.f32 %v1155, 1.442695
        %v1208 = vpow.pop %v1207
        %v1209 = vmul.f32 %v1156, 1.442695
        %v1210 = vpow.pop %v1209
        %v1211 = vmul.f32 %v1157, 1.442695
        %v1212 = vpow.pop %v1211
        %v1213 = vmul.f32 %v1158, 1.442695
        %v1214 = vpow.pop %v1213
        %v1215 = vmul.f32 %v1159, 1.442695
        %v1216 = vpow.pop %v1215
        %v1217 = vmul.f32 %v1160, 1.442695
        %v1218 = vpow.pop %v1217
        %v1219 = vmul.f32 %v1161, 1.442695
        %v1220 = vpow.pop %v1219
        %v1221 = vmul.f32 %v1162, 1.442695
        %v1222 = vpow.pop %v1221
        %v1223 = vmul.f32 %v1163, 1.442695
        %v1224 = vpow.pop %v1223
        %v1225 = vmul.f32 %v1164, 1.442695
        %v1226 = vpow.pop %v1225
        %v1227 = vmul.f32 %v1165, 1.442695
        %v1228 = vpow.pop %v1227
        %v1229 = vmul.f32 %v1166, 1.442695
        %v1230 = vpow.pop %v1229
        %1232 = vset.pattern.permute.xlu0 0
        %1233 = vperm.xlu0 %1232, %v1103
        %v1234 = vpop.permute.xlu0 %1233
        %1237 = vset.pattern.permute.xlu0 0
        %1238 = vperm.xlu0 %1237, %v1104
        %v1239 = vpop.permute.xlu0 %1238
        %1242 = vset.pattern.permute.xlu0 0
        %1243 = vperm.xlu0 %1242, %v1105
        %v1244 = vpop.permute.xlu0 %1243
        %1247 = vset.pattern.permute.xlu0 0
        %1248 = vperm.xlu0 %1247, %v1106
        %v1249 = vpop.permute.xlu0 %1248
        %1252 = vset.pattern.permute.xlu0 0
        %1253 = vperm.xlu0 %1252, %v1107
        %v1254 = vpop.permute.xlu0 %1253
        %1257 = vset.pattern.permute.xlu0 0
        %1258 = vperm.xlu0 %1257, %v1108
        %v1259 = vpop.permute.xlu0 %1258
        %1262 = vset.pattern.permute.xlu0 0
        %1263 = vperm.xlu0 %1262, %v1109
        %v1264 = vpop.permute.xlu0 %1263
        %1267 = vset.pattern.permute.xlu0 0
        %1268 = vperm.xlu0 %1267, %v1110
        %v1269 = vpop.permute.xlu0 %1268
        %1272 = vset.pattern.permute.xlu0 0
        %1273 = vperm.xlu0 %1272, %v1111
        %v1274 = vpop.permute.xlu0 %1273
        %1277 = vset.pattern.permute.xlu0 0
        %1278 = vperm.xlu0 %1277, %v1112
        %v1279 = vpop.permute.xlu0 %1278
        %1282 = vset.pattern.permute.xlu0 0
        %1283 = vperm.xlu0 %1282, %v1113
        %v1284 = vpop.permute.xlu0 %1283
        %1287 = vset.pattern.permute.xlu0 0
        %1288 = vperm.xlu0 %1287, %v1114
        %v1289 = vpop.permute.xlu0 %1288
        %1292 = vset.pattern.permute.xlu0 0
        %1293 = vperm.xlu0 %1292, %v1115
        %v1294 = vpop.permute.xlu0 %1293
        %1297 = vset.pattern.permute.xlu0 0
        %1298 = vperm.xlu0 %1297, %v1116
        %v1299 = vpop.permute.xlu0 %1298
        %1302 = vset.pattern.permute.xlu0 0
        %1303 = vperm.xlu0 %1302, %v1117
        %v1304 = vpop.permute.xlu0 %1303
        %1307 = vset.pattern.permute.xlu0 0
        %1308 = vperm.xlu0 %1307, %v1118
        %v1309 = vpop.permute.xlu0 %1308
        %1312 = vset.pattern.permute.xlu0 0
        %1313 = vperm.xlu0 %1312, %v1119
        %v1314 = vpop.permute.xlu0 %1313
        %1317 = vset.pattern.permute.xlu0 0
        %1318 = vperm.xlu0 %1317, %v1120
        %v1319 = vpop.permute.xlu0 %1318
        %1322 = vset.pattern.permute.xlu0 0
        %1323 = vperm.xlu0 %1322, %v1121
        %v1324 = vpop.permute.xlu0 %1323
        %1327 = vset.pattern.permute.xlu0 0
        %1328 = vperm.xlu0 %1327, %v1122
        %v1329 = vpop.permute.xlu0 %1328
        %1332 = vset.pattern.permute.xlu0 0
        %1333 = vperm.xlu0 %1332, %v1123
        %v1334 = vpop.permute.xlu0 %1333
        %1337 = vset.pattern.permute.xlu0 0
        %1338 = vperm.xlu0 %1337, %v1124
        %v1339 = vpop.permute.xlu0 %1338
        %1342 = vset.pattern.permute.xlu0 0
        %1343 = vperm.xlu0 %1342, %v1125
        %v1344 = vpop.permute.xlu0 %1343
        %1347 = vset.pattern.permute.xlu0 0
        %1348 = vperm.xlu0 %1347, %v1126
        %v1349 = vpop.permute.xlu0 %1348
        %1352 = vset.pattern.permute.xlu0 0
        %1353 = vperm.xlu0 %1352, %v1127
        %v1354 = vpop.permute.xlu0 %1353
        %1357 = vset.pattern.permute.xlu0 0
        %1358 = vperm.xlu0 %1357, %v1128
        %v1359 = vpop.permute.xlu0 %1358
        %1362 = vset.pattern.permute.xlu0 0
        %1363 = vperm.xlu0 %1362, %v1129
        %v1364 = vpop.permute.xlu0 %1363
        %1367 = vset.pattern.permute.xlu0 0
        %1368 = vperm.xlu0 %1367, %v1130
        %v1369 = vpop.permute.xlu0 %1368
        %1372 = vset.pattern.permute.xlu0 0
        %1373 = vperm.xlu0 %1372, %v1131
        %v1374 = vpop.permute.xlu0 %1373
        %1377 = vset.pattern.permute.xlu0 0
        %1378 = vperm.xlu0 %1377, %v1132
        %v1379 = vpop.permute.xlu0 %1378
        %1382 = vset.pattern.permute.xlu0 0
        %1383 = vperm.xlu0 %1382, %v1133
        %v1384 = vpop.permute.xlu0 %1383
        %1387 = vset.pattern.permute.xlu0 0
        %1388 = vperm.xlu0 %1387, %v1134
        %v1389 = vpop.permute.xlu0 %1388
        %v1391 = vsub.f32 %v817, %v1234
        %v1392 = vsub.f32 %v819, %v1234
        %v1393 = vsub.f32 %v821, %v1239
        %v1394 = vsub.f32 %v823, %v1239
        %v1395 = vsub.f32 %v827, %v1244
        %v1396 = vsub.f32 %v829, %v1244
        %v1397 = vsub.f32 %v831, %v1249
        %v1398 = vsub.f32 %v833, %v1249
        %v1399 = vsub.f32 %v837, %v1254
        %v1400 = vsub.f32 %v839, %v1254
        %v1401 = vsub.f32 %v841, %v1259
        %v1402 = vsub.f32 %v843, %v1259
        %v1403 = vsub.f32 %v847, %v1264
        %v1404 = vsub.f32 %v849, %v1264
        %v1405 = vsub.f32 %v851, %v1269
        %v1406 = vsub.f32 %v853, %v1269
        %v1407 = vsub.f32 %v857, %v1274
        %v1408 = vsub.f32 %v859, %v1274
        %v1409 = vsub.f32 %v861, %v1279
        %v1410 = vsub.f32 %v863, %v1279
        %v1411 = vsub.f32 %v867, %v1284
        %v1412 = vsub.f32 %v869, %v1284
        %v1413 = vsub.f32 %v871, %v1289
        %v1414 = vsub.f32 %v873, %v1289
        %v1415 = vsub.f32 %v877, %v1294
        %v1416 = vsub.f32 %v879, %v1294
        %v1417 = vsub.f32 %v881, %v1299
        %v1418 = vsub.f32 %v883, %v1299
        %v1419 = vsub.f32 %v887, %v1304
        %v1420 = vsub.f32 %v889, %v1304
        %v1421 = vsub.f32 %v891, %v1309
        %v1422 = vsub.f32 %v893, %v1309
        %v1423 = vsub.f32 %v897, %v1314
        %v1424 = vsub.f32 %v899, %v1314
        %v1425 = vsub.f32 %v901, %v1319
        %v1426 = vsub.f32 %v903, %v1319
        %v1427 = vsub.f32 %v907, %v1324
        %v1428 = vsub.f32 %v909, %v1324
        %v1429 = vsub.f32 %v911, %v1329
        %v1430 = vsub.f32 %v913, %v1329
        %v1431 = vsub.f32 %v917, %v1334
        %v1432 = vsub.f32 %v919, %v1334
        %v1433 = vsub.f32 %v921, %v1339
        %v1434 = vsub.f32 %v923, %v1339
        %v1435 = vsub.f32 %v927, %v1344
        %v1436 = vsub.f32 %v929, %v1344
        %v1437 = vsub.f32 %v931, %v1349
        %v1438 = vsub.f32 %v933, %v1349
        %v1439 = vsub.f32 %v937, %v1354
        %v1440 = vsub.f32 %v939, %v1354
        %v1441 = vsub.f32 %v941, %v1359
        %v1442 = vsub.f32 %v943, %v1359
        %v1443 = vsub.f32 %v947, %v1364
        %v1444 = vsub.f32 %v949, %v1364
        %v1445 = vsub.f32 %v951, %v1369
        %v1446 = vsub.f32 %v953, %v1369
        %v1447 = vsub.f32 %v957, %v1374
        %v1448 = vsub.f32 %v959, %v1374
        %v1449 = vsub.f32 %v961, %v1379
        %v1450 = vsub.f32 %v963, %v1379
        %v1451 = vsub.f32 %v967, %v1384
        %v1452 = vsub.f32 %v969, %v1384
        %v1453 = vsub.f32 %v971, %v1389
        %v1454 = vsub.f32 %v973, %v1389
        %v1455 = vmul.f32 %v1391, 1.442695
        %v1456 = vpow.pop %v1455
        %v1457 = vmul.f32 %v1392, 1.442695
        %v1458 = vpow.pop %v1457
        %v1459 = vmul.f32 %v1393, 1.442695
        %v1460 = vpow.pop %v1459
        %v1461 = vmul.f32 %v1394, 1.442695
        %v1462 = vpow.pop %v1461
        %v1463 = vmul.f32 %v1395, 1.442695
        %v1464 = vpow.pop %v1463
        %v1465 = vmul.f32 %v1396, 1.442695
        %v1466 = vpow.pop %v1465
        %v1467 = vmul.f32 %v1397, 1.442695
        %v1468 = vpow.pop %v1467
        %v1469 = vmul.f32 %v1398, 1.442695
        %v1470 = vpow.pop %v1469
        %v1471 = vmul.f32 %v1399, 1.442695
        %v1472 = vpow.pop %v1471
        %v1473 = vmul.f32 %v1400, 1.442695
        %v1474 = vpow.pop %v1473
        %v1475 = vmul.f32 %v1401, 1.442695
        %v1476 = vpow.pop %v1475
        %v1477 = vmul.f32 %v1402, 1.442695
        %v1478 = vpow.pop %v1477
        %v1479 = vmul.f32 %v1403, 1.442695
        %v1480 = vpow.pop %v1479
        %v1481 = vmul.f32 %v1404, 1.442695
        %v1482 = vpow.pop %v1481
        %v1483 = vmul.f32 %v1405, 1.442695
        %v1484 = vpow.pop %v1483
        %v1485 = vmul.f32 %v1406, 1.442695
        %v1486 = vpow.pop %v1485
        %v1487 = vmul.f32 %v1407, 1.442695
        %v1488 = vpow.pop %v1487
        %v1489 = vmul.f32 %v1408, 1.442695
        %v1490 = vpow.pop %v1489
        %v1491 = vmul.f32 %v1409, 1.442695
        %v1492 = vpow.pop %v1491
        %v1493 = vmul.f32 %v1410, 1.442695
        %v1494 = vpow.pop %v1493
        %v1495 = vmul.f32 %v1411, 1.442695
        %v1496 = vpow.pop %v1495
        %v1497 = vmul.f32 %v1412, 1.442695
        %v1498 = vpow.pop %v1497
        %v1499 = vmul.f32 %v1413, 1.442695
        %v1500 = vpow.pop %v1499
        %v1501 = vmul.f32 %v1414, 1.442695
        %v1502 = vpow.pop %v1501
        %v1503 = vmul.f32 %v1415, 1.442695
        %v1504 = vpow.pop %v1503
        %v1505 = vmul.f32 %v1416, 1.442695
        %v1506 = vpow.pop %v1505
        %v1507 = vmul.f32 %v1417, 1.442695
        %v1508 = vpow.pop %v1507
        %v1509 = vmul.f32 %v1418, 1.442695
        %v1510 = vpow.pop %v1509
        %v1511 = vmul.f32 %v1419, 1.442695
        %v1512 = vpow.pop %v1511
        %v1513 = vmul.f32 %v1420, 1.442695
        %v1514 = vpow.pop %v1513
        %v1515 = vmul.f32 %v1421, 1.442695
        %v1516 = vpow.pop %v1515
        %v1517 = vmul.f32 %v1422, 1.442695
        %v1518 = vpow.pop %v1517
        %v1519 = vmul.f32 %v1423, 1.442695
        %v1520 = vpow.pop %v1519
        %v1521 = vmul.f32 %v1424, 1.442695
        %v1522 = vpow.pop %v1521
        %v1523 = vmul.f32 %v1425, 1.442695
        %v1524 = vpow.pop %v1523
        %v1525 = vmul.f32 %v1426, 1.442695
        %v1526 = vpow.pop %v1525
        %v1527 = vmul.f32 %v1427, 1.442695
        %v1528 = vpow.pop %v1527
        %v1529 = vmul.f32 %v1428, 1.442695
        %v1530 = vpow.pop %v1529
        %v1531 = vmul.f32 %v1429, 1.442695
        %v1532 = vpow.pop %v1531
        %v1533 = vmul.f32 %v1430, 1.442695
        %v1534 = vpow.pop %v1533
        %v1535 = vmul.f32 %v1431, 1.442695
        %v1536 = vpow.pop %v1535
        %v1537 = vmul.f32 %v1432, 1.442695
        %v1538 = vpow.pop %v1537
        %v1539 = vmul.f32 %v1433, 1.442695
        %v1540 = vpow.pop %v1539
        %v1541 = vmul.f32 %v1434, 1.442695
        %v1542 = vpow.pop %v1541
        %v1543 = vmul.f32 %v1435, 1.442695
        %v1544 = vpow.pop %v1543
        %v1545 = vmul.f32 %v1436, 1.442695
        %v1546 = vpow.pop %v1545
        %v1547 = vmul.f32 %v1437, 1.442695
        %v1548 = vpow.pop %v1547
        %v1549 = vmul.f32 %v1438, 1.442695
        %v1550 = vpow.pop %v1549
        %v1551 = vmul.f32 %v1439, 1.442695
        %v1552 = vpow.pop %v1551
        %v1553 = vmul.f32 %v1440, 1.442695
        %v1554 = vpow.pop %v1553
        %v1555 = vmul.f32 %v1441, 1.442695
        %v1556 = vpow.pop %v1555
        %v1557 = vmul.f32 %v1442, 1.442695
        %v1558 = vpow.pop %v1557
        %v1559 = vmul.f32 %v1443, 1.442695
        %v1560 = vpow.pop %v1559
        %v1561 = vmul.f32 %v1444, 1.442695
        %v1562 = vpow.pop %v1561
        %v1563 = vmul.f32 %v1445, 1.442695
        %v1564 = vpow.pop %v1563
        %v1565 = vmul.f32 %v1446, 1.442695
        %v1566 = vpow.pop %v1565
        %v1567 = vmul.f32 %v1447, 1.442695
        %v1568 = vpow.pop %v1567
        %v1569 = vmul.f32 %v1448, 1.442695
        %v1570 = vpow.pop %v1569
        %v1571 = vmul.f32 %v1449, 1.442695
        %v1572 = vpow.pop %v1571
        %v1573 = vmul.f32 %v1450, 1.442695
        %v1574 = vpow.pop %v1573
        %v1575 = vmul.f32 %v1451, 1.442695
        %v1576 = vpow.pop %v1575
        %v1577 = vmul.f32 %v1452, 1.442695
        %v1578 = vpow.pop %v1577
        %v1579 = vmul.f32 %v1453, 1.442695
        %v1580 = vpow.pop %v1579
        %v1581 = vmul.f32 %v1454, 1.442695
        %v1582 = vpow.pop %v1581
        %v1583 = vld [vmem:[#allocation3] sm:$0xff]
        %v1584 = vld [vmem:[#allocation3 + $0x8] sm:$0xff]
        %v1585 = vld [vmem:[#allocation3 + $0x10] sm:$0xff]
        %v1586 = vld [vmem:[#allocation3 + $0x18] sm:$0xff]
        %v1587 = vld [vmem:[#allocation3 + $0x20] sm:$0xff]
        %v1588 = vld [vmem:[#allocation3 + $0x28] sm:$0xff]
        %v1589 = vld [vmem:[#allocation3 + $0x30] sm:$0xff]
        %v1590 = vld [vmem:[#allocation3 + $0x38] sm:$0xff]
        %v1591 = vld [vmem:[#allocation3 + $0x40] sm:$0xff]
        %v1592 = vld [vmem:[#allocation3 + $0x48] sm:$0xff]
        %v1593 = vld [vmem:[#allocation3 + $0x50] sm:$0xff]
        %v1594 = vld [vmem:[#allocation3 + $0x58] sm:$0xff]
        %v1595 = vld [vmem:[#allocation3 + $0x60] sm:$0xff]
        %v1596 = vld [vmem:[#allocation3 + $0x68] sm:$0xff]
        %v1597 = vld [vmem:[#allocation3 + $0x70] sm:$0xff]
        %v1598 = vld [vmem:[#allocation3 + $0x78] sm:$0xff]
        %v1599 = vld [vmem:[#allocation3 + $0x80] sm:$0xff]
        %v1600 = vld [vmem:[#allocation3 + $0x88] sm:$0xff]
        %v1601 = vld [vmem:[#allocation3 + $0x90] sm:$0xff]
        %v1602 = vld [vmem:[#allocation3 + $0x98] sm:$0xff]
        %v1603 = vld [vmem:[#allocation3 + $0xa0] sm:$0xff]
        %v1604 = vld [vmem:[#allocation3 + $0xa8] sm:$0xff]
        %v1605 = vld [vmem:[#allocation3 + $0xb0] sm:$0xff]
        %v1606 = vld [vmem:[#allocation3 + $0xb8] sm:$0xff]
        %v1607 = vld [vmem:[#allocation3 + $0xc0] sm:$0xff]
        %v1608 = vld [vmem:[#allocation3 + $0xc8] sm:$0xff]
        %v1609 = vld [vmem:[#allocation3 + $0xd0] sm:$0xff]
        %v1610 = vld [vmem:[#allocation3 + $0xd8] sm:$0xff]
        %v1611 = vld [vmem:[#allocation3 + $0xe0] sm:$0xff]
        %v1612 = vld [vmem:[#allocation3 + $0xe8] sm:$0xff]
        %v1613 = vld [vmem:[#allocation3 + $0xf0] sm:$0xff]
        %v1614 = vld [vmem:[#allocation3 + $0xf8] sm:$0xff]
        %v1615 = vmul.f32 %v1168, %v1583
        %v1616 = vmul.f32 %v1170, %v1584
        %v1617 = vmul.f32 %v1172, %v1585
        %v1618 = vmul.f32 %v1174, %v1586
        %v1619 = vmul.f32 %v1176, %v1587
        %v1620 = vmul.f32 %v1178, %v1588
        %v1621 = vmul.f32 %v1180, %v1589
        %v1622 = vmul.f32 %v1182, %v1590
        %v1623 = vmul.f32 %v1184, %v1591
        %v1624 = vmul.f32 %v1186, %v1592
        %v1625 = vmul.f32 %v1188, %v1593
        %v1626 = vmul.f32 %v1190, %v1594
        %v1627 = vmul.f32 %v1192, %v1595
        %v1628 = vmul.f32 %v1194, %v1596
        %v1629 = vmul.f32 %v1196, %v1597
        %v1630 = vmul.f32 %v1198, %v1598
        %v1631 = vmul.f32 %v1200, %v1599
        %v1632 = vmul.f32 %v1202, %v1600
        %v1633 = vmul.f32 %v1204, %v1601
        %v1634 = vmul.f32 %v1206, %v1602
        %v1635 = vmul.f32 %v1208, %v1603
        %v1636 = vmul.f32 %v1210, %v1604
        %v1637 = vmul.f32 %v1212, %v1605
        %v1638 = vmul.f32 %v1214, %v1606
        %v1639 = vmul.f32 %v1216, %v1607
        %v1640 = vmul.f32 %v1218, %v1608
        %v1641 = vmul.f32 %v1220, %v1609
        %v1642 = vmul.f32 %v1222, %v1610
        %v1643 = vmul.f32 %v1224, %v1611
        %v1644 = vmul.f32 %v1226, %v1612
        %v1645 = vmul.f32 %v1228, %v1613
        %v1646 = vmul.f32 %v1230, %v1614
        %v1647 = vadd.f32 %v1456, %v1458
        %1648 = vadd.xlane.f32.xlu0 %v1647
        %v1649 = vpop.xlane.xlu0 %1648
        %v1650 = vadd.f32 %v1460, %v1462
        %1651 = vadd.xlane.f32.xlu0 %v1650
        %v1652 = vpop.xlane.xlu0 %1651
        %v1653 = vadd.f32 %v1464, %v1466
        %1654 = vadd.xlane.f32.xlu0 %v1653
        %v1655 = vpop.xlane.xlu0 %1654
        %v1656 = vadd.f32 %v1468, %v1470
        %1657 = vadd.xlane.f32.xlu0 %v1656
        %v1658 = vpop.xlane.xlu0 %1657
        %v1659 = vadd.f32 %v1472, %v1474
        %1660 = vadd.xlane.f32.xlu0 %v1659
        %v1661 = vpop.xlane.xlu0 %1660
        %v1662 = vadd.f32 %v1476, %v1478
        %1663 = vadd.xlane.f32.xlu0 %v1662
        %v1664 = vpop.xlane.xlu0 %1663
        %v1665 = vadd.f32 %v1480, %v1482
        %1666 = vadd.xlane.f32.xlu0 %v1665
        %v1667 = vpop.xlane.xlu0 %1666
        %v1668 = vadd.f32 %v1484, %v1486
        %1669 = vadd.xlane.f32.xlu0 %v1668
        %v1670 = vpop.xlane.xlu0 %1669
        %v1671 = vadd.f32 %v1488, %v1490
        %1672 = vadd.xlane.f32.xlu0 %v1671
        %v1673 = vpop.xlane.xlu0 %1672
        %v1674 = vadd.f32 %v1492, %v1494
        %1675 = vadd.xlane.f32.xlu0 %v1674
        %v1676 = vpop.xlane.xlu0 %1675
        %v1677 = vadd.f32 %v1496, %v1498
        %1678 = vadd.xlane.f32.xlu0 %v1677
        %v1679 = vpop.xlane.xlu0 %1678
        %v1680 = vadd.f32 %v1500, %v1502
        %1681 = vadd.xlane.f32.xlu0 %v1680
        %v1682 = vpop.xlane.xlu0 %1681
        %v1683 = vadd.f32 %v1504, %v1506
        %1684 = vadd.xlane.f32.xlu0 %v1683
        %v1685 = vpop.xlane.xlu0 %1684
        %v1686 = vadd.f32 %v1508, %v1510
        %1687 = vadd.xlane.f32.xlu0 %v1686
        %v1688 = vpop.xlane.xlu0 %1687
        %v1689 = vadd.f32 %v1512, %v1514
        %1690 = vadd.xlane.f32.xlu0 %v1689
        %v1691 = vpop.xlane.xlu0 %1690
        %v1692 = vadd.f32 %v1516, %v1518
        %1693 = vadd.xlane.f32.xlu0 %v1692
        %v1694 = vpop.xlane.xlu0 %1693
        %v1695 = vadd.f32 %v1520, %v1522
        %1696 = vadd.xlane.f32.xlu0 %v1695
        %v1697 = vpop.xlane.xlu0 %1696
        %v1698 = vadd.f32 %v1524, %v1526
        %1699 = vadd.xlane.f32.xlu0 %v1698
        %v1700 = vpop.xlane.xlu0 %1699
        %v1701 = vadd.f32 %v1528, %v1530
        %1702 = vadd.xlane.f32.xlu0 %v1701
        %v1703 = vpop.xlane.xlu0 %1702
        %v1704 = vadd.f32 %v1532, %v1534
        %1705 = vadd.xlane.f32.xlu0 %v1704
        %v1706 = vpop.xlane.xlu0 %1705
        %v1707 = vadd.f32 %v1536, %v1538
        %1708 = vadd.xlane.f32.xlu0 %v1707
        %v1709 = vpop.xlane.xlu0 %1708
        %v1710 = vadd.f32 %v1540, %v1542
        %1711 = vadd.xlane.f32.xlu0 %v1710
        %v1712 = vpop.xlane.xlu0 %1711
        %v1713 = vadd.f32 %v1544, %v1546
        %1714 = vadd.xlane.f32.xlu0 %v1713
        %v1715 = vpop.xlane.xlu0 %1714
        %v1716 = vadd.f32 %v1548, %v1550
        %1717 = vadd.xlane.f32.xlu0 %v1716
        %v1718 = vpop.xlane.xlu0 %1717
        %v1719 = vadd.f32 %v1552, %v1554
        %1720 = vadd.xlane.f32.xlu0 %v1719
        %v1721 = vpop.xlane.xlu0 %1720
        %v1722 = vadd.f32 %v1556, %v1558
        %1723 = vadd.xlane.f32.xlu0 %v1722
        %v1724 = vpop.xlane.xlu0 %1723
        %v1725 = vadd.f32 %v1560, %v1562
        %1726 = vadd.xlane.f32.xlu0 %v1725
        %v1727 = vpop.xlane.xlu0 %1726
        %v1728 = vadd.f32 %v1564, %v1566
        %1729 = vadd.xlane.f32.xlu0 %v1728
        %v1730 = vpop.xlane.xlu0 %1729
        %v1731 = vadd.f32 %v1568, %v1570
        %1732 = vadd.xlane.f32.xlu0 %v1731
        %v1733 = vpop.xlane.xlu0 %1732
        %v1734 = vadd.f32 %v1572, %v1574
        %1735 = vadd.xlane.f32.xlu0 %v1734
        %v1736 = vpop.xlane.xlu0 %1735
        %v1737 = vadd.f32 %v1576, %v1578
        %1738 = vadd.xlane.f32.xlu0 %v1737
        %v1739 = vpop.xlane.xlu0 %1738
        %v1740 = vadd.f32 %v1580, %v1582
        %1741 = vadd.xlane.f32.xlu0 %v1740
        %v1742 = vpop.xlane.xlu0 %1741
        %v1743 = vadd.f32 %v1615, %v1649
        %v1744 = vadd.f32 %v1616, %v1652
        %v1745 = vadd.f32 %v1617, %v1655
        %v1746 = vadd.f32 %v1618, %v1658
        %v1747 = vadd.f32 %v1619, %v1661
        %v1748 = vadd.f32 %v1620, %v1664
        %v1749 = vadd.f32 %v1621, %v1667
        %v1750 = vadd.f32 %v1622, %v1670
        %v1751 = vadd.f32 %v1623, %v1673
        %v1752 = vadd.f32 %v1624, %v1676
        %v1753 = vadd.f32 %v1625, %v1679
        %v1754 = vadd.f32 %v1626, %v1682
        %v1755 = vadd.f32 %v1627, %v1685
        %v1756 = vadd.f32 %v1628, %v1688
        %v1757 = vadd.f32 %v1629, %v1691
        %v1758 = vadd.f32 %v1630, %v1694
        %v1759 = vadd.f32 %v1631, %v1697
        %v1760 = vadd.f32 %v1632, %v1700
        %v1761 = vadd.f32 %v1633, %v1703
        %v1762 = vadd.f32 %v1634, %v1706
        %v1763 = vadd.f32 %v1635, %v1709
        %v1764 = vadd.f32 %v1636, %v1712
        %v1765 = vadd.f32 %v1637, %v1715
        %v1766 = vadd.f32 %v1638, %v1718
        %v1767 = vadd.f32 %v1639, %v1721
        %v1768 = vadd.f32 %v1640, %v1724
        %v1769 = vadd.f32 %v1641, %v1727
        %v1770 = vadd.f32 %v1642, %v1730
        %v1771 = vadd.f32 %v1643, %v1733
        %v1772 = vadd.f32 %v1644, %v1736
        %v1773 = vadd.f32 %v1645, %v1739
        %v1774 = vadd.f32 %v1646, %v1742
        %vm1775 = vcmask 7168
        %1776 = vst.msk [vmem:[#allocation3] sm:$0xff] %vm1775, %v1743
        %1777 = vst.msk [vmem:[#allocation3 + $0x8] sm:$0xff] %vm1775, %v1744
        %1778 = vst.msk [vmem:[#allocation3 + $0x10] sm:$0xff] %vm1775, %v1745
        %1779 = vst.msk [vmem:[#allocation3 + $0x18] sm:$0xff] %vm1775, %v1746
        %1780 = vst.msk [vmem:[#allocation3 + $0x20] sm:$0xff] %vm1775, %v1747
        %1781 = vst.msk [vmem:[#allocation3 + $0x28] sm:$0xff] %vm1775, %v1748
        %1782 = vst.msk [vmem:[#allocation3 + $0x30] sm:$0xff] %vm1775, %v1749
        %1783 = vst.msk [vmem:[#allocation3 + $0x38] sm:$0xff] %vm1775, %v1750
        %1784 = vst.msk [vmem:[#allocation3 + $0x40] sm:$0xff] %vm1775, %v1751
        %1785 = vst.msk [vmem:[#allocation3 + $0x48] sm:$0xff] %vm1775, %v1752
        %1786 = vst.msk [vmem:[#allocation3 + $0x50] sm:$0xff] %vm1775, %v1753
        %1787 = vst.msk [vmem:[#allocation3 + $0x58] sm:$0xff] %vm1775, %v1754
        %1788 = vst.msk [vmem:[#allocation3 + $0x60] sm:$0xff] %vm1775, %v1755
        %1789 = vst.msk [vmem:[#allocation3 + $0x68] sm:$0xff] %vm1775, %v1756
        %1790 = vst.msk [vmem:[#allocation3 + $0x70] sm:$0xff] %vm1775, %v1757
        %1791 = vst.msk [vmem:[#allocation3 + $0x78] sm:$0xff] %vm1775, %v1758
        %1792 = vst.msk [vmem:[#allocation3 + $0x80] sm:$0xff] %vm1775, %v1759
        %1793 = vst.msk [vmem:[#allocation3 + $0x88] sm:$0xff] %vm1775, %v1760
        %1794 = vst.msk [vmem:[#allocation3 + $0x90] sm:$0xff] %vm1775, %v1761
        %1795 = vst.msk [vmem:[#allocation3 + $0x98] sm:$0xff] %vm1775, %v1762
        %1796 = vst.msk [vmem:[#allocation3 + $0xa0] sm:$0xff] %vm1775, %v1763
        %1797 = vst.msk [vmem:[#allocation3 + $0xa8] sm:$0xff] %vm1775, %v1764
        %1798 = vst.msk [vmem:[#allocation3 + $0xb0] sm:$0xff] %vm1775, %v1765
        %1799 = vst.msk [vmem:[#allocation3 + $0xb8] sm:$0xff] %vm1775, %v1766
        %1800 = vst.msk [vmem:[#allocation3 + $0xc0] sm:$0xff] %vm1775, %v1767
        %1801 = vst.msk [vmem:[#allocation3 + $0xc8] sm:$0xff] %vm1775, %v1768
        %1802 = vst.msk [vmem:[#allocation3 + $0xd0] sm:$0xff] %vm1775, %v1769
        %1803 = vst.msk [vmem:[#allocation3 + $0xd8] sm:$0xff] %vm1775, %v1770
        %1804 = vst.msk [vmem:[#allocation3 + $0xe0] sm:$0xff] %vm1775, %v1771
        %1805 = vst.msk [vmem:[#allocation3 + $0xe8] sm:$0xff] %vm1775, %v1772
        %1806 = vst.msk [vmem:[#allocation3 + $0xf0] sm:$0xff] %vm1775, %v1773
        %1807 = vst.msk [vmem:[#allocation3 + $0xf8] sm:$0xff] %vm1775, %v1774
        %v1808 = vld [vmem:[#allocation4] sm:$0xff]
        %v1809 = vld [vmem:[#allocation4 + $0x8] sm:$0xff]
        %v1810 = vld [vmem:[#allocation4 + $0x10] sm:$0xff]
        %v1811 = vld [vmem:[#allocation4 + $0x18] sm:$0xff]
        %v1812 = vld [vmem:[#allocation4 + $0x20] sm:$0xff]
        %v1813 = vld [vmem:[#allocation4 + $0x28] sm:$0xff]
        %v1814 = vld [vmem:[#allocation4 + $0x30] sm:$0xff]
        %v1815 = vld [vmem:[#allocation4 + $0x38] sm:$0xff]
        %v1816 = vld [vmem:[#allocation4 + $0x40] sm:$0xff]
        %v1817 = vld [vmem:[#allocation4 + $0x48] sm:$0xff]
        %v1818 = vld [vmem:[#allocation4 + $0x50] sm:$0xff]
        %v1819 = vld [vmem:[#allocation4 + $0x58] sm:$0xff]
        %v1820 = vld [vmem:[#allocation4 + $0x60] sm:$0xff]
        %v1821 = vld [vmem:[#allocation4 + $0x68] sm:$0xff]
        %v1822 = vld [vmem:[#allocation4 + $0x70] sm:$0xff]
        %v1823 = vld [vmem:[#allocation4 + $0x78] sm:$0xff]
        %v1824 = vld [vmem:[#allocation4 + $0x80] sm:$0xff]
        %v1825 = vld [vmem:[#allocation4 + $0x88] sm:$0xff]
        %v1826 = vld [vmem:[#allocation4 + $0x90] sm:$0xff]
        %v1827 = vld [vmem:[#allocation4 + $0x98] sm:$0xff]
        %v1828 = vld [vmem:[#allocation4 + $0xa0] sm:$0xff]
        %v1829 = vld [vmem:[#allocation4 + $0xa8] sm:$0xff]
        %v1830 = vld [vmem:[#allocation4 + $0xb0] sm:$0xff]
        %v1831 = vld [vmem:[#allocation4 + $0xb8] sm:$0xff]
        %v1832 = vld [vmem:[#allocation4 + $0xc0] sm:$0xff]
        %v1833 = vld [vmem:[#allocation4 + $0xc8] sm:$0xff]
        %v1834 = vld [vmem:[#allocation4 + $0xd0] sm:$0xff]
        %v1835 = vld [vmem:[#allocation4 + $0xd8] sm:$0xff]
        %v1836 = vld [vmem:[#allocation4 + $0xe0] sm:$0xff]
        %v1837 = vld [vmem:[#allocation4 + $0xe8] sm:$0xff]
        %v1838 = vld [vmem:[#allocation4 + $0xf0] sm:$0xff]
        %v1839 = vld [vmem:[#allocation4 + $0xf8] sm:$0xff]
        %1841 = vset.pattern.permute.xlu0 0
        %1842 = vperm.xlu0 %1841, %v1168
        %v1843 = vpop.permute.xlu0 %1842
        %1846 = vset.pattern.permute.xlu0 0
        %1847 = vperm.xlu0 %1846, %v1170
        %v1848 = vpop.permute.xlu0 %1847
        %1851 = vset.pattern.permute.xlu0 0
        %1852 = vperm.xlu0 %1851, %v1172
        %v1853 = vpop.permute.xlu0 %1852
        %1856 = vset.pattern.permute.xlu0 0
        %1857 = vperm.xlu0 %1856, %v1174
        %v1858 = vpop.permute.xlu0 %1857
        %1861 = vset.pattern.permute.xlu0 0
        %1862 = vperm.xlu0 %1861, %v1176
        %v1863 = vpop.permute.xlu0 %1862
        %1866 = vset.pattern.permute.xlu0 0
        %1867 = vperm.xlu0 %1866, %v1178
        %v1868 = vpop.permute.xlu0 %1867
        %1871 = vset.pattern.permute.xlu0 0
        %1872 = vperm.xlu0 %1871, %v1180
        %v1873 = vpop.permute.xlu0 %1872
        %1876 = vset.pattern.permute.xlu0 0
        %1877 = vperm.xlu0 %1876, %v1182
        %v1878 = vpop.permute.xlu0 %1877
        %1881 = vset.pattern.permute.xlu0 0
        %1882 = vperm.xlu0 %1881, %v1184
        %v1883 = vpop.permute.xlu0 %1882
        %1886 = vset.pattern.permute.xlu0 0
        %1887 = vperm.xlu0 %1886, %v1186
        %v1888 = vpop.permute.xlu0 %1887
        %1891 = vset.pattern.permute.xlu0 0
        %1892 = vperm.xlu0 %1891, %v1188
        %v1893 = vpop.permute.xlu0 %1892
        %1896 = vset.pattern.permute.xlu0 0
        %1897 = vperm.xlu0 %1896, %v1190
        %v1898 = vpop.permute.xlu0 %1897
        %1901 = vset.pattern.permute.xlu0 0
        %1902 = vperm.xlu0 %1901, %v1192
        %v1903 = vpop.permute.xlu0 %1902
        %1906 = vset.pattern.permute.xlu0 0
        %1907 = vperm.xlu0 %1906, %v1194
        %v1908 = vpop.permute.xlu0 %1907
        %1911 = vset.pattern.permute.xlu0 0
        %1912 = vperm.xlu0 %1911, %v1196
        %v1913 = vpop.permute.xlu0 %1912
        %1916 = vset.pattern.permute.xlu0 0
        %1917 = vperm.xlu0 %1916, %v1198
        %v1918 = vpop.permute.xlu0 %1917
        %1921 = vset.pattern.permute.xlu0 0
        %1922 = vperm.xlu0 %1921, %v1200
        %v1923 = vpop.permute.xlu0 %1922
        %1926 = vset.pattern.permute.xlu0 0
        %1927 = vperm.xlu0 %1926, %v1202
        %v1928 = vpop.permute.xlu0 %1927
        %1931 = vset.pattern.permute.xlu0 0
        %1932 = vperm.xlu0 %1931, %v1204
        %v1933 = vpop.permute.xlu0 %1932
        %1936 = vset.pattern.permute.xlu0 0
        %1937 = vperm.xlu0 %1936, %v1206
        %v1938 = vpop.permute.xlu0 %1937
        %1941 = vset.pattern.permute.xlu0 0
        %1942 = vperm.xlu0 %1941, %v1208
        %v1943 = vpop.permute.xlu0 %1942
        %1946 = vset.pattern.permute.xlu0 0
        %1947 = vperm.xlu0 %1946, %v1210
        %v1948 = vpop.permute.xlu0 %1947
        %1951 = vset.pattern.permute.xlu0 0
        %1952 = vperm.xlu0 %1951, %v1212
        %v1953 = vpop.permute.xlu0 %1952
        %1956 = vset.pattern.permute.xlu0 0
        %1957 = vperm.xlu0 %1956, %v1214
        %v1958 = vpop.permute.xlu0 %1957
        %1961 = vset.pattern.permute.xlu0 0
        %1962 = vperm.xlu0 %1961, %v1216
        %v1963 = vpop.permute.xlu0 %1962
        %1966 = vset.pattern.permute.xlu0 0
        %1967 = vperm.xlu0 %1966, %v1218
        %v1968 = vpop.permute.xlu0 %1967
        %1971 = vset.pattern.permute.xlu0 0
        %1972 = vperm.xlu0 %1971, %v1220
        %v1973 = vpop.permute.xlu0 %1972
        %1976 = vset.pattern.permute.xlu0 0
        %1977 = vperm.xlu0 %1976, %v1222
        %v1978 = vpop.permute.xlu0 %1977
        %1981 = vset.pattern.permute.xlu0 0
        %1982 = vperm.xlu0 %1981, %v1224
        %v1983 = vpop.permute.xlu0 %1982
        %1986 = vset.pattern.permute.xlu0 0
        %1987 = vperm.xlu0 %1986, %v1226
        %v1988 = vpop.permute.xlu0 %1987
        %1991 = vset.pattern.permute.xlu0 0
        %1992 = vperm.xlu0 %1991, %v1228
        %v1993 = vpop.permute.xlu0 %1992
        %1996 = vset.pattern.permute.xlu0 0
        %1997 = vperm.xlu0 %1996, %v1230
        %v1998 = vpop.permute.xlu0 %1997
        %v2000 = vmul.f32 %v1843, %v1808
        %v2001 = vmul.f32 %v1848, %v1809
        %v2002 = vmul.f32 %v1853, %v1810
        %v2003 = vmul.f32 %v1858, %v1811
        %v2004 = vmul.f32 %v1863, %v1812
        %v2005 = vmul.f32 %v1868, %v1813
        %v2006 = vmul.f32 %v1873, %v1814
        %v2007 = vmul.f32 %v1878, %v1815
        %v2008 = vmul.f32 %v1883, %v1816
        %v2009 = vmul.f32 %v1888, %v1817
        %v2010 = vmul.f32 %v1893, %v1818
        %v2011 = vmul.f32 %v1898, %v1819
        %v2012 = vmul.f32 %v1903, %v1820
        %v2013 = vmul.f32 %v1908, %v1821
        %v2014 = vmul.f32 %v1913, %v1822
        %v2015 = vmul.f32 %v1918, %v1823
        %v2016 = vmul.f32 %v1923, %v1824
        %v2017 = vmul.f32 %v1928, %v1825
        %v2018 = vmul.f32 %v1933, %v1826
        %v2019 = vmul.f32 %v1938, %v1827
        %v2020 = vmul.f32 %v1943, %v1828
        %v2021 = vmul.f32 %v1948, %v1829
        %v2022 = vmul.f32 %v1953, %v1830
        %v2023 = vmul.f32 %v1958, %v1831
        %v2024 = vmul.f32 %v1963, %v1832
        %v2025 = vmul.f32 %v1968, %v1833
        %v2026 = vmul.f32 %v1973, %v1834
        %v2027 = vmul.f32 %v1978, %v1835
        %v2028 = vmul.f32 %v1983, %v1836
        %v2029 = vmul.f32 %v1988, %v1837
        %v2030 = vmul.f32 %v1993, %v1838
        %v2031 = vmul.f32 %v1998, %v1839
        %v2032 = vpack.c.bf16 %v1460, %v1456
        %v2033 = vpack.c.bf16 %v1462, %v1458
        %v2034 = vpack.c.bf16 %v1468, %v1464
        %v2035 = vpack.c.bf16 %v1470, %v1466
        %v2036 = vpack.c.bf16 %v1476, %v1472
        %v2037 = vpack.c.bf16 %v1478, %v1474
        %v2038 = vpack.c.bf16 %v1484, %v1480
        %v2039 = vpack.c.bf16 %v1486, %v1482
        %v2040 = vpack.c.bf16 %v1492, %v1488
        %v2041 = vpack.c.bf16 %v1494, %v1490
        %v2042 = vpack.c.bf16 %v1500, %v1496
        %v2043 = vpack.c.bf16 %v1502, %v1498
        %v2044 = vpack.c.bf16 %v1508, %v1504
        %v2045 = vpack.c.bf16 %v1510, %v1506
        %v2046 = vpack.c.bf16 %v1516, %v1512
        %v2047 = vpack.c.bf16 %v1518, %v1514
        %v2048 = vpack.c.bf16 %v1524, %v1520
        %v2049 = vpack.c.bf16 %v1526, %v1522
        %v2050 = vpack.c.bf16 %v1532, %v1528
        %v2051 = vpack.c.bf16 %v1534, %v1530
        %v2052 = vpack.c.bf16 %v1540, %v1536
        %v2053 = vpack.c.bf16 %v1542, %v1538
        %v2054 = vpack.c.bf16 %v1548, %v1544
        %v2055 = vpack.c.bf16 %v1550, %v1546
        %v2056 = vpack.c.bf16 %v1556, %v1552
        %v2057 = vpack.c.bf16 %v1558, %v1554
        %v2058 = vpack.c.bf16 %v1564, %v1560
        %v2059 = vpack.c.bf16 %v1566, %v1562
        %v2060 = vpack.c.bf16 %v1572, %v1568
        %v2061 = vpack.c.bf16 %v1574, %v1570
        %v2062 = vpack.c.bf16 %v1580, %v1576
        %v2063 = vpack.c.bf16 %v1582, %v1578
        %v2064 = vld [vmem:[%s411] sm:$0xf]
        %v2065 = vld [vmem:[%s411 + $0x4] sm:$0xf]
        %v2066 = vld [vmem:[%s411 + $0x8] sm:$0xf]
        %v2067 = vld [vmem:[%s411 + $0xc] sm:$0xf]
        %v2068 = vld [vmem:[%s411 + $0x10] sm:$0xf]
        %v2069 = vld [vmem:[%s411 + $0x14] sm:$0xf]
        %v2070 = vld [vmem:[%s411 + $0x18] sm:$0xf]
        %v2071 = vld [vmem:[%s411 + $0x1c] sm:$0xf]
        %v2072 = vld [vmem:[%s411 + $0x20] sm:$0xf]
        %v2073 = vld [vmem:[%s411 + $0x24] sm:$0xf]
        %v2074 = vld [vmem:[%s411 + $0x28] sm:$0xf]
        %v2075 = vld [vmem:[%s411 + $0x2c] sm:$0xf]
        %v2076 = vld [vmem:[%s411 + $0x30] sm:$0xf]
        %v2077 = vld [vmem:[%s411 + $0x34] sm:$0xf]
        %v2078 = vld [vmem:[%s411 + $0x38] sm:$0xf]
        %v2079 = vld [vmem:[%s411 + $0x3c] sm:$0xf]
        %v2080 = vld [vmem:[%s411 + $0x40] sm:$0xf]
        %v2081 = vld [vmem:[%s411 + $0x44] sm:$0xf]
        %v2082 = vld [vmem:[%s411 + $0x48] sm:$0xf]
        %v2083 = vld [vmem:[%s411 + $0x4c] sm:$0xf]
        %v2084 = vld [vmem:[%s411 + $0x50] sm:$0xf]
        %v2085 = vld [vmem:[%s411 + $0x54] sm:$0xf]
        %v2086 = vld [vmem:[%s411 + $0x58] sm:$0xf]
        %v2087 = vld [vmem:[%s411 + $0x5c] sm:$0xf]
        %v2088 = vld [vmem:[%s411 + $0x60] sm:$0xf]
        %v2089 = vld [vmem:[%s411 + $0x64] sm:$0xf]
        %v2090 = vld [vmem:[%s411 + $0x68] sm:$0xf]
        %v2091 = vld [vmem:[%s411 + $0x6c] sm:$0xf]
        %v2092 = vld [vmem:[%s411 + $0x70] sm:$0xf]
        %v2093 = vld [vmem:[%s411 + $0x74] sm:$0xf]
        %v2094 = vld [vmem:[%s411 + $0x78] sm:$0xf]
        %v2095 = vld [vmem:[%s411 + $0x7c] sm:$0xf]
        %v2128 = vunpack.c.l.b16 %v2064
        %v2129 = vunpack.c.l.b16 %v2065
        %v2130 = vunpack.c.l.b16 %v2066
        %v2131 = vunpack.c.l.b16 %v2067
        %v2132 = vunpack.c.l.b16 %v2068
        %v2133 = vunpack.c.l.b16 %v2069
        %v2134 = vunpack.c.l.b16 %v2070
        %v2135 = vunpack.c.l.b16 %v2071
        %v2136 = vunpack.c.l.b16 %v2072
        %v2137 = vunpack.c.l.b16 %v2073
        %v2138 = vunpack.c.l.b16 %v2074
        %v2139 = vunpack.c.l.b16 %v2075
        %v2140 = vunpack.c.l.b16 %v2076
        %v2141 = vunpack.c.l.b16 %v2077
        %v2142 = vunpack.c.l.b16 %v2078
        %v2143 = vunpack.c.l.b16 %v2079
        %v2144 = vunpack.c.l.b16 %v2080
        %v2145 = vunpack.c.l.b16 %v2081
        %v2146 = vunpack.c.l.b16 %v2082
        %v2147 = vunpack.c.l.b16 %v2083
        %v2148 = vunpack.c.l.b16 %v2084
        %v2149 = vunpack.c.l.b16 %v2085
        %v2150 = vunpack.c.l.b16 %v2086
        %v2151 = vunpack.c.l.b16 %v2087
        %v2152 = vunpack.c.l.b16 %v2088
        %v2153 = vunpack.c.l.b16 %v2089
        %v2154 = vunpack.c.l.b16 %v2090
        %v2155 = vunpack.c.l.b16 %v2091
        %v2156 = vunpack.c.l.b16 %v2092
        %v2157 = vunpack.c.l.b16 %v2093
        %v2158 = vunpack.c.l.b16 %v2094
        %v2159 = vunpack.c.l.b16 %v2095
        %v2160 = vpack.c.b16 %v2129, %v2128
        %v2161 = vpack.c.b16 %v2131, %v2130
        %v2162 = vpack.c.b16 %v2133, %v2132
        %v2163 = vpack.c.b16 %v2135, %v2134
        %v2164 = vpack.c.b16 %v2137, %v2136
        %v2165 = vpack.c.b16 %v2139, %v2138
        %v2166 = vpack.c.b16 %v2141, %v2140
        %v2167 = vpack.c.b16 %v2143, %v2142
        %v2168 = vpack.c.b16 %v2145, %v2144
        %v2169 = vpack.c.b16 %v2147, %v2146
        %v2170 = vpack.c.b16 %v2149, %v2148
        %v2171 = vpack.c.b16 %v2151, %v2150
        %v2172 = vpack.c.b16 %v2153, %v2152
        %v2173 = vpack.c.b16 %v2155, %v2154
        %v2174 = vpack.c.b16 %v2157, %v2156
        %v2175 = vpack.c.b16 %v2159, %v2158
        %2192 = vmatprep.subr.bf16.mxu0 0
        %2193 = vmatpush1.bf16.msra.mxu0 %v2160
        %2194 = vmatprep.subr.bf16.mxu0 0
        %2195 = vmatpush1.bf16.msra.mxu0 %v2161
        %2196 = vmatprep.subr.bf16.mxu0 0
        %2197 = vmatpush1.bf16.msra.mxu0 %v2162
        %2198 = vmatprep.subr.bf16.mxu0 0
        %2199 = vmatpush1.bf16.msra.mxu0 %v2163
        %2200 = vmatprep.subr.bf16.mxu0 0
        %2201 = vmatpush1.bf16.msra.mxu0 %v2164
        %2202 = vmatprep.subr.bf16.mxu0 0
        %2203 = vmatpush1.bf16.msra.mxu0 %v2165
        %2204 = vmatprep.subr.bf16.mxu0 0
        %2205 = vmatpush1.bf16.msra.mxu0 %v2166
        %2206 = vmatprep.subr.bf16.mxu0 0
        %2207 = vmatpush1.bf16.msra.mxu0 %v2167
        %2208 = vmatprep.subr.bf16.mxu0 0
        %2209 = vmatpush1.bf16.msra.mxu0 %v2168
        %2210 = vmatprep.subr.bf16.mxu0 0
        %2211 = vmatpush1.bf16.msra.mxu0 %v2169
        %2212 = vmatprep.subr.bf16.mxu0 0
        %2213 = vmatpush1.bf16.msra.mxu0 %v2170
        %2214 = vmatprep.subr.bf16.mxu0 0
        %2215 = vmatpush1.bf16.msra.mxu0 %v2171
        %2216 = vmatprep.subr.bf16.mxu0 0
        %2217 = vmatpush1.bf16.msra.mxu0 %v2172
        %2218 = vmatprep.subr.bf16.mxu0 0
        %2219 = vmatpush1.bf16.msra.mxu0 %v2173
        %2220 = vmatprep.subr.bf16.mxu0 0
        %2221 = vmatpush1.bf16.msra.mxu0 %v2174
        %2222 = vmatprep.subr.bf16.mxu0 0
        %2223 = vmatpush1.bf16.msra.mxu0 %v2175
        %2224 = vmatprep.mubr.bf16.mxu0 %v2033
        %2225 = vmatmul.mubr.bf16.gmra.mrb[0].mxu0 %v2032
        %v2226 = vpop.f32.mrb[0].mxu0
        %v2227 = vadd.f32 0.0, %v2226
        %v2228 = vpop.f32.mrb[0].mxu0
        %v2229 = vpop.f32.mrb[0].mxu0
        %v2230 = vadd.f32 0.0, %v2229
        %v2231 = vpop.f32.mrb[0].mxu0
        %2232 = vmatprep.mubr.bf16.mxu0 %v2035
        %2233 = vmatmul.mubr.bf16.gmra.mrb[0].mxu0 %v2034
        %v2234 = vpop.f32.mrb[0].mxu0
        %v2235 = vadd.f32 0.0, %v2234
        %v2236 = vpop.f32.mrb[0].mxu0
        %v2237 = vpop.f32.mrb[0].mxu0
        %v2238 = vadd.f32 0.0, %v2237
        %v2239 = vpop.f32.mrb[0].mxu0
        %2240 = vmatprep.mubr.bf16.mxu0 %v2037
        %2241 = vmatmul.mubr.bf16.gmra.mrb[0].mxu0 %v2036
        %v2242 = vpop.f32.mrb[0].mxu0
        %v2243 = vadd.f32 0.0, %v2242
        %v2244 = vpop.f32.mrb[0].mxu0
        %v2245 = vpop.f32.mrb[0].mxu0
        %v2246 = vadd.f32 0.0, %v2245
        %v2247 = vpop.f32.mrb[0].mxu0
        %2248 = vmatprep.mubr.bf16.mxu0 %v2039
        %2249 = vmatmul.mubr.bf16.gmra.mrb[0].mxu0 %v2038
        %v2250 = vpop.f32.mrb[0].mxu0
        %v2251 = vadd.f32 0.0, %v2250
        %v2252 = vpop.f32.mrb[0].mxu0
        %v2253 = vpop.f32.mrb[0].mxu0
        %v2254 = vadd.f32 0.0, %v2253
        %v2255 = vpop.f32.mrb[0].mxu0
        %2256 = vmatprep.mubr.bf16.mxu0 %v2041
        %2257 = vmatmul.mubr.bf16.gmra.mrb[0].mxu0 %v2040
        %v2258 = vpop.f32.mrb[0].mxu0
        %v2259 = vadd.f32 0.0, %v2258
        %v2260 = vpop.f32.mrb[0].mxu0
        %v2261 = vpop.f32.mrb[0].mxu0
        %v2262 = vadd.f32 0.0, %v2261
        %v2263 = vpop.f32.mrb[0].mxu0
        %2264 = vmatprep.mubr.bf16.mxu0 %v2043
        %2265 = vmatmul.mubr.bf16.gmra.mrb[0].mxu0 %v2042
        %v2266 = vpop.f32.mrb[0].mxu0
        %v2267 = vadd.f32 0.0, %v2266
        %v2268 = vpop.f32.mrb[0].mxu0
        %v2269 = vpop.f32.mrb[0].mxu0
        %v2270 = vadd.f32 0.0, %v2269
        %v2271 = vpop.f32.mrb[0].mxu0
        %2272 = vmatprep.mubr.bf16.mxu0 %v2045
        %2273 = vmatmul.mubr.bf16.gmra.mrb[0].mxu0 %v2044
        %v2274 = vpop.f32.mrb[0].mxu0
        %v2275 = vadd.f32 0.0, %v2274
        %v2276 = vpop.f32.mrb[0].mxu0
        %v2277 = vpop.f32.mrb[0].mxu0
        %v2278 = vadd.f32 0.0, %v2277
        %v2279 = vpop.f32.mrb[0].mxu0
        %2280 = vmatprep.mubr.bf16.mxu0 %v2047
        %2281 = vmatmul.mubr.bf16.gmra.mrb[0].mxu0 %v2046
        %v2282 = vpop.f32.mrb[0].mxu0
        %v2283 = vadd.f32 0.0, %v2282
        %v2284 = vpop.f32.mrb[0].mxu0
        %v2285 = vpop.f32.mrb[0].mxu0
        %v2286 = vadd.f32 0.0, %v2285
        %v2287 = vpop.f32.mrb[0].mxu0
        %2288 = vmatprep.mubr.bf16.mxu0 %v2049
        %2289 = vmatmul.mubr.bf16.gmra.mrb[0].mxu0 %v2048
        %v2290 = vpop.f32.mrb[0].mxu0
        %v2291 = vadd.f32 0.0, %v2290
        %v2292 = vpop.f32.mrb[0].mxu0
        %v2293 = vpop.f32.mrb[0].mxu0
        %v2294 = vadd.f32 0.0, %v2293
        %v2295 = vpop.f32.mrb[0].mxu0
        %2296 = vmatprep.mubr.bf16.mxu0 %v2051
        %2297 = vmatmul.mubr.bf16.gmra.mrb[0].mxu0 %v2050
        %v2298 = vpop.f32.mrb[0].mxu0
        %v2299 = vadd.f32 0.0, %v2298
        %v2300 = vpop.f32.mrb[0].mxu0
        %v2301 = vpop.f32.mrb[0].mxu0
        %v2302 = vadd.f32 0.0, %v2301
        %v2303 = vpop.f32.mrb[0].mxu0
        %2304 = vmatprep.mubr.bf16.mxu0 %v2053
        %2305 = vmatmul.mubr.bf16.gmra.mrb[0].mxu0 %v2052
        %v2306 = vpop.f32.mrb[0].mxu0
        %v2307 = vadd.f32 0.0, %v2306
        %v2308 = vpop.f32.mrb[0].mxu0
        %v2309 = vpop.f32.mrb[0].mxu0
        %v2310 = vadd.f32 0.0, %v2309
        %v2311 = vpop.f32.mrb[0].mxu0
        %2312 = vmatprep.mubr.bf16.mxu0 %v2055
        %2313 = vmatmul.mubr.bf16.gmra.mrb[0].mxu0 %v2054
        %v2314 = vpop.f32.mrb[0].mxu0
        %v2315 = vadd.f32 0.0, %v2314
        %v2316 = vpop.f32.mrb[0].mxu0
        %v2317 = vpop.f32.mrb[0].mxu0
        %v2318 = vadd.f32 0.0, %v2317
        %v2319 = vpop.f32.mrb[0].mxu0
        %2320 = vmatprep.mubr.bf16.mxu0 %v2057
        %2321 = vmatmul.mubr.bf16.gmra.mrb[0].mxu0 %v2056
        %v2322 = vpop.f32.mrb[0].mxu0
        %v2323 = vadd.f32 0.0, %v2322
        %v2324 = vpop.f32.mrb[0].mxu0
        %v2325 = vpop.f32.mrb[0].mxu0
        %v2326 = vadd.f32 0.0, %v2325
        %v2327 = vpop.f32.mrb[0].mxu0
        %2328 = vmatprep.mubr.bf16.mxu0 %v2059
        %2329 = vmatmul.mubr.bf16.gmra.mrb[0].mxu0 %v2058
        %v2330 = vpop.f32.mrb[0].mxu0
        %v2331 = vadd.f32 0.0, %v2330
        %v2332 = vpop.f32.mrb[0].mxu0
        %v2333 = vpop.f32.mrb[0].mxu0
        %v2334 = vadd.f32 0.0, %v2333
        %v2335 = vpop.f32.mrb[0].mxu0
        %2336 = vmatprep.mubr.bf16.mxu0 %v2061
        %2337 = vmatmul.mubr.bf16.gmra.mrb[0].mxu0 %v2060
        %v2338 = vpop.f32.mrb[0].mxu0
        %v2339 = vadd.f32 0.0, %v2338
        %v2340 = vpop.f32.mrb[0].mxu0
        %v2341 = vpop.f32.mrb[0].mxu0
        %v2342 = vadd.f32 0.0, %v2341
        %v2343 = vpop.f32.mrb[0].mxu0
        %2344 = vmatprep.mubr.bf16.mxu0 %v2063
        %2345 = vmatmul.mubr.bf16.gmra.mrb[0].mxu0 %v2062
        %v2346 = vpop.f32.mrb[0].mxu0
        %v2347 = vadd.f32 0.0, %v2346
        %v2348 = vpop.f32.mrb[0].mxu0
        %v2349 = vpop.f32.mrb[0].mxu0
        %v2350 = vadd.f32 0.0, %v2349
        %v2351 = vpop.f32.mrb[0].mxu0
        %2352 = vdwg.mxu0
        %v2353 = vadd.f32 %v2000, %v2227
        %v2354 = vadd.f32 %v2001, %v2230
        %v2355 = vadd.f32 %v2002, %v2235
        %v2356 = vadd.f32 %v2003, %v2238
        %v2357 = vadd.f32 %v2004, %v2243
        %v2358 = vadd.f32 %v2005, %v2246
        %v2359 = vadd.f32 %v2006, %v2251
        %v2360 = vadd.f32 %v2007, %v2254
        %v2361 = vadd.f32 %v2008, %v2259
        %v2362 = vadd.f32 %v2009, %v2262
        %v2363 = vadd.f32 %v2010, %v2267
        %v2364 = vadd.f32 %v2011, %v2270
        %v2365 = vadd.f32 %v2012, %v2275
        %v2366 = vadd.f32 %v2013, %v2278
        %v2367 = vadd.f32 %v2014, %v2283
        %v2368 = vadd.f32 %v2015, %v2286
        %v2369 = vadd.f32 %v2016, %v2291
        %v2370 = vadd.f32 %v2017, %v2294
        %v2371 = vadd.f32 %v2018, %v2299
        %v2372 = vadd.f32 %v2019, %v2302
        %v2373 = vadd.f32 %v2020, %v2307
        %v2374 = vadd.f32 %v2021, %v2310
        %v2375 = vadd.f32 %v2022, %v2315
        %v2376 = vadd.f32 %v2023, %v2318
        %v2377 = vadd.f32 %v2024, %v2323
        %v2378 = vadd.f32 %v2025, %v2326
        %v2379 = vadd.f32 %v2026, %v2331
        %v2380 = vadd.f32 %v2027, %v2334
        %v2381 = vadd.f32 %v2028, %v2339
        %v2382 = vadd.f32 %v2029, %v2342
        %v2383 = vadd.f32 %v2030, %v2347
        %v2384 = vadd.f32 %v2031, %v2350
        %2385 = vst [vmem:[#allocation4] sm:$0xff] %v2353
        %2386 = vst [vmem:[#allocation4 + $0x8] sm:$0xff] %v2354
        %2387 = vst [vmem:[#allocation4 + $0x10] sm:$0xff] %v2355
        %2388 = vst [vmem:[#allocation4 + $0x18] sm:$0xff] %v2356
        %2389 = vst [vmem:[#allocation4 + $0x20] sm:$0xff] %v2357
        %2390 = vst [vmem:[#allocation4 + $0x28] sm:$0xff] %v2358
        %2391 = vst [vmem:[#allocation4 + $0x30] sm:$0xff] %v2359
        %2392 = vst [vmem:[#allocation4 + $0x38] sm:$0xff] %v2360
        %2393 = vst [vmem:[#allocation4 + $0x40] sm:$0xff] %v2361
        %2394 = vst [vmem:[#allocation4 + $0x48] sm:$0xff] %v2362
        %2395 = vst [vmem:[#allocation4 + $0x50] sm:$0xff] %v2363
        %2396 = vst [vmem:[#allocation4 + $0x58] sm:$0xff] %v2364
        %2397 = vst [vmem:[#allocation4 + $0x60] sm:$0xff] %v2365
        %2398 = vst [vmem:[#allocation4 + $0x68] sm:$0xff] %v2366
        %2399 = vst [vmem:[#allocation4 + $0x70] sm:$0xff] %v2367
        %2400 = vst [vmem:[#allocation4 + $0x78] sm:$0xff] %v2368
        %2401 = vst [vmem:[#allocation4 + $0x80] sm:$0xff] %v2369
        %2402 = vst [vmem:[#allocation4 + $0x88] sm:$0xff] %v2370
        %2403 = vst [vmem:[#allocation4 + $0x90] sm:$0xff] %v2371
        %2404 = vst [vmem:[#allocation4 + $0x98] sm:$0xff] %v2372
        %2405 = vst [vmem:[#allocation4 + $0xa0] sm:$0xff] %v2373
        %2406 = vst [vmem:[#allocation4 + $0xa8] sm:$0xff] %v2374
        %2407 = vst [vmem:[#allocation4 + $0xb0] sm:$0xff] %v2375
        %2408 = vst [vmem:[#allocation4 + $0xb8] sm:$0xff] %v2376
        %2409 = vst [vmem:[#allocation4 + $0xc0] sm:$0xff] %v2377
        %2410 = vst [vmem:[#allocation4 + $0xc8] sm:$0xff] %v2378
        %2411 = vst [vmem:[#allocation4 + $0xd0] sm:$0xff] %v2379
        %2412 = vst [vmem:[#allocation4 + $0xd8] sm:$0xff] %v2380
        %2413 = vst [vmem:[#allocation4 + $0xe0] sm:$0xff] %v2381
        %2414 = vst [vmem:[#allocation4 + $0xe8] sm:$0xff] %v2382
        %2415 = vst [vmem:[#allocation4 + $0xf0] sm:$0xff] %v2383
        %2416 = vst [vmem:[#allocation4 + $0xf8] sm:$0xff] %v2384
        %2417 = vst.msk [vmem:[#allocation2] sm:$0xff] %vm1775, %v1103
        %2418 = vst.msk [vmem:[#allocation2 + $0x8] sm:$0xff] %vm1775, %v1104
        %2419 = vst.msk [vmem:[#allocation2 + $0x10] sm:$0xff] %vm1775, %v1105
        %2420 = vst.msk [vmem:[#allocation2 + $0x18] sm:$0xff] %vm1775, %v1106
        %2421 = vst.msk [vmem:[#allocation2 + $0x20] sm:$0xff] %vm1775, %v1107
        %2422 = vst.msk [vmem:[#allocation2 + $0x28] sm:$0xff] %vm1775, %v1108
        %2423 = vst.msk [vmem:[#allocation2 + $0x30] sm:$0xff] %vm1775, %v1109
        %2424 = vst.msk [vmem:[#allocation2 + $0x38] sm:$0xff] %vm1775, %v1110
        %2425 = vst.msk [vmem:[#allocation2 + $0x40] sm:$0xff] %vm1775, %v1111
        %2426 = vst.msk [vmem:[#allocation2 + $0x48] sm:$0xff] %vm1775, %v1112
        %2427 = vst.msk [vmem:[#allocation2 + $0x50] sm:$0xff] %vm1775, %v1113
        %2428 = vst.msk [vmem:[#allocation2 + $0x58] sm:$0xff] %vm1775, %v1114
        %2429 = vst.msk [vmem:[#allocation2 + $0x60] sm:$0xff] %vm1775, %v1115
        %2430 = vst.msk [vmem:[#allocation2 + $0x68] sm:$0xff] %vm1775, %v1116
        %2431 = vst.msk [vmem:[#allocation2 + $0x70] sm:$0xff] %vm1775, %v1117
        %2432 = vst.msk [vmem:[#allocation2 + $0x78] sm:$0xff] %vm1775, %v1118
        %2433 = vst.msk [vmem:[#allocation2 + $0x80] sm:$0xff] %vm1775, %v1119
        %2434 = vst.msk [vmem:[#allocation2 + $0x88] sm:$0xff] %vm1775, %v1120
        %2435 = vst.msk [vmem:[#allocation2 + $0x90] sm:$0xff] %vm1775, %v1121
        %2436 = vst.msk [vmem:[#allocation2 + $0x98] sm:$0xff] %vm1775, %v1122
        %2437 = vst.msk [vmem:[#allocation2 + $0xa0] sm:$0xff] %vm1775, %v1123
        %2438 = vst.msk [vmem:[#allocation2 + $0xa8] sm:$0xff] %vm1775, %v1124
        %2439 = vst.msk [vmem:[#allocation2 + $0xb0] sm:$0xff] %vm1775, %v1125
        %2440 = vst.msk [vmem:[#allocation2 + $0xb8] sm:$0xff] %vm1775, %v1126
        %2441 = vst.msk [vmem:[#allocation2 + $0xc0] sm:$0xff] %vm1775, %v1127
        %2442 = vst.msk [vmem:[#allocation2 + $0xc8] sm:$0xff] %vm1775, %v1128
        %2443 = vst.msk [vmem:[#allocation2 + $0xd0] sm:$0xff] %vm1775, %v1129
        %2444 = vst.msk [vmem:[#allocation2 + $0xd8] sm:$0xff] %vm1775, %v1130
        %2445 = vst.msk [vmem:[#allocation2 + $0xe0] sm:$0xff] %vm1775, %v1131
        %2446 = vst.msk [vmem:[#allocation2 + $0xe8] sm:$0xff] %vm1775, %v1132
        %2447 = vst.msk [vmem:[#allocation2 + $0xf0] sm:$0xff] %vm1775, %v1133
        %2448 = vst.msk [vmem:[#allocation2 + $0xf8] sm:$0xff] %vm1775, %v1134
        // Predicated region
        $region53: #{self_attention_forward.3} parent=47 // pred_check
          %p2449 = pneg %p425
        $region54: #{self_attention_forward.3} parent=47 // pred_check_branch
          %2451 = sbr.rel (%p2449) target = $region56
        $region55: #{self_attention_forward.3} parent=47 // pred_region
          %v2452 = vld [vmem:[#allocation3] sm:$0xff]
          %v2453 = vld [vmem:[#allocation3 + $0x8] sm:$0xff]
          %v2454 = vld [vmem:[#allocation3 + $0x10] sm:$0xff]
          %v2455 = vld [vmem:[#allocation3 + $0x18] sm:$0xff]
          %v2456 = vld [vmem:[#allocation3 + $0x20] sm:$0xff]
          %v2457 = vld [vmem:[#allocation3 + $0x28] sm:$0xff]
          %v2458 = vld [vmem:[#allocation3 + $0x30] sm:$0xff]
          %v2459 = vld [vmem:[#allocation3 + $0x38] sm:$0xff]
          %v2460 = vld [vmem:[#allocation3 + $0x40] sm:$0xff]
          %v2461 = vld [vmem:[#allocation3 + $0x48] sm:$0xff]
          %v2462 = vld [vmem:[#allocation3 + $0x50] sm:$0xff]
          %v2463 = vld [vmem:[#allocation3 + $0x58] sm:$0xff]
          %v2464 = vld [vmem:[#allocation3 + $0x60] sm:$0xff]
          %v2465 = vld [vmem:[#allocation3 + $0x68] sm:$0xff]
          %v2466 = vld [vmem:[#allocation3 + $0x70] sm:$0xff]
          %v2467 = vld [vmem:[#allocation3 + $0x78] sm:$0xff]
          %v2468 = vld [vmem:[#allocation3 + $0x80] sm:$0xff]
          %v2469 = vld [vmem:[#allocation3 + $0x88] sm:$0xff]
          %v2470 = vld [vmem:[#allocation3 + $0x90] sm:$0xff]
          %v2471 = vld [vmem:[#allocation3 + $0x98] sm:$0xff]
          %v2472 = vld [vmem:[#allocation3 + $0xa0] sm:$0xff]
          %v2473 = vld [vmem:[#allocation3 + $0xa8] sm:$0xff]
          %v2474 = vld [vmem:[#allocation3 + $0xb0] sm:$0xff]
          %v2475 = vld [vmem:[#allocation3 + $0xb8] sm:$0xff]
          %v2476 = vld [vmem:[#allocation3 + $0xc0] sm:$0xff]
          %v2477 = vld [vmem:[#allocation3 + $0xc8] sm:$0xff]
          %v2478 = vld [vmem:[#allocation3 + $0xd0] sm:$0xff]
          %v2479 = vld [vmem:[#allocation3 + $0xd8] sm:$0xff]
          %v2480 = vld [vmem:[#allocation3 + $0xe0] sm:$0xff]
          %v2481 = vld [vmem:[#allocation3 + $0xe8] sm:$0xff]
          %v2482 = vld [vmem:[#allocation3 + $0xf0] sm:$0xff]
          %v2483 = vld [vmem:[#allocation3 + $0xf8] sm:$0xff]
          %v2484 = vrcp.pop %v2452
          %v2485 = vrcp.pop %v2453
          %v2486 = vrcp.pop %v2454
          %v2487 = vrcp.pop %v2455
          %v2488 = vrcp.pop %v2456
          %v2489 = vrcp.pop %v2457
          %v2490 = vrcp.pop %v2458
          %v2491 = vrcp.pop %v2459
          %v2492 = vrcp.pop %v2460
          %v2493 = vrcp.pop %v2461
          %v2494 = vrcp.pop %v2462
          %v2495 = vrcp.pop %v2463
          %v2496 = vrcp.pop %v2464
          %v2497 = vrcp.pop %v2465
          %v2498 = vrcp.pop %v2466
          %v2499 = vrcp.pop %v2467
          %v2500 = vrcp.pop %v2468
          %v2501 = vrcp.pop %v2469
          %v2502 = vrcp.pop %v2470
          %v2503 = vrcp.pop %v2471
          %v2504 = vrcp.pop %v2472
          %v2505 = vrcp.pop %v2473
          %v2506 = vrcp.pop %v2474
          %v2507 = vrcp.pop %v2475
          %v2508 = vrcp.pop %v2476
          %v2509 = vrcp.pop %v2477
          %v2510 = vrcp.pop %v2478
          %v2511 = vrcp.pop %v2479
          %v2512 = vrcp.pop %v2480
          %v2513 = vrcp.pop %v2481
          %v2514 = vrcp.pop %v2482
          %v2515 = vrcp.pop %v2483
          %v2516 = vld [vmem:[#allocation4] sm:$0xff]
          %v2517 = vld [vmem:[#allocation4 + $0x8] sm:$0xff]
          %v2518 = vld [vmem:[#allocation4 + $0x10] sm:$0xff]
          %v2519 = vld [vmem:[#allocation4 + $0x18] sm:$0xff]
          %v2520 = vld [vmem:[#allocation4 + $0x20] sm:$0xff]
          %v2521 = vld [vmem:[#allocation4 + $0x28] sm:$0xff]
          %v2522 = vld [vmem:[#allocation4 + $0x30] sm:$0xff]
          %v2523 = vld [vmem:[#allocation4 + $0x38] sm:$0xff]
          %v2524 = vld [vmem:[#allocation4 + $0x40] sm:$0xff]
          %v2525 = vld [vmem:[#allocation4 + $0x48] sm:$0xff]
          %v2526 = vld [vmem:[#allocation4 + $0x50] sm:$0xff]
          %v2527 = vld [vmem:[#allocation4 + $0x58] sm:$0xff]
          %v2528 = vld [vmem:[#allocation4 + $0x60] sm:$0xff]
          %v2529 = vld [vmem:[#allocation4 + $0x68] sm:$0xff]
          %v2530 = vld [vmem:[#allocation4 + $0x70] sm:$0xff]
          %v2531 = vld [vmem:[#allocation4 + $0x78] sm:$0xff]
          %v2532 = vld [vmem:[#allocation4 + $0x80] sm:$0xff]
          %v2533 = vld [vmem:[#allocation4 + $0x88] sm:$0xff]
          %v2534 = vld [vmem:[#allocation4 + $0x90] sm:$0xff]
          %v2535 = vld [vmem:[#allocation4 + $0x98] sm:$0xff]
          %v2536 = vld [vmem:[#allocation4 + $0xa0] sm:$0xff]
          %v2537 = vld [vmem:[#allocation4 + $0xa8] sm:$0xff]
          %v2538 = vld [vmem:[#allocation4 + $0xb0] sm:$0xff]
          %v2539 = vld [vmem:[#allocation4 + $0xb8] sm:$0xff]
          %v2540 = vld [vmem:[#allocation4 + $0xc0] sm:$0xff]
          %v2541 = vld [vmem:[#allocation4 + $0xc8] sm:$0xff]
          %v2542 = vld [vmem:[#allocation4 + $0xd0] sm:$0xff]
          %v2543 = vld [vmem:[#allocation4 + $0xd8] sm:$0xff]
          %v2544 = vld [vmem:[#allocation4 + $0xe0] sm:$0xff]
          %v2545 = vld [vmem:[#allocation4 + $0xe8] sm:$0xff]
          %v2546 = vld [vmem:[#allocation4 + $0xf0] sm:$0xff]
          %v2547 = vld [vmem:[#allocation4 + $0xf8] sm:$0xff]
          %2549 = vset.pattern.permute.xlu0 0
          %2550 = vperm.xlu0 %2549, %v2484
          %v2551 = vpop.permute.xlu0 %2550
          %2554 = vset.pattern.permute.xlu0 0
          %2555 = vperm.xlu0 %2554, %v2485
          %v2556 = vpop.permute.xlu0 %2555
          %2559 = vset.pattern.permute.xlu0 0
          %2560 = vperm.xlu0 %2559, %v2486
          %v2561 = vpop.permute.xlu0 %2560
          %2564 = vset.pattern.permute.xlu0 0
          %2565 = vperm.xlu0 %2564, %v2487
          %v2566 = vpop.permute.xlu0 %2565
          %2569 = vset.pattern.permute.xlu0 0
          %2570 = vperm.xlu0 %2569, %v2488
          %v2571 = vpop.permute.xlu0 %2570
          %2574 = vset.pattern.permute.xlu0 0
          %2575 = vperm.xlu0 %2574, %v2489
          %v2576 = vpop.permute.xlu0 %2575
          %2579 = vset.pattern.permute.xlu0 0
          %2580 = vperm.xlu0 %2579, %v2490
          %v2581 = vpop.permute.xlu0 %2580
          %2584 = vset.pattern.permute.xlu0 0
          %2585 = vperm.xlu0 %2584, %v2491
          %v2586 = vpop.permute.xlu0 %2585
          %2589 = vset.pattern.permute.xlu0 0
          %2590 = vperm.xlu0 %2589, %v2492
          %v2591 = vpop.permute.xlu0 %2590
          %2594 = vset.pattern.permute.xlu0 0
          %2595 = vperm.xlu0 %2594, %v2493
          %v2596 = vpop.permute.xlu0 %2595
          %2599 = vset.pattern.permute.xlu0 0
          %2600 = vperm.xlu0 %2599, %v2494
          %v2601 = vpop.permute.xlu0 %2600
          %2604 = vset.pattern.permute.xlu0 0
          %2605 = vperm.xlu0 %2604, %v2495
          %v2606 = vpop.permute.xlu0 %2605
          %2609 = vset.pattern.permute.xlu0 0
          %2610 = vperm.xlu0 %2609, %v2496
          %v2611 = vpop.permute.xlu0 %2610
          %2614 = vset.pattern.permute.xlu0 0
          %2615 = vperm.xlu0 %2614, %v2497
          %v2616 = vpop.permute.xlu0 %2615
          %2619 = vset.pattern.permute.xlu0 0
          %2620 = vperm.xlu0 %2619, %v2498
          %v2621 = vpop.permute.xlu0 %2620
          %2624 = vset.pattern.permute.xlu0 0
          %2625 = vperm.xlu0 %2624, %v2499
          %v2626 = vpop.permute.xlu0 %2625
          %2629 = vset.pattern.permute.xlu0 0
          %2630 = vperm.xlu0 %2629, %v2500
          %v2631 = vpop.permute.xlu0 %2630
          %2634 = vset.pattern.permute.xlu0 0
          %2635 = vperm.xlu0 %2634, %v2501
          %v2636 = vpop.permute.xlu0 %2635
          %2639 = vset.pattern.permute.xlu0 0
          %2640 = vperm.xlu0 %2639, %v2502
          %v2641 = vpop.permute.xlu0 %2640
          %2644 = vset.pattern.permute.xlu0 0
          %2645 = vperm.xlu0 %2644, %v2503
          %v2646 = vpop.permute.xlu0 %2645
          %2649 = vset.pattern.permute.xlu0 0
          %2650 = vperm.xlu0 %2649, %v2504
          %v2651 = vpop.permute.xlu0 %2650
          %2654 = vset.pattern.permute.xlu0 0
          %2655 = vperm.xlu0 %2654, %v2505
          %v2656 = vpop.permute.xlu0 %2655
          %2659 = vset.pattern.permute.xlu0 0
          %2660 = vperm.xlu0 %2659, %v2506
          %v2661 = vpop.permute.xlu0 %2660
          %2664 = vset.pattern.permute.xlu0 0
          %2665 = vperm.xlu0 %2664, %v2507
          %v2666 = vpop.permute.xlu0 %2665
          %2669 = vset.pattern.permute.xlu0 0
          %2670 = vperm.xlu0 %2669, %v2508
          %v2671 = vpop.permute.xlu0 %2670
          %2674 = vset.pattern.permute.xlu0 0
          %2675 = vperm.xlu0 %2674, %v2509
          %v2676 = vpop.permute.xlu0 %2675
          %2679 = vset.pattern.permute.xlu0 0
          %2680 = vperm.xlu0 %2679, %v2510
          %v2681 = vpop.permute.xlu0 %2680
          %2684 = vset.pattern.permute.xlu0 0
          %2685 = vperm.xlu0 %2684, %v2511
          %v2686 = vpop.permute.xlu0 %2685
          %2689 = vset.pattern.permute.xlu0 0
          %2690 = vperm.xlu0 %2689, %v2512
          %v2691 = vpop.permute.xlu0 %2690
          %2694 = vset.pattern.permute.xlu0 0
          %2695 = vperm.xlu0 %2694, %v2513
          %v2696 = vpop.permute.xlu0 %2695
          %2699 = vset.pattern.permute.xlu0 0
          %2700 = vperm.xlu0 %2699, %v2514
          %v2701 = vpop.permute.xlu0 %2700
          %2704 = vset.pattern.permute.xlu0 0
          %2705 = vperm.xlu0 %2704, %v2515
          %v2706 = vpop.permute.xlu0 %2705
          %v2708 = vmul.f32 %v2516, %v2551
          %v2709 = vmul.f32 %v2517, %v2556
          %v2710 = vmul.f32 %v2518, %v2561
          %v2711 = vmul.f32 %v2519, %v2566
          %v2712 = vmul.f32 %v2520, %v2571
          %v2713 = vmul.f32 %v2521, %v2576
          %v2714 = vmul.f32 %v2522, %v2581
          %v2715 = vmul.f32 %v2523, %v2586
          %v2716 = vmul.f32 %v2524, %v2591
          %v2717 = vmul.f32 %v2525, %v2596
          %v2718 = vmul.f32 %v2526, %v2601
          %v2719 = vmul.f32 %v2527, %v2606
          %v2720 = vmul.f32 %v2528, %v2611
          %v2721 = vmul.f32 %v2529, %v2616
          %v2722 = vmul.f32 %v2530, %v2621
          %v2723 = vmul.f32 %v2531, %v2626
          %v2724 = vmul.f32 %v2532, %v2631
          %v2725 = vmul.f32 %v2533, %v2636
          %v2726 = vmul.f32 %v2534, %v2641
          %v2727 = vmul.f32 %v2535, %v2646
          %v2728 = vmul.f32 %v2536, %v2651
          %v2729 = vmul.f32 %v2537, %v2656
          %v2730 = vmul.f32 %v2538, %v2661
          %v2731 = vmul.f32 %v2539, %v2666
          %v2732 = vmul.f32 %v2540, %v2671
          %v2733 = vmul.f32 %v2541, %v2676
          %v2734 = vmul.f32 %v2542, %v2681
          %v2735 = vmul.f32 %v2543, %v2686
          %v2736 = vmul.f32 %v2544, %v2691
          %v2737 = vmul.f32 %v2545, %v2696
          %v2738 = vmul.f32 %v2546, %v2701
          %v2739 = vmul.f32 %v2547, %v2706
          %v2740 = vpack.c.bf16 %v2709, %v2708
          %v2741 = vpack.c.bf16 %v2711, %v2710
          %v2742 = vpack.c.bf16 %v2713, %v2712
          %v2743 = vpack.c.bf16 %v2715, %v2714
          %v2744 = vpack.c.bf16 %v2717, %v2716
          %v2745 = vpack.c.bf16 %v2719, %v2718
          %v2746 = vpack.c.bf16 %v2721, %v2720
          %v2747 = vpack.c.bf16 %v2723, %v2722
          %v2748 = vpack.c.bf16 %v2725, %v2724
          %v2749 = vpack.c.bf16 %v2727, %v2726
          %v2750 = vpack.c.bf16 %v2729, %v2728
          %v2751 = vpack.c.bf16 %v2731, %v2730
          %v2752 = vpack.c.bf16 %v2733, %v2732
          %v2753 = vpack.c.bf16 %v2735, %v2734
          %v2754 = vpack.c.bf16 %v2737, %v2736
          %v2755 = vpack.c.bf16 %v2739, %v2738
          %v2756 = vld [vmem:[%s4] sm:$0xf]
          %v2757 = vld [vmem:[%s4 + $0x4] sm:$0xf]
          %v2758 = vld [vmem:[%s4 + $0x8] sm:$0xf]
          %v2759 = vld [vmem:[%s4 + $0xc] sm:$0xf]
          %v2760 = vld [vmem:[%s4 + $0x10] sm:$0xf]
          %v2761 = vld [vmem:[%s4 + $0x14] sm:$0xf]
          %v2762 = vld [vmem:[%s4 + $0x18] sm:$0xf]
          %v2763 = vld [vmem:[%s4 + $0x1c] sm:$0xf]
          %v2764 = vld [vmem:[%s4 + $0x20] sm:$0xf]
          %v2765 = vld [vmem:[%s4 + $0x24] sm:$0xf]
          %v2766 = vld [vmem:[%s4 + $0x28] sm:$0xf]
          %v2767 = vld [vmem:[%s4 + $0x2c] sm:$0xf]
          %v2768 = vld [vmem:[%s4 + $0x30] sm:$0xf]
          %v2769 = vld [vmem:[%s4 + $0x34] sm:$0xf]
          %v2770 = vld [vmem:[%s4 + $0x38] sm:$0xf]
          %v2771 = vld [vmem:[%s4 + $0x3c] sm:$0xf]
          %v2772 = vld [vmem:[%s5] sm:$0x1]
          %v2774 = vlaneseq
          %v2775 = vshrl.u32 %v2774, 7
          %v2776 = vsub.s32 0, %v2775
          %v2777 = vrot.slane %v2772, %v2776
          %v2795 = vunpack.c.l.b16 %v2756
          %v2796 = vunpack.c.l.b16 %v2757
          %v2797 = vunpack.c.l.b16 %v2758
          %v2798 = vunpack.c.l.b16 %v2759
          %v2799 = vunpack.c.l.b16 %v2760
          %v2800 = vunpack.c.l.b16 %v2761
          %v2801 = vunpack.c.l.b16 %v2762
          %v2802 = vunpack.c.l.b16 %v2763
          %v2803 = vunpack.c.l.b16 %v2764
          %v2804 = vunpack.c.l.b16 %v2765
          %v2805 = vunpack.c.l.b16 %v2766
          %v2806 = vunpack.c.l.b16 %v2767
          %v2807 = vunpack.c.l.b16 %v2768
          %v2808 = vunpack.c.l.b16 %v2769
          %v2809 = vunpack.c.l.b16 %v2770
          %v2810 = vunpack.c.l.b16 %v2771
          %v2811 = vpack.c.b16 %v2796, %v2795
          %v2812 = vpack.c.b16 %v2798, %v2797
          %v2813 = vpack.c.b16 %v2800, %v2799
          %v2814 = vpack.c.b16 %v2802, %v2801
          %v2815 = vpack.c.b16 %v2804, %v2803
          %v2816 = vpack.c.b16 %v2806, %v2805
          %v2817 = vpack.c.b16 %v2808, %v2807
          %v2818 = vpack.c.b16 %v2810, %v2809
          %2827 = vmatprep.subr.bf16.mxu0 0
          %2828 = vmatpush1.bf16.msra.mxu0 %v2811
          %2829 = vmatprep.subr.bf16.mxu0 0
          %2830 = vmatpush1.bf16.msra.mxu0 %v2812
          %2831 = vmatprep.subr.bf16.mxu0 0
          %2832 = vmatpush1.bf16.msra.mxu0 %v2813
          %2833 = vmatprep.subr.bf16.mxu0 0
          %2834 = vmatpush1.bf16.msra.mxu0 %v2814
          %2835 = vmatprep.subr.bf16.mxu0 0
          %2836 = vmatpush1.bf16.msra.mxu0 %v2815
          %2837 = vmatprep.subr.bf16.mxu0 0
          %2838 = vmatpush1.bf16.msra.mxu0 %v2816
          %2839 = vmatprep.subr.bf16.mxu0 0
          %2840 = vmatpush1.bf16.msra.mxu0 %v2817
          %2841 = vmatprep.subr.bf16.mxu0 0
          %2842 = vmatpush1.bf16.msra.mxu0 %v2818
          %2843 = vmatprep.subr.bf16.mxu0 0
          %2844 = vmatpush1.bf16.msra.mxu0 0
          %2845 = vmatprep.subr.bf16.mxu0 0
          %2846 = vmatpush1.bf16.msra.mxu0 0
          %2847 = vmatprep.subr.bf16.mxu0 0
          %2848 = vmatpush1.bf16.msra.mxu0 0
          %2849 = vmatprep.subr.bf16.mxu0 0
          %2850 = vmatpush1.bf16.msra.mxu0 0
          %2851 = vmatprep.subr.bf16.mxu0 0
          %2852 = vmatpush1.bf16.msra.mxu0 0
          %2853 = vmatprep.subr.bf16.mxu0 0
          %2854 = vmatpush1.bf16.msra.mxu0 0
          %2855 = vmatprep.subr.bf16.mxu0 0
          %2856 = vmatpush1.bf16.msra.mxu0 0
          %2857 = vmatprep.subr.bf16.mxu0 0
          %2858 = vmatpush1.bf16.msra.mxu0 0
          %2859 = vmatprep.mubr.bf16.mxu0 0
          %2860 = vmatmul.mubr.bf16.gmra.mrb[0].mxu0 %v2740
          %v2861 = vpop.f32.mrb[0].mxu0
          %v2862 = vadd.f32 %v2777, %v2861
          %v2863 = vpop.f32.mrb[0].mxu0
          %v2864 = vpop.f32.mrb[0].mxu0
          %v2865 = vadd.f32 %v2777, %v2864
          %v2866 = vpop.f32.mrb[0].mxu0
          %2867 = vmatprep.mubr.bf16.mxu0 0
          %2868 = vmatmul.mubr.bf16.gmra.mrb[0].mxu0 %v2741
          %v2869 = vpop.f32.mrb[0].mxu0
          %v2870 = vadd.f32 %v2777, %v2869
          %v2871 = vpop.f32.mrb[0].mxu0
          %v2872 = vpop.f32.mrb[0].mxu0
          %v2873 = vadd.f32 %v2777, %v2872
          %v2874 = vpop.f32.mrb[0].mxu0
          %2875 = vmatprep.mubr.bf16.mxu0 0
          %2876 = vmatmul.mubr.bf16.gmra.mrb[0].mxu0 %v2742
          %v2877 = vpop.f32.mrb[0].mxu0
          %v2878 = vadd.f32 %v2777, %v2877
          %v2879 = vpop.f32.mrb[0].mxu0
          %v2880 = vpop.f32.mrb[0].mxu0
          %v2881 = vadd.f32 %v2777, %v2880
          %v2882 = vpop.f32.mrb[0].mxu0
          %2883 = vmatprep.mubr.bf16.mxu0 0
          %2884 = vmatmul.mubr.bf16.gmra.mrb[0].mxu0 %v2743
          %v2885 = vpop.f32.mrb[0].mxu0
          %v2886 = vadd.f32 %v2777, %v2885
          %v2887 = vpop.f32.mrb[0].mxu0
          %v2888 = vpop.f32.mrb[0].mxu0
          %v2889 = vadd.f32 %v2777, %v2888
          %v2890 = vpop.f32.mrb[0].mxu0
          %2891 = vmatprep.mubr.bf16.mxu0 0
          %2892 = vmatmul.mubr.bf16.gmra.mrb[0].mxu0 %v2744
          %v2893 = vpop.f32.mrb[0].mxu0
          %v2894 = vadd.f32 %v2777, %v2893
          %v2895 = vpop.f32.mrb[0].mxu0
          %v2896 = vpop.f32.mrb[0].mxu0
          %v2897 = vadd.f32 %v2777, %v2896
          %v2898 = vpop.f32.mrb[0].mxu0
          %2899 = vmatprep.mubr.bf16.mxu0 0
          %2900 = vmatmul.mubr.bf16.gmra.mrb[0].mxu0 %v2745
          %v2901 = vpop.f32.mrb[0].mxu0
          %v2902 = vadd.f32 %v2777, %v2901
          %v2903 = vpop.f32.mrb[0].mxu0
          %v2904 = vpop.f32.mrb[0].mxu0
          %v2905 = vadd.f32 %v2777, %v2904
          %v2906 = vpop.f32.mrb[0].mxu0
          %2907 = vmatprep.mubr.bf16.mxu0 0
          %2908 = vmatmul.mubr.bf16.gmra.mrb[0].mxu0 %v2746
          %v2909 = vpop.f32.mrb[0].mxu0
          %v2910 = vadd.f32 %v2777, %v2909
          %v2911 = vpop.f32.mrb[0].mxu0
          %v2912 = vpop.f32.mrb[0].mxu0
          %v2913 = vadd.f32 %v2777, %v2912
          %v2914 = vpop.f32.mrb[0].mxu0
          %2915 = vmatprep.mubr.bf16.mxu0 0
          %2916 = vmatmul.mubr.bf16.gmra.mrb[0].mxu0 %v2747
          %v2917 = vpop.f32.mrb[0].mxu0
          %v2918 = vadd.f32 %v2777, %v2917
          %v2919 = vpop.f32.mrb[0].mxu0
          %v2920 = vpop.f32.mrb[0].mxu0
          %v2921 = vadd.f32 %v2777, %v2920
          %v2922 = vpop.f32.mrb[0].mxu0
          %2923 = vmatprep.mubr.bf16.mxu0 0
          %2924 = vmatmul.mubr.bf16.gmra.mrb[0].mxu0 %v2748
          %v2925 = vpop.f32.mrb[0].mxu0
          %v2926 = vadd.f32 %v2777, %v2925
          %v2927 = vpop.f32.mrb[0].mxu0
          %v2928 = vpop.f32.mrb[0].mxu0
          %v2929 = vadd.f32 %v2777, %v2928
          %v2930 = vpop.f32.mrb[0].mxu0
          %2931 = vmatprep.mubr.bf16.mxu0 0
          %2932 = vmatmul.mubr.bf16.gmra.mrb[0].mxu0 %v2749
          %v2933 = vpop.f32.mrb[0].mxu0
          %v2934 = vadd.f32 %v2777, %v2933
          %v2935 = vpop.f32.mrb[0].mxu0
          %v2936 = vpop.f32.mrb[0].mxu0
          %v2937 = vadd.f32 %v2777, %v2936
          %v2938 = vpop.f32.mrb[0].mxu0
          %2939 = vmatprep.mubr.bf16.mxu0 0
          %2940 = vmatmul.mubr.bf16.gmra.mrb[0].mxu0 %v2750
          %v2941 = vpop.f32.mrb[0].mxu0
          %v2942 = vadd.f32 %v2777, %v2941
          %v2943 = vpop.f32.mrb[0].mxu0
          %v2944 = vpop.f32.mrb[0].mxu0
          %v2945 = vadd.f32 %v2777, %v2944
          %v2946 = vpop.f32.mrb[0].mxu0
          %2947 = vmatprep.mubr.bf16.mxu0 0
          %2948 = vmatmul.mubr.bf16.gmra.mrb[0].mxu0 %v2751
          %v2949 = vpop.f32.mrb[0].mxu0
          %v2950 = vadd.f32 %v2777, %v2949
          %v2951 = vpop.f32.mrb[0].mxu0
          %v2952 = vpop.f32.mrb[0].mxu0
          %v2953 = vadd.f32 %v2777, %v2952
          %v2954 = vpop.f32.mrb[0].mxu0
          %2955 = vmatprep.mubr.bf16.mxu0 0
          %2956 = vmatmul.mubr.bf16.gmra.mrb[0].mxu0 %v2752
          %v2957 = vpop.f32.mrb[0].mxu0
          %v2958 = vadd.f32 %v2777, %v2957
          %v2959 = vpop.f32.mrb[0].mxu0
          %v2960 = vpop.f32.mrb[0].mxu0
          %v2961 = vadd.f32 %v2777, %v2960
          %v2962 = vpop.f32.mrb[0].mxu0
          %2963 = vmatprep.mubr.bf16.mxu0 0
          %2964 = vmatmul.mubr.bf16.gmra.mrb[0].mxu0 %v2753
          %v2965 = vpop.f32.mrb[0].mxu0
          %v2966 = vadd.f32 %v2777, %v2965
          %v2967 = vpop.f32.mrb[0].mxu0
          %v2968 = vpop.f32.mrb[0].mxu0
          %v2969 = vadd.f32 %v2777, %v2968
          %v2970 = vpop.f32.mrb[0].mxu0
          %2971 = vmatprep.mubr.bf16.mxu0 0
          %2972 = vmatmul.mubr.bf16.gmra.mrb[0].mxu0 %v2754
          %v2973 = vpop.f32.mrb[0].mxu0
          %v2974 = vadd.f32 %v2777, %v2973
          %v2975 = vpop.f32.mrb[0].mxu0
          %v2976 = vpop.f32.mrb[0].mxu0
          %v2977 = vadd.f32 %v2777, %v2976
          %v2978 = vpop.f32.mrb[0].mxu0
          %2979 = vmatprep.mubr.bf16.mxu0 0
          %2980 = vmatmul.mubr.bf16.gmra.mrb[0].mxu0 %v2755
          %v2981 = vpop.f32.mrb[0].mxu0
          %v2982 = vadd.f32 %v2777, %v2981
          %v2983 = vpop.f32.mrb[0].mxu0
          %v2984 = vpop.f32.mrb[0].mxu0
          %v2985 = vadd.f32 %v2777, %v2984
          %v2986 = vpop.f32.mrb[0].mxu0
          %2987 = vdwg.mxu0
          %v2988 = vld [vmem:[%s421] sm:$0xff]
          %v2989 = vld [vmem:[%s421 + $0x8] sm:$0xff]
          %v2990 = vld [vmem:[%s421 + $0x10] sm:$0xff]
          %v2991 = vld [vmem:[%s421 + $0x18] sm:$0xff]
          %v2992 = vld [vmem:[%s421 + $0x20] sm:$0xff]
          %v2993 = vld [vmem:[%s421 + $0x28] sm:$0xff]
          %v2994 = vld [vmem:[%s421 + $0x30] sm:$0xff]
          %v2995 = vld [vmem:[%s421 + $0x38] sm:$0xff]
          %v2996 = vld [vmem:[%s421 + $0x40] sm:$0xff]
          %v2997 = vld [vmem:[%s421 + $0x48] sm:$0xff]
          %v2998 = vld [vmem:[%s421 + $0x50] sm:$0xff]
          %v2999 = vld [vmem:[%s421 + $0x58] sm:$0xff]
          %v3000 = vld [vmem:[%s421 + $0x60] sm:$0xff]
          %v3001 = vld [vmem:[%s421 + $0x68] sm:$0xff]
          %v3002 = vld [vmem:[%s421 + $0x70] sm:$0xff]
          %v3003 = vld [vmem:[%s421 + $0x78] sm:$0xff]
          %v3004 = vld [vmem:[%s421 + $0x80] sm:$0xff]
          %v3005 = vld [vmem:[%s421 + $0x88] sm:$0xff]
          %v3006 = vld [vmem:[%s421 + $0x90] sm:$0xff]
          %v3007 = vld [vmem:[%s421 + $0x98] sm:$0xff]
          %v3008 = vld [vmem:[%s421 + $0xa0] sm:$0xff]
          %v3009 = vld [vmem:[%s421 + $0xa8] sm:$0xff]
          %v3010 = vld [vmem:[%s421 + $0xb0] sm:$0xff]
          %v3011 = vld [vmem:[%s421 + $0xb8] sm:$0xff]
          %v3012 = vld [vmem:[%s421 + $0xc0] sm:$0xff]
          %v3013 = vld [vmem:[%s421 + $0xc8] sm:$0xff]
          %v3014 = vld [vmem:[%s421 + $0xd0] sm:$0xff]
          %v3015 = vld [vmem:[%s421 + $0xd8] sm:$0xff]
          %v3016 = vld [vmem:[%s421 + $0xe0] sm:$0xff]
          %v3017 = vld [vmem:[%s421 + $0xe8] sm:$0xff]
          %v3018 = vld [vmem:[%s421 + $0xf0] sm:$0xff]
          %v3019 = vld [vmem:[%s421 + $0xf8] sm:$0xff]
          %s3020 = sld [smem:[#allocation5]]
          %v3021 = vstv %s3020
          %v3022 = vmul.f32 %v3021, %v2862
          %v3023 = vmul.f32 %v3021, %v2865
          %v3024 = vmul.f32 %v3021, %v2870
          %v3025 = vmul.f32 %v3021, %v2873
          %v3026 = vmul.f32 %v3021, %v2878
          %v3027 = vmul.f32 %v3021, %v2881
          %v3028 = vmul.f32 %v3021, %v2886
          %v3029 = vmul.f32 %v3021, %v2889
          %v3030 = vmul.f32 %v3021, %v2894
          %v3031 = vmul.f32 %v3021, %v2897
          %v3032 = vmul.f32 %v3021, %v2902
          %v3033 = vmul.f32 %v3021, %v2905
          %v3034 = vmul.f32 %v3021, %v2910
          %v3035 = vmul.f32 %v3021, %v2913
          %v3036 = vmul.f32 %v3021, %v2918
          %v3037 = vmul.f32 %v3021, %v2921
          %v3038 = vmul.f32 %v3021, %v2926
          %v3039 = vmul.f32 %v3021, %v2929
          %v3040 = vmul.f32 %v3021, %v2934
          %v3041 = vmul.f32 %v3021, %v2937
          %v3042 = vmul.f32 %v3021, %v2942
          %v3043 = vmul.f32 %v3021, %v2945
          %v3044 = vmul.f32 %v3021, %v2950
          %v3045 = vmul.f32 %v3021, %v2953
          %v3046 = vmul.f32 %v3021, %v2958
          %v3047 = vmul.f32 %v3021, %v2961
          %v3048 = vmul.f32 %v3021, %v2966
          %v3049 = vmul.f32 %v3021, %v2969
          %v3050 = vmul.f32 %v3021, %v2974
          %v3051 = vmul.f32 %v3021, %v2977
          %v3052 = vmul.f32 %v3021, %v2982
          %v3053 = vmul.f32 %v3021, %v2985
          %v3054 = vadd.f32 %v2988, %v3022
          %v3055 = vadd.f32 %v2989, %v3023
          %v3056 = vadd.f32 %v2990, %v3024
          %v3057 = vadd.f32 %v2991, %v3025
          %v3058 = vadd.f32 %v2992, %v3026
          %v3059 = vadd.f32 %v2993, %v3027
          %v3060 = vadd.f32 %v2994, %v3028
          %v3061 = vadd.f32 %v2995, %v3029
          %v3062 = vadd.f32 %v2996, %v3030
          %v3063 = vadd.f32 %v2997, %v3031
          %v3064 = vadd.f32 %v2998, %v3032
          %v3065 = vadd.f32 %v2999, %v3033
          %v3066 = vadd.f32 %v3000, %v3034
          %v3067 = vadd.f32 %v3001, %v3035
          %v3068 = vadd.f32 %v3002, %v3036
          %v3069 = vadd.f32 %v3003, %v3037
          %v3070 = vadd.f32 %v3004, %v3038
          %v3071 = vadd.f32 %v3005, %v3039
          %v3072 = vadd.f32 %v3006, %v3040
          %v3073 = vadd.f32 %v3007, %v3041
          %v3074 = vadd.f32 %v3008, %v3042
          %v3075 = vadd.f32 %v3009, %v3043
          %v3076 = vadd.f32 %v3010, %v3044
          %v3077 = vadd.f32 %v3011, %v3045
          %v3078 = vadd.f32 %v3012, %v3046
          %v3079 = vadd.f32 %v3013, %v3047
          %v3080 = vadd.f32 %v3014, %v3048
          %v3081 = vadd.f32 %v3015, %v3049
          %v3082 = vadd.f32 %v3016, %v3050
          %v3083 = vadd.f32 %v3017, %v3051
          %v3084 = vadd.f32 %v3018, %v3052
          %v3085 = vadd.f32 %v3019, %v3053
          %3086 = vst [vmem:[%s382] sm:$0xff] %v3054
          %3087 = vst [vmem:[%s382 + $0x8] sm:$0xff] %v3055
          %3088 = vst [vmem:[%s382 + $0x10] sm:$0xff] %v3056
          %3089 = vst [vmem:[%s382 + $0x18] sm:$0xff] %v3057
          %3090 = vst [vmem:[%s382 + $0x20] sm:$0xff] %v3058
          %3091 = vst [vmem:[%s382 + $0x28] sm:$0xff] %v3059
          %3092 = vst [vmem:[%s382 + $0x30] sm:$0xff] %v3060
          %3093 = vst [vmem:[%s382 + $0x38] sm:$0xff] %v3061
          %3094 = vst [vmem:[%s382 + $0x40] sm:$0xff] %v3062
          %3095 = vst [vmem:[%s382 + $0x48] sm:$0xff] %v3063
          %3096 = vst [vmem:[%s382 + $0x50] sm:$0xff] %v3064
          %3097 = vst [vmem:[%s382 + $0x58] sm:$0xff] %v3065
          %3098 = vst [vmem:[%s382 + $0x60] sm:$0xff] %v3066
          %3099 = vst [vmem:[%s382 + $0x68] sm:$0xff] %v3067
          %3100 = vst [vmem:[%s382 + $0x70] sm:$0xff] %v3068
          %3101 = vst [vmem:[%s382 + $0x78] sm:$0xff] %v3069
          %3102 = vst [vmem:[%s382 + $0x80] sm:$0xff] %v3070
          %3103 = vst [vmem:[%s382 + $0x88] sm:$0xff] %v3071
          %3104 = vst [vmem:[%s382 + $0x90] sm:$0xff] %v3072
          %3105 = vst [vmem:[%s382 + $0x98] sm:$0xff] %v3073
          %3106 = vst [vmem:[%s382 + $0xa0] sm:$0xff] %v3074
          %3107 = vst [vmem:[%s382 + $0xa8] sm:$0xff] %v3075
          %3108 = vst [vmem:[%s382 + $0xb0] sm:$0xff] %v3076
          %3109 = vst [vmem:[%s382 + $0xb8] sm:$0xff] %v3077
          %3110 = vst [vmem:[%s382 + $0xc0] sm:$0xff] %v3078
          %3111 = vst [vmem:[%s382 + $0xc8] sm:$0xff] %v3079
          %3112 = vst [vmem:[%s382 + $0xd0] sm:$0xff] %v3080
          %3113 = vst [vmem:[%s382 + $0xd8] sm:$0xff] %v3081
          %3114 = vst [vmem:[%s382 + $0xe0] sm:$0xff] %v3082
          %3115 = vst [vmem:[%s382 + $0xe8] sm:$0xff] %v3083
          %3116 = vst [vmem:[%s382 + $0xf0] sm:$0xff] %v3084
          %3117 = vst [vmem:[%s382 + $0xf8] sm:$0xff] %v3085
        $region56: #{self_attention_forward.3} parent=47 // pred_fallthru
          _
        %s3118 = sand.u32 %s226, 1
        %s3119 = scalar_lea.sflag [#allocation7], %s3118
        %s3120 = sand.u32 %s226, 1
        %s3121 = smul.addr %s3120, 256
        %s3122 = scalar_lea.vmem [#allocation6], %s3121
        // Predicated region
        $region57: #{self_attention_forward.3} parent=47 // pred_check
          %p3123 = pneg %p236
        $region58: #{self_attention_forward.3} parent=47 // pred_check_branch
          %3125 = sbr.rel (%p3123) target = $region60
        $region59: #{self_attention_forward.3} parent=47 // pred_region
          %s3126 = smul.u32 32, %s28
          %s3128 = ssub.s32 4096, 4096
          %3129 = vsyncadd %s3119, %s3128
          %s3130 = smul.addr %s27, 32
          %s3131 = sadd.s32 %s3126, %s3130
          %s3132 = smul.addr %s3131, 128
          %s3133 = scalar_lea.hbm %s7, %s3132
          %s3134 = sshll.u32 %s3122, 4
          %s3135 = int_to_ptr.vmem [resolvable:$true] %s3134
          %3140 = dma.vmem_to_hbm [thread:$0]  %s3135, 4096, %s3133, %s3119, 128, 128, 8
        $region60: #{self_attention_forward.3} parent=47 // pred_fallthru
          _
      $region48: #{self_attention_forward.3} parent=5 // pred_fallthru
        _
      %p3141 = scmp.le.s32.totalorder 2, %s17
      // Predicated region
      $region61: #{self_attention_forward.3} parent=5 // pred_check
        %p3142 = pneg %p3141
      $region62: #{self_attention_forward.3} parent=5 // pred_check_branch
        %3144 = sbr.rel (%p3142) target = $region64
      $region63: #{self_attention_forward.3} parent=5 // pred_region
        %s3145 = ssub.s32 %s17, 2
        // Predicated region
        $region65: #{self_attention_forward.3} parent=63 // pred_check
          %p3146 = pneg %p242
        $region66: #{self_attention_forward.3} parent=63 // pred_check_branch
          %3148 = sbr.rel (%p3146) target = $region68
        $region67: #{self_attention_forward.3} parent=63 // pred_region
          %s3149 = sand.u32 %s227, 1
          %s3150 = scalar_lea.sflag [#allocation7], %s3149
          %s3151 = sand.u32 %s227, 1
          %s3152 = smul.addr %s3151, 256
          %s3153 = scalar_lea.vmem [#allocation6], %s3152
          %3154 = dma.done %s3150, 4096
        $region68: #{self_attention_forward.3} parent=63 // pred_fallthru
          _
      $region64: #{self_attention_forward.3} parent=5 // pred_fallthru
        _
    $region6: #{self_attention_forward.3} parent=1 // loop_footer
      %s21 = sadd.s32 1, %s17
    $region7: #{self_attention_forward.3} parent=1 // loop_footer_branch
      %16 = sbr.rel target = $region3
    $region8: #{self_attention_forward.3} parent=1 // loop_exit
      _
    %3155 = vsyncpa [#allocation7], 1
    %s3156 = scalar_lea.sflag [#allocation7], 1
    %3157 = vsyncpa %s3156, 1

</llo_original>
